<compile_context>
chip_gen: v7x
topology: tpu7x:2x2x1
jax: 0.10.0
libtpu: 0.0.40
codegen_flags: <defaults>
</compile_context>

<pallas_src>
import jax
import jax.numpy as jnp
from jax.experimental import pallas as pl
from jax.experimental.pallas import tpu as pltpu

# ---------------- small, module-consistent config ----------------
B = 2              # batch
T = 3              # number of text templates per sample
L = 8              # context_length
D = 32             # transformer_width
H = 2              # transformer_heads
DH = D // H
NLAYERS = 2        # transformer_layers
VOCAB = 64         # vocab_size
E = 32             # embed_dim
EPAD = 128         # lane-dense padded output width (E zero-padded to 128)
VISION_W = 32      # vision_width
PC_FEAT = 32       # pc_feat_dims
PC_PROJ_OUT = 512  # pc_projection output (hardcoded 512 in the module)
C_IMG, H_IMG, W_IMG = 3, 16, 16
N_PTS = 16
LN_EPS = 1e-5
TL = T * L         # all prompts of one sample flattened into one block


# ---------------- in-kernel helpers ----------------
def _layernorm(x, g, b):
    xf = x.astype(jnp.float32)
    mu = jnp.mean(xf, axis=-1, keepdims=True)
    var = jnp.mean(jnp.square(xf - mu), axis=-1, keepdims=True)
    return (xf - mu) * jax.lax.rsqrt(var + LN_EPS) * g + b


# ---------------- fused text-encoder kernel (all layers + epilogue, grid=(B,)) ----------------
def text_encoder_kernel(eot_ref,                        # scalar-prefetched EOT indices (B*T,)
                        x_ref, mask_ref,
                        ln1_g_ref, ln1_b_ref,
                        wqkv_ref, bqkv_ref, wo_ref, bo_ref,
                        ln2_g_ref, ln2_b_ref,
                        wfc_ref, bfc_ref, wproj_ref, bproj_ref,
                        lnf_g_ref, lnf_b_ref, tproj_ref,
                        o_ref):
    b = pl.program_id(0)             # sample index
    x = x_ref[0].astype(jnp.float32)     # (TL, D) residual stream, value-carried
    mask = mask_ref[...]                  # (TL, TL) block-diagonal causal (finite -1e9)

    # ---- statically unrolled transformer layers (weights resident in VMEM) ----
    for layer in range(NLAYERS):
        # attention branch
        h = _layernorm(x, ln1_g_ref[layer], ln1_b_ref[layer])
        # single fused QKV push: (TL, D) @ (D, 3D).  q scale pre-folded into weights; the
        # key bias is dropped (constant over keys -> cancels in softmax).
        qkv = jnp.dot(h, wqkv_ref[layer], preferred_element_type=jnp.float32) + bqkv_ref[layer]
        heads = []
        for hh in range(H):          # static per-head loop; in-register lane slices
            q = qkv[:, hh * DH:(hh + 1) * DH]
            k = qkv[:, D + hh * DH:D + (hh + 1) * DH]
            v = qkv[:, 2 * D + hh * DH:2 * D + (hh + 1) * DH]
            s = jax.lax.dot_general(q, k, (((1,), (1,)), ((), ())),
                                    preferred_element_type=jnp.float32) + mask
            s = s - jnp.max(s, axis=-1, keepdims=True)
            p = jnp.exp(s)
            a = p * pl.reciprocal(jnp.sum(p, axis=-1, keepdims=True), approx=True)
            heads.append(jnp.dot(a, v, preferred_element_type=jnp.float32))     # (TL, DH)
        ctx = jnp.concatenate(heads, axis=-1)                                   # (TL, D)
        x = x + jnp.dot(ctx, wo_ref[layer], preferred_element_type=jnp.float32) + bo_ref[layer]

        # MLP branch
        h2 = _layernorm(x, ln2_g_ref[layer], ln2_b_ref[layer])
        u = jnp.dot(h2, wfc_ref[layer], preferred_element_type=jnp.float32) + bfc_ref[layer]
        u = u * jax.nn.sigmoid(1.702 * u)                                       # QuickGELU
        x = x + jnp.dot(u, wproj_ref[layer], preferred_element_type=jnp.float32) + bproj_ref[layer]

    # ---- epilogue: EOT gather (before ln_final) + ln_final + text_proj + norm/mean/norm ----
    col = jax.lax.broadcasted_iota(jnp.int32, (1, TL), 1)
    sel_rows = []
    for t in range(T):
        e = eot_ref[b * T + t]                                                  # SMEM scalar
        sel_rows.append(jnp.where(col == t * L + e, 1.0, 0.0).astype(jnp.float32))
    sel = jnp.concatenate(sel_rows, axis=0)                                     # (T, TL) one-hot
    x_eot = jnp.dot(sel, x, preferred_element_type=jnp.float32)                 # (T, D) gathered rows
    xf = _layernorm(x_eot, lnf_g_ref[...], lnf_b_ref[...])                      # LN on T rows only
    emb = jnp.dot(xf, tproj_ref[...], preferred_element_type=jnp.float32)       # (T, EPAD), zero-padded
    inv = jax.lax.rsqrt(jnp.maximum(jnp.sum(emb * emb, axis=-1, keepdims=True), 1e-24))
    embn = emb * inv
    m = jnp.mean(embn, axis=0, keepdims=True)                                   # (1, EPAD)
    m_inv = jax.lax.rsqrt(jnp.maximum(jnp.sum(m * m, axis=-1, keepdims=True), 1e-24))
    o_ref[0] = (m * m_inv).astype(o_ref.dtype)                                  # lane-dense store


# ---------------- wrapper ----------------
def encode_text_fused(tokens, params):
    # tokens: (B, T, L) int32 — the per-sample prompt loop of the reference forward.
    bsz, t, l = tokens.shape
    flat = tokens.reshape(bsz * t, l)
    x = params['tok_emb'][flat] + params['pos_emb']            # glue: embedding gather
    x = x.reshape(bsz, t * l, D).astype(jnp.float32)
    eot = jnp.argmax(flat, axis=-1).astype(jnp.int32)          # (B*T,) EOT indices

    def fixed(shape):
        nd = len(shape)
        return pl.BlockSpec(shape, lambda bi, e, _nd=nd: (0,) * _nd)

    in_specs = [
        pl.BlockSpec((1, TL, D), lambda bi, e: (bi, 0, 0)),    # x (per sample)
        fixed((TL, TL)),                                       # block-diag causal mask
        fixed((NLAYERS, 1, D)), fixed((NLAYERS, 1, D)),        # ln1 g/b (stacked, resident)
        fixed((NLAYERS, D, 3 * D)), fixed((NLAYERS, 1, 3 * D)),  # fused wqkv / bqkv
        fixed((NLAYERS, D, D)), fixed((NLAYERS, 1, D)),        # wo / bo
        fixed((NLAYERS, 1, D)), fixed((NLAYERS, 1, D)),        # ln2 g/b
        fixed((NLAYERS, D, 4 * D)), fixed((NLAYERS, 1, 4 * D)),  # wfc / bfc
        fixed((NLAYERS, 4 * D, D)), fixed((NLAYERS, 1, D)),    # wproj / bproj
        fixed((1, D)), fixed((1, D)),                          # ln_final g/b
        fixed((D, EPAD)),                                      # text_projection (lane-padded)
    ]

    grid_spec = pltpu.PrefetchScalarGridSpec(
        num_scalar_prefetch=1,
        grid=(bsz,),
        in_specs=in_specs,
        out_specs=pl.BlockSpec((1, 1, EPAD), lambda bi, e: (bi, 0, 0)),
    )

    # advisory cost estimate so XLA can overlap the embedding-gather / argmax glue
    w_elems = NLAYERS * (2 * D + D * 3 * D + 3 * D + D * D + D + 2 * D
                         + D * 4 * D + 4 * D + 4 * D * D + D) + 2 * D + D * EPAD
    flops = bsz * (NLAYERS * (2 * TL * D * 3 * D + H * 4 * TL * TL * DH
                              + 2 * TL * D * D + 4 * TL * D * 4 * D)
                   + 2 * T * TL * D + 2 * T * D * EPAD)
    transcendentals = bsz * NLAYERS * (H * TL * TL + TL * 4 * D)
    bytes_accessed = 4 * (w_elems + bsz * (TL * D + EPAD) + TL * TL)

    out = pl.pallas_call(
        text_encoder_kernel,
        out_shape=jax.ShapeDtypeStruct((bsz, 1, EPAD), jnp.float32),
        grid_spec=grid_spec,
        compiler_params=pltpu.CompilerParams(
            dimension_semantics=("parallel",)),   # 2 TCs on v7x; trivially serial on v5e/v6e
        cost_estimate=pl.CostEstimate(flops=flops, transcendentals=transcendentals,
                                      bytes_accessed=bytes_accessed),
    )(eot, x, params['attn_mask'],
      params['ln1_g'], params['ln1_b'],
      params['wqkv'], params['bqkv'], params['wo'], params['bo'],
      params['ln2_g'], params['ln2_b'],
      params['wfc'], params['bfc'], params['wproj'], params['bproj'],
      params['lnf_g'], params['lnf_b'], params['text_proj_pad'])
    return out[:, 0, :E]


# ---------------- model (ULIP branch of CrossMoST_multiview.forward) ----------------
def crossmost_forward(image, pc, text, params):
    # TODO(synk): `point_encoder` and `visual` are external modules with no definition in
    # the reference; stand in with deterministic mean-pool + linear feature extractors.
    pc_feat = jnp.mean(pc, axis=1) @ params['w_point_stub']          # (B, PC_FEAT)
    img_feat = jnp.mean(image, axis=(2, 3)) @ params['w_vis_stub']   # (B, VISION_W)
    # Tiny GEMV chains left to plain XLA per perf review (custom-call overhead > payload).
    pc_embed = pc_feat @ params['pc_projection']                     # (B, 512)
    image_embed = img_feat @ params['image_projection']              # (B, E)

    text_embed = encode_text_fused(text, params)                     # (B, E)

    return {
        'text_embed': text_embed,
        'pc_embed': pc_embed,
        'image_embed': image_embed,
        'logit_scale': jnp.exp(params['logit_scale']),
    }


# ---------------- deterministic parameter init (matches __init__ shapes) ----------------
def init_params(key):
    keys = iter(jax.random.split(key, 32))
    nrm = lambda shape, std: jax.random.normal(next(keys), shape, jnp.float32) * std

    attn_std = D ** -0.5
    proj_std = (D ** -0.5) * ((2 * NLAYERS) ** -0.5)
    fc_std = (2 * D) ** -0.5
    q_scale = 1.0 / (DH ** 0.5)

    wqkv_l, bqkv_l, wo_l, bo_l = [], [], [], []
    ln1_g_l, ln1_b_l, ln2_g_l, ln2_b_l = [], [], [], []
    wfc_l, bfc_l, wproj_l, bproj_l = [], [], [], []

    # fold 1/sqrt(DH) into the q columns of the fused (D, 3D) slab
    col_scale = jnp.concatenate([jnp.full((D,), q_scale, jnp.float32),
                                 jnp.ones((2 * D,), jnp.float32)])[None, :]

    for _ in range(NLAYERS):
        w_in = nrm((3 * D, D), attn_std)      # PyTorch in_proj_weight layout (3D, D): rows q|k|v
        w_out = nrm((D, D), proj_std)         # out_proj.weight
        # x @ w_in.T -> columns [q | k | v]; q columns pre-scaled.  Key bias is dropped
        # from the score path (the (q+bq)·bk^T term is constant over keys -> cancels in
        # softmax), q bias would be pre-scaled too (all biases are zero-init here anyway).
        wqkv_l.append(w_in.T * col_scale)                          # (D, 3D)
        bqkv_l.append(jnp.zeros((1, 3 * D), jnp.float32))
        wo_l.append(w_out.T)                                       # (D, D)
        bo_l.append(jnp.zeros((1, D), jnp.float32))
        ln1_g_l.append(jnp.ones((1, D), jnp.float32)); ln1_b_l.append(jnp.zeros((1, D), jnp.float32))
        ln2_g_l.append(jnp.ones((1, D), jnp.float32)); ln2_b_l.append(jnp.zeros((1, D), jnp.float32))
        wfc_l.append(nrm((4 * D, D), fc_std).T)                    # (D, 4D) pre-transposed
        bfc_l.append(jnp.zeros((1, 4 * D), jnp.float32))
        wproj_l.append(nrm((D, 4 * D), proj_std).T)                # (4D, D)
        bproj_l.append(jnp.zeros((1, D), jnp.float32))

    stack = lambda lst: jnp.stack(lst, axis=0)

    # block-diagonal causal mask over T prompts of length L each (finite value: NaN-safe)
    idx = jnp.arange(TL)
    seq = idx // L
    pos = idx % L
    allow = (seq[:, None] == seq[None, :]) & (pos[None, :] <= pos[:, None])
    attn_mask = jnp.where(allow, 0.0, -1e9).astype(jnp.float32)

    # text projection zero-padded to 128 lanes (zero lanes do not change norms/means)
    text_proj = nrm((D, E), D ** -0.5)
    text_proj_pad = jnp.zeros((D, EPAD), jnp.float32).at[:, :E].set(text_proj)

    return dict(
        # stacked per-layer weights (leading NLAYERS axis, VMEM-resident in the kernel)
        ln1_g=stack(ln1_g_l), ln1_b=stack(ln1_b_l),
        wqkv=stack(wqkv_l), bqkv=stack(bqkv_l),
        wo=stack(wo_l), bo=stack(bo_l),
        ln2_g=stack(ln2_g_l), ln2_b=stack(ln2_b_l),
        wfc=stack(wfc_l), bfc=stack(bfc_l),
        wproj=stack(wproj_l), bproj=stack(bproj_l),
        # shared
        attn_mask=attn_mask,
        tok_emb=nrm((VOCAB, D), 0.02),
        pos_emb=nrm((L, D), 0.01),
        lnf_g=jnp.ones((1, D), jnp.float32), lnf_b=jnp.zeros((1, D), jnp.float32),
        text_proj_pad=text_proj_pad,
        image_projection=nrm((VISION_W, E), VISION_W ** -0.5),
        pc_projection=nrm((PC_FEAT, PC_PROJ_OUT), PC_PROJ_OUT ** -0.5),
        logit_scale=jnp.asarray(jnp.log(1.0 / 0.07), jnp.float32),
        w_point_stub=nrm((3, PC_FEAT), 0.02),
        w_vis_stub=nrm((C_IMG, VISION_W), 0.02),
    )


if __name__ == "__main__":
    key = jax.random.PRNGKey(0)
    kp, ki, kc, kt = jax.random.split(key, 4)
    params = init_params(kp)

    image = jax.random.normal(ki, (B, C_IMG, H_IMG, W_IMG), jnp.float32)
    pc = jax.random.normal(kc, (B, N_PTS, 3), jnp.float32)
    text = jax.random.randint(kt, (B, T, L), 0, VOCAB, dtype=jnp.int32)

    fwd = jax.jit(crossmost_forward)
    out = fwd(image, pc, text, params)
    jax.block_until_ready(out)

    assert out['text_embed'].shape == (B, E)
    assert out['image_embed'].shape == (B, E)
    assert out['pc_embed'].shape == (B, PC_PROJ_OUT)
    assert bool(jnp.all(jnp.isfinite(out['text_embed'])))
    print("KERNEL_OK")
</pallas_src>

<mosaic_0001>
module attributes {stable_mosaic.version = 11 : i64} {
  func.func @text_encoder_kernel(%arg0: i32, %arg1: memref<6xi32, #tpu.memory_space<smem>>, %arg2: memref<1x24x32xf32, #tpu.memory_space<vmem>>, %arg3: memref<24x24xf32, #tpu.memory_space<vmem>>, %arg4: memref<2x1x32xf32, #tpu.memory_space<vmem>>, %arg5: memref<2x1x32xf32, #tpu.memory_space<vmem>>, %arg6: memref<2x32x96xf32, #tpu.memory_space<vmem>>, %arg7: memref<2x1x96xf32, #tpu.memory_space<vmem>>, %arg8: memref<2x32x32xf32, #tpu.memory_space<vmem>>, %arg9: memref<2x1x32xf32, #tpu.memory_space<vmem>>, %arg10: memref<2x1x32xf32, #tpu.memory_space<vmem>>, %arg11: memref<2x1x32xf32, #tpu.memory_space<vmem>>, %arg12: memref<2x32x128xf32, #tpu.memory_space<vmem>>, %arg13: memref<2x1x128xf32, #tpu.memory_space<vmem>>, %arg14: memref<2x128x32xf32, #tpu.memory_space<vmem>>, %arg15: memref<2x1x32xf32, #tpu.memory_space<vmem>>, %arg16: memref<1x32xf32, #tpu.memory_space<vmem>>, %arg17: memref<1x32xf32, #tpu.memory_space<vmem>>, %arg18: memref<32x128xf32, #tpu.memory_space<vmem>>, %arg19: memref<1x1x128xf32, #tpu.memory_space<vmem>>) attributes {dimension_semantics = [#tpu.dimension_semantics<parallel>], iteration_bounds = array<i64: 2>, scalar_prefetch = 1 : i64, scratch_operands = 0 : i64, tpu.core_type = #tpu.core_type<tc>, window_params = [{transform_indices = @transform_0, window_bounds = array<i64: 1, 24, 32>}, {pipeline_mode = #tpu.pipeline_mode<synchronous>, transform_indices = @transform_1, window_bounds = array<i64: 24, 24>}, {pipeline_mode = #tpu.pipeline_mode<synchronous>, transform_indices = @transform_2, window_bounds = array<i64: 2, 1, 32>}, {pipeline_mode = #tpu.pipeline_mode<synchronous>, transform_indices = @transform_3, window_bounds = array<i64: 2, 1, 32>}, {pipeline_mode = #tpu.pipeline_mode<synchronous>, transform_indices = @transform_4, window_bounds = array<i64: 2, 32, 96>}, {pipeline_mode = #tpu.pipeline_mode<synchronous>, transform_indices = @transform_5, window_bounds = array<i64: 2, 1, 96>}, {pipeline_mode = #tpu.pipeline_mode<synchronous>, transform_indices = @transform_6, window_bounds = array<i64: 2, 32, 32>}, {pipeline_mode = #tpu.pipeline_mode<synchronous>, transform_indices = @transform_7, window_bounds = array<i64: 2, 1, 32>}, {pipeline_mode = #tpu.pipeline_mode<synchronous>, transform_indices = @transform_8, window_bounds = array<i64: 2, 1, 32>}, {pipeline_mode = #tpu.pipeline_mode<synchronous>, transform_indices = @transform_9, window_bounds = array<i64: 2, 1, 32>}, {pipeline_mode = #tpu.pipeline_mode<synchronous>, transform_indices = @transform_10, window_bounds = array<i64: 2, 32, 128>}, {pipeline_mode = #tpu.pipeline_mode<synchronous>, transform_indices = @transform_11, window_bounds = array<i64: 2, 1, 128>}, {pipeline_mode = #tpu.pipeline_mode<synchronous>, transform_indices = @transform_12, window_bounds = array<i64: 2, 128, 32>}, {pipeline_mode = #tpu.pipeline_mode<synchronous>, transform_indices = @transform_13, window_bounds = array<i64: 2, 1, 32>}, {pipeline_mode = #tpu.pipeline_mode<synchronous>, transform_indices = @transform_14, window_bounds = array<i64: 1, 32>}, {pipeline_mode = #tpu.pipeline_mode<synchronous>, transform_indices = @transform_15, window_bounds = array<i64: 1, 32>}, {pipeline_mode = #tpu.pipeline_mode<synchronous>, transform_indices = @transform_16, window_bounds = array<i64: 32, 128>}, {transform_indices = @transform_17, window_bounds = array<i64: 1, 1, 128>}]} {
    %c0 = arith.constant 0 : index
    %c0_0 = arith.constant 0 : index
    %c0_1 = arith.constant 0 : index
    %0 = vector.load %arg2[%c0, %c0_0, %c0_1] : memref<1x24x32xf32, #tpu.memory_space<vmem>>, vector<1x24x32xf32>
    %1 = vector.shape_cast %0 : vector<1x24x32xf32> to vector<24x32xf32>
    %c0_2 = arith.constant 0 : index
    %c0_3 = arith.constant 0 : index
    %2 = vector.load %arg3[%c0_2, %c0_3] : memref<24x24xf32, #tpu.memory_space<vmem>>, vector<24x24xf32>
    %c0_4 = arith.constant 0 : index
    %c0_5 = arith.constant 0 : index
    %c0_6 = arith.constant 0 : index
    %3 = vector.load %arg4[%c0_4, %c0_5, %c0_6] : memref<2x1x32xf32, #tpu.memory_space<vmem>>, vector<1x1x32xf32>
    %4 = vector.shape_cast %3 : vector<1x1x32xf32> to vector<1x32xf32>
    %c0_7 = arith.constant 0 : index
    %c0_8 = arith.constant 0 : index
    %c0_9 = arith.constant 0 : index
    %5 = vector.load %arg5[%c0_7, %c0_8, %c0_9] : memref<2x1x32xf32, #tpu.memory_space<vmem>>, vector<1x1x32xf32>
    %6 = vector.shape_cast %5 : vector<1x1x32xf32> to vector<1x32xf32>
    %cst = arith.constant dense<0.000000e+00> : vector<24xf32>
    %7 = vector.multi_reduction <add>, %1, %cst [1] : vector<24x32xf32> to vector<24xf32>
    %8 = vector.shape_cast %7 : vector<24xf32> to vector<24x1xf32>
    %cst_10 = arith.constant 3.200000e+01 : f32
    %9 = vector.broadcast %cst_10 : f32 to vector<24x1xf32>
    %10 = arith.divf %8, %9 : vector<24x1xf32>
    %11 = vector.broadcast %10 : vector<24x1xf32> to vector<24x32xf32>
    %12 = arith.subf %1, %11 : vector<24x32xf32>
    %13 = arith.mulf %12, %12 : vector<24x32xf32>
    %cst_11 = arith.constant dense<0.000000e+00> : vector<24xf32>
    %14 = vector.multi_reduction <add>, %13, %cst_11 [1] : vector<24x32xf32> to vector<24xf32>
    %15 = vector.shape_cast %14 : vector<24xf32> to vector<24x1xf32>
    %cst_12 = arith.constant 3.200000e+01 : f32
    %16 = vector.broadcast %cst_12 : f32 to vector<24x1xf32>
    %17 = arith.divf %15, %16 : vector<24x1xf32>
    %18 = vector.broadcast %10 : vector<24x1xf32> to vector<24x32xf32>
    %19 = arith.subf %1, %18 : vector<24x32xf32>
    %cst_13 = arith.constant 9.99999974E-6 : f32
    %20 = vector.broadcast %cst_13 : f32 to vector<24x1xf32>
    %21 = arith.addf %17, %20 : vector<24x1xf32>
    %22 = math.rsqrt %21 : vector<24x1xf32>
    %23 = vector.broadcast %22 : vector<24x1xf32> to vector<24x32xf32>
    %24 = arith.mulf %19, %23 : vector<24x32xf32>
    %25 = vector.broadcast %4 : vector<1x32xf32> to vector<24x32xf32>
    %26 = arith.mulf %24, %25 : vector<24x32xf32>
    %27 = vector.broadcast %6 : vector<1x32xf32> to vector<24x32xf32>
    %28 = arith.addf %26, %27 : vector<24x32xf32>
    %c0_14 = arith.constant 0 : index
    %c0_15 = arith.constant 0 : index
    %c0_16 = arith.constant 0 : index
    %29 = vector.load %arg6[%c0_14, %c0_15, %c0_16] : memref<2x32x96xf32, #tpu.memory_space<vmem>>, vector<1x32x96xf32>
    %30 = vector.shape_cast %29 : vector<1x32x96xf32> to vector<32x96xf32>
    %cst_17 = arith.constant dense<0.000000e+00> : vector<24x96xf32>
    %31 = tpu.matmul %28, %30, %cst_17 {dimension_numbers = #tpu.dot_dimension_numbers<[1], [0], [0], [1], [0, 0, 1, 1], [], []>} : vector<24x32xf32>, vector<32x96xf32>, vector<24x96xf32> -> vector<24x96xf32>
    %c0_18 = arith.constant 0 : index
    %c0_19 = arith.constant 0 : index
    %c0_20 = arith.constant 0 : index
    %32 = vector.load %arg7[%c0_18, %c0_19, %c0_20] : memref<2x1x96xf32, #tpu.memory_space<vmem>>, vector<1x1x96xf32>
    %33 = vector.shape_cast %32 : vector<1x1x96xf32> to vector<1x96xf32>
    %34 = vector.broadcast %33 : vector<1x96xf32> to vector<24x96xf32>
    %35 = arith.addf %31, %34 : vector<24x96xf32>
    %36 = vector.extract_strided_slice %35 {offsets = [0, 0], sizes = [24, 16], strides = [1, 1]} : vector<24x96xf32> to vector<24x16xf32>
    %37 = vector.extract_strided_slice %35 {offsets = [0, 32], sizes = [24, 16], strides = [1, 1]} : vector<24x96xf32> to vector<24x16xf32>
    %38 = vector.extract_strided_slice %35 {offsets = [0, 64], sizes = [24, 16], strides = [1, 1]} : vector<24x96xf32> to vector<24x16xf32>
    %cst_21 = arith.constant dense<0.000000e+00> : vector<24x24xf32>
    %39 = tpu.matmul %36, %37, %cst_21 {dimension_numbers = #tpu.dot_dimension_numbers<[1], [1], [0], [0], [0, 0, 1, 0], [], []>} : vector<24x16xf32>, vector<24x16xf32>, vector<24x24xf32> -> vector<24x24xf32>
    %40 = arith.addf %39, %2 : vector<24x24xf32>
    %cst_22 = arith.constant dense<0xFF800000> : vector<24xf32>
    %41 = vector.multi_reduction <maximumf>, %40, %cst_22 [1] : vector<24x24xf32> to vector<24xf32>
    %42 = vector.shape_cast %41 : vector<24xf32> to vector<24x1xf32>
    %43 = vector.broadcast %42 : vector<24x1xf32> to vector<24x24xf32>
    %44 = arith.subf %40, %43 : vector<24x24xf32>
    %45 = math.exp %44 : vector<24x24xf32>
    %cst_23 = arith.constant dense<0.000000e+00> : vector<24xf32>
    %46 = vector.multi_reduction <add>, %45, %cst_23 [1] : vector<24x24xf32> to vector<24xf32>
    %47 = vector.shape_cast %46 : vector<24xf32> to vector<24x1xf32>
    %48 = tpu.reciprocal %47 {approx = true} : vector<24x1xf32> -> vector<24x1xf32>
    %49 = vector.broadcast %48 : vector<24x1xf32> to vector<24x24xf32>
    %50 = arith.mulf %45, %49 : vector<24x24xf32>
    %cst_24 = arith.constant dense<0.000000e+00> : vector<24x16xf32>
    %51 = tpu.matmul %50, %38, %cst_24 {dimension_numbers = #tpu.dot_dimension_numbers<[1], [0], [0], [1], [0, 0, 1, 1], [], []>} : vector<24x24xf32>, vector<24x16xf32>, vector<24x16xf32> -> vector<24x16xf32>
    %52 = vector.extract_strided_slice %35 {offsets = [0, 16], sizes = [24, 16], strides = [1, 1]} : vector<24x96xf32> to vector<24x16xf32>
    %53 = vector.extract_strided_slice %35 {offsets = [0, 48], sizes = [24, 16], strides = [1, 1]} : vector<24x96xf32> to vector<24x16xf32>
    %54 = vector.extract_strided_slice %35 {offsets = [0, 80], sizes = [24, 16], strides = [1, 1]} : vector<24x96xf32> to vector<24x16xf32>
    %cst_25 = arith.constant dense<0.000000e+00> : vector<24x24xf32>
    %55 = tpu.matmul %52, %53, %cst_25 {dimension_numbers = #tpu.dot_dimension_numbers<[1], [1], [0], [0], [0, 0, 1, 0], [], []>} : vector<24x16xf32>, vector<24x16xf32>, vector<24x24xf32> -> vector<24x24xf32>
    %56 = arith.addf %55, %2 : vector<24x24xf32>
    %cst_26 = arith.constant dense<0xFF800000> : vector<24xf32>
    %57 = vector.multi_reduction <maximumf>, %56, %cst_26 [1] : vector<24x24xf32> to vector<24xf32>
    %58 = vector.shape_cast %57 : vector<24xf32> to vector<24x1xf32>
    %59 = vector.broadcast %58 : vector<24x1xf32> to vector<24x24xf32>
    %60 = arith.subf %56, %59 : vector<24x24xf32>
    %61 = math.exp %60 : vector<24x24xf32>
    %cst_27 = arith.constant dense<0.000000e+00> : vector<24xf32>
    %62 = vector.multi_reduction <add>, %61, %cst_27 [1] : vector<24x24xf32> to vector<24xf32>
    %63 = vector.shape_cast %62 : vector<24xf32> to vector<24x1xf32>
    %64 = tpu.reciprocal %63 {approx = true} : vector<24x1xf32> -> vector<24x1xf32>
    %65 = vector.broadcast %64 : vector<24x1xf32> to vector<24x24xf32>
    %66 = arith.mulf %61, %65 : vector<24x24xf32>
    %cst_28 = arith.constant dense<0.000000e+00> : vector<24x16xf32>
    %67 = tpu.matmul %66, %54, %cst_28 {dimension_numbers = #tpu.dot_dimension_numbers<[1], [0], [0], [1], [0, 0, 1, 1], [], []>} : vector<24x24xf32>, vector<24x16xf32>, vector<24x16xf32> -> vector<24x16xf32>
    %68 = tpu.concatenate %51, %67 in 1 : vector<24x16xf32>, vector<24x16xf32> -> vector<24x32xf32>
    %c0_29 = arith.constant 0 : index
    %c0_30 = arith.constant 0 : index
    %c0_31 = arith.constant 0 : index
    %69 = vector.load %arg8[%c0_29, %c0_30, %c0_31] : memref<2x32x32xf32, #tpu.memory_space<vmem>>, vector<1x32x32xf32>
    %70 = vector.shape_cast %69 : vector<1x32x32xf32> to vector<32x32xf32>
    %cst_32 = arith.constant dense<0.000000e+00> : vector<24x32xf32>
    %71 = tpu.matmul %68, %70, %cst_32 {dimension_numbers = #tpu.dot_dimension_numbers<[1], [0], [0], [1], [0, 0, 1, 1], [], []>} : vector<24x32xf32>, vector<32x32xf32>, vector<24x32xf32> -> vector<24x32xf32>
    %72 = arith.addf %1, %71 : vector<24x32xf32>
    %c0_33 = arith.constant 0 : index
    %c0_34 = arith.constant 0 : index
    %c0_35 = arith.constant 0 : index
    %73 = vector.load %arg9[%c0_33, %c0_34, %c0_35] : memref<2x1x32xf32, #tpu.memory_space<vmem>>, vector<1x1x32xf32>
    %74 = vector.shape_cast %73 : vector<1x1x32xf32> to vector<1x32xf32>
    %75 = vector.broadcast %74 : vector<1x32xf32> to vector<24x32xf32>
    %76 = arith.addf %72, %75 : vector<24x32xf32>
    %c0_36 = arith.constant 0 : index
    %c0_37 = arith.constant 0 : index
    %c0_38 = arith.constant 0 : index
    %77 = vector.load %arg10[%c0_36, %c0_37, %c0_38] : memref<2x1x32xf32, #tpu.memory_space<vmem>>, vector<1x1x32xf32>
    %78 = vector.shape_cast %77 : vector<1x1x32xf32> to vector<1x32xf32>
    %c0_39 = arith.constant 0 : index
    %c0_40 = arith.constant 0 : index
    %c0_41 = arith.constant 0 : index
    %79 = vector.load %arg11[%c0_39, %c0_40, %c0_41] : memref<2x1x32xf32, #tpu.memory_space<vmem>>, vector<1x1x32xf32>
    %80 = vector.shape_cast %79 : vector<1x1x32xf32> to vector<1x32xf32>
    %cst_42 = arith.constant dense<0.000000e+00> : vector<24xf32>
    %81 = vector.multi_reduction <add>, %76, %cst_42 [1] : vector<24x32xf32> to vector<24xf32>
    %82 = vector.shape_cast %81 : vector<24xf32> to vector<24x1xf32>
    %cst_43 = arith.constant 3.200000e+01 : f32
    %83 = vector.broadcast %cst_43 : f32 to vector<24x1xf32>
    %84 = arith.divf %82, %83 : vector<24x1xf32>
    %85 = vector.broadcast %84 : vector<24x1xf32> to vector<24x32xf32>
    %86 = arith.subf %76, %85 : vector<24x32xf32>
    %87 = arith.mulf %86, %86 : vector<24x32xf32>
    %cst_44 = arith.constant dense<0.000000e+00> : vector<24xf32>
    %88 = vector.multi_reduction <add>, %87, %cst_44 [1] : vector<24x32xf32> to vector<24xf32>
    %89 = vector.shape_cast %88 : vector<24xf32> to vector<24x1xf32>
    %cst_45 = arith.constant 3.200000e+01 : f32
    %90 = vector.broadcast %cst_45 : f32 to vector<24x1xf32>
    %91 = arith.divf %89, %90 : vector<24x1xf32>
    %92 = vector.broadcast %84 : vector<24x1xf32> to vector<24x32xf32>
    %93 = arith.subf %76, %92 : vector<24x32xf32>
    %cst_46 = arith.constant 9.99999974E-6 : f32
    %94 = vector.broadcast %cst_46 : f32 to vector<24x1xf32>
    %95 = arith.addf %91, %94 : vector<24x1xf32>
    %96 = math.rsqrt %95 : vector<24x1xf32>
    %97 = vector.broadcast %96 : vector<24x1xf32> to vector<24x32xf32>
    %98 = arith.mulf %93, %97 : vector<24x32xf32>
    %99 = vector.broadcast %78 : vector<1x32xf32> to vector<24x32xf32>
    %100 = arith.mulf %98, %99 : vector<24x32xf32>
    %101 = vector.broadcast %80 : vector<1x32xf32> to vector<24x32xf32>
    %102 = arith.addf %100, %101 : vector<24x32xf32>
    %c0_47 = arith.constant 0 : index
    %c0_48 = arith.constant 0 : index
    %c0_49 = arith.constant 0 : index
    %103 = vector.load %arg12[%c0_47, %c0_48, %c0_49] : memref<2x32x128xf32, #tpu.memory_space<vmem>>, vector<1x32x128xf32>
    %104 = vector.shape_cast %103 : vector<1x32x128xf32> to vector<32x128xf32>
    %cst_50 = arith.constant dense<0.000000e+00> : vector<24x128xf32>
    %105 = tpu.matmul %102, %104, %cst_50 {dimension_numbers = #tpu.dot_dimension_numbers<[1], [0], [0], [1], [0, 0, 1, 1], [], []>} : vector<24x32xf32>, vector<32x128xf32>, vector<24x128xf32> -> vector<24x128xf32>
    %c0_51 = arith.constant 0 : index
    %c0_52 = arith.constant 0 : index
    %c0_53 = arith.constant 0 : index
    %106 = vector.load %arg13[%c0_51, %c0_52, %c0_53] : memref<2x1x128xf32, #tpu.memory_space<vmem>>, vector<1x1x128xf32>
    %107 = vector.shape_cast %106 : vector<1x1x128xf32> to vector<1x128xf32>
    %108 = vector.broadcast %107 : vector<1x128xf32> to vector<24x128xf32>
    %109 = arith.addf %105, %108 : vector<24x128xf32>
    %cst_54 = arith.constant 1.702000e+00 : f32
    %110 = vector.broadcast %cst_54 : f32 to vector<24x128xf32>
    %111 = arith.mulf %110, %109 : vector<24x128xf32>
    %112 = arith.negf %111 : vector<24x128xf32>
    %113 = math.exp %112 : vector<24x128xf32>
    %cst_55 = arith.constant 1.000000e+00 : f32
    %114 = vector.broadcast %cst_55 : f32 to vector<24x128xf32>
    %115 = arith.addf %114, %113 : vector<24x128xf32>
    %116 = arith.divf %114, %115 : vector<24x128xf32>
    %117 = arith.mulf %109, %116 : vector<24x128xf32>
    %c0_56 = arith.constant 0 : index
    %c0_57 = arith.constant 0 : index
    %c0_58 = arith.constant 0 : index
    %118 = vector.load %arg14[%c0_56, %c0_57, %c0_58] : memref<2x128x32xf32, #tpu.memory_space<vmem>>, vector<1x128x32xf32>
    %119 = vector.shape_cast %118 : vector<1x128x32xf32> to vector<128x32xf32>
    %cst_59 = arith.constant dense<0.000000e+00> : vector<24x32xf32>
    %120 = tpu.matmul %117, %119, %cst_59 {dimension_numbers = #tpu.dot_dimension_numbers<[1], [0], [0], [1], [0, 0, 1, 1], [], []>} : vector<24x128xf32>, vector<128x32xf32>, vector<24x32xf32> -> vector<24x32xf32>
    %121 = arith.addf %76, %120 : vector<24x32xf32>
    %c0_60 = arith.constant 0 : index
    %c0_61 = arith.constant 0 : index
    %c0_62 = arith.constant 0 : index
    %122 = vector.load %arg15[%c0_60, %c0_61, %c0_62] : memref<2x1x32xf32, #tpu.memory_space<vmem>>, vector<1x1x32xf32>
    %123 = vector.shape_cast %122 : vector<1x1x32xf32> to vector<1x32xf32>
    %124 = vector.broadcast %123 : vector<1x32xf32> to vector<24x32xf32>
    %125 = arith.addf %121, %124 : vector<24x32xf32>
    %c1 = arith.constant 1 : index
    %c0_63 = arith.constant 0 : index
    %c0_64 = arith.constant 0 : index
    %126 = vector.load %arg4[%c1, %c0_63, %c0_64] : memref<2x1x32xf32, #tpu.memory_space<vmem>>, vector<1x1x32xf32>
    %127 = vector.shape_cast %126 : vector<1x1x32xf32> to vector<1x32xf32>
    %c1_65 = arith.constant 1 : index
    %c0_66 = arith.constant 0 : index
    %c0_67 = arith.constant 0 : index
    %128 = vector.load %arg5[%c1_65, %c0_66, %c0_67] : memref<2x1x32xf32, #tpu.memory_space<vmem>>, vector<1x1x32xf32>
    %129 = vector.shape_cast %128 : vector<1x1x32xf32> to vector<1x32xf32>
    %cst_68 = arith.constant dense<0.000000e+00> : vector<24xf32>
    %130 = vector.multi_reduction <add>, %125, %cst_68 [1] : vector<24x32xf32> to vector<24xf32>
    %131 = vector.shape_cast %130 : vector<24xf32> to vector<24x1xf32>
    %cst_69 = arith.constant 3.200000e+01 : f32
    %132 = vector.broadcast %cst_69 : f32 to vector<24x1xf32>
    %133 = arith.divf %131, %132 : vector<24x1xf32>
    %134 = vector.broadcast %133 : vector<24x1xf32> to vector<24x32xf32>
    %135 = arith.subf %125, %134 : vector<24x32xf32>
    %136 = arith.mulf %135, %135 : vector<24x32xf32>
    %cst_70 = arith.constant dense<0.000000e+00> : vector<24xf32>
    %137 = vector.multi_reduction <add>, %136, %cst_70 [1] : vector<24x32xf32> to vector<24xf32>
    %138 = vector.shape_cast %137 : vector<24xf32> to vector<24x1xf32>
    %cst_71 = arith.constant 3.200000e+01 : f32
    %139 = vector.broadcast %cst_71 : f32 to vector<24x1xf32>
    %140 = arith.divf %138, %139 : vector<24x1xf32>
    %141 = vector.broadcast %133 : vector<24x1xf32> to vector<24x32xf32>
    %142 = arith.subf %125, %141 : vector<24x32xf32>
    %cst_72 = arith.constant 9.99999974E-6 : f32
    %143 = vector.broadcast %cst_72 : f32 to vector<24x1xf32>
    %144 = arith.addf %140, %143 : vector<24x1xf32>
    %145 = math.rsqrt %144 : vector<24x1xf32>
    %146 = vector.broadcast %145 : vector<24x1xf32> to vector<24x32xf32>
    %147 = arith.mulf %142, %146 : vector<24x32xf32>
    %148 = vector.broadcast %127 : vector<1x32xf32> to vector<24x32xf32>
    %149 = arith.mulf %147, %148 : vector<24x32xf32>
    %150 = vector.broadcast %129 : vector<1x32xf32> to vector<24x32xf32>
    %151 = arith.addf %149, %150 : vector<24x32xf32>
    %c1_73 = arith.constant 1 : index
    %c0_74 = arith.constant 0 : index
    %c0_75 = arith.constant 0 : index
    %152 = vector.load %arg6[%c1_73, %c0_74, %c0_75] : memref<2x32x96xf32, #tpu.memory_space<vmem>>, vector<1x32x96xf32>
    %153 = vector.shape_cast %152 : vector<1x32x96xf32> to vector<32x96xf32>
    %cst_76 = arith.constant dense<0.000000e+00> : vector<24x96xf32>
    %154 = tpu.matmul %151, %153, %cst_76 {dimension_numbers = #tpu.dot_dimension_numbers<[1], [0], [0], [1], [0, 0, 1, 1], [], []>} : vector<24x32xf32>, vector<32x96xf32>, vector<24x96xf32> -> vector<24x96xf32>
    %c1_77 = arith.constant 1 : index
    %c0_78 = arith.constant 0 : index
    %c0_79 = arith.constant 0 : index
    %155 = vector.load %arg7[%c1_77, %c0_78, %c0_79] : memref<2x1x96xf32, #tpu.memory_space<vmem>>, vector<1x1x96xf32>
    %156 = vector.shape_cast %155 : vector<1x1x96xf32> to vector<1x96xf32>
    %157 = vector.broadcast %156 : vector<1x96xf32> to vector<24x96xf32>
    %158 = arith.addf %154, %157 : vector<24x96xf32>
    %159 = vector.extract_strided_slice %158 {offsets = [0, 0], sizes = [24, 16], strides = [1, 1]} : vector<24x96xf32> to vector<24x16xf32>
    %160 = vector.extract_strided_slice %158 {offsets = [0, 32], sizes = [24, 16], strides = [1, 1]} : vector<24x96xf32> to vector<24x16xf32>
    %161 = vector.extract_strided_slice %158 {offsets = [0, 64], sizes = [24, 16], strides = [1, 1]} : vector<24x96xf32> to vector<24x16xf32>
    %cst_80 = arith.constant dense<0.000000e+00> : vector<24x24xf32>
    %162 = tpu.matmul %159, %160, %cst_80 {dimension_numbers = #tpu.dot_dimension_numbers<[1], [1], [0], [0], [0, 0, 1, 0], [], []>} : vector<24x16xf32>, vector<24x16xf32>, vector<24x24xf32> -> vector<24x24xf32>
    %163 = arith.addf %162, %2 : vector<24x24xf32>
    %cst_81 = arith.constant dense<0xFF800000> : vector<24xf32>
    %164 = vector.multi_reduction <maximumf>, %163, %cst_81 [1] : vector<24x24xf32> to vector<24xf32>
    %165 = vector.shape_cast %164 : vector<24xf32> to vector<24x1xf32>
    %166 = vector.broadcast %165 : vector<24x1xf32> to vector<24x24xf32>
    %167 = arith.subf %163, %166 : vector<24x24xf32>
    %168 = math.exp %167 : vector<24x24xf32>
    %cst_82 = arith.constant dense<0.000000e+00> : vector<24xf32>
    %169 = vector.multi_reduction <add>, %168, %cst_82 [1] : vector<24x24xf32> to vector<24xf32>
    %170 = vector.shape_cast %169 : vector<24xf32> to vector<24x1xf32>
    %171 = tpu.reciprocal %170 {approx = true} : vector<24x1xf32> -> vector<24x1xf32>
    %172 = vector.broadcast %171 : vector<24x1xf32> to vector<24x24xf32>
    %173 = arith.mulf %168, %172 : vector<24x24xf32>
    %cst_83 = arith.constant dense<0.000000e+00> : vector<24x16xf32>
    %174 = tpu.matmul %173, %161, %cst_83 {dimension_numbers = #tpu.dot_dimension_numbers<[1], [0], [0], [1], [0, 0, 1, 1], [], []>} : vector<24x24xf32>, vector<24x16xf32>, vector<24x16xf32> -> vector<24x16xf32>
    %175 = vector.extract_strided_slice %158 {offsets = [0, 16], sizes = [24, 16], strides = [1, 1]} : vector<24x96xf32> to vector<24x16xf32>
    %176 = vector.extract_strided_slice %158 {offsets = [0, 48], sizes = [24, 16], strides = [1, 1]} : vector<24x96xf32> to vector<24x16xf32>
    %177 = vector.extract_strided_slice %158 {offsets = [0, 80], sizes = [24, 16], strides = [1, 1]} : vector<24x96xf32> to vector<24x16xf32>
    %cst_84 = arith.constant dense<0.000000e+00> : vector<24x24xf32>
    %178 = tpu.matmul %175, %176, %cst_84 {dimension_numbers = #tpu.dot_dimension_numbers<[1], [1], [0], [0], [0, 0, 1, 0], [], []>} : vector<24x16xf32>, vector<24x16xf32>, vector<24x24xf32> -> vector<24x24xf32>
    %179 = arith.addf %178, %2 : vector<24x24xf32>
    %cst_85 = arith.constant dense<0xFF800000> : vector<24xf32>
    %180 = vector.multi_reduction <maximumf>, %179, %cst_85 [1] : vector<24x24xf32> to vector<24xf32>
    %181 = vector.shape_cast %180 : vector<24xf32> to vector<24x1xf32>
    %182 = vector.broadcast %181 : vector<24x1xf32> to vector<24x24xf32>
    %183 = arith.subf %179, %182 : vector<24x24xf32>
    %184 = math.exp %183 : vector<24x24xf32>
    %cst_86 = arith.constant dense<0.000000e+00> : vector<24xf32>
    %185 = vector.multi_reduction <add>, %184, %cst_86 [1] : vector<24x24xf32> to vector<24xf32>
    %186 = vector.shape_cast %185 : vector<24xf32> to vector<24x1xf32>
    %187 = tpu.reciprocal %186 {approx = true} : vector<24x1xf32> -> vector<24x1xf32>
    %188 = vector.broadcast %187 : vector<24x1xf32> to vector<24x24xf32>
    %189 = arith.mulf %184, %188 : vector<24x24xf32>
    %cst_87 = arith.constant dense<0.000000e+00> : vector<24x16xf32>
    %190 = tpu.matmul %189, %177, %cst_87 {dimension_numbers = #tpu.dot_dimension_numbers<[1], [0], [0], [1], [0, 0, 1, 1], [], []>} : vector<24x24xf32>, vector<24x16xf32>, vector<24x16xf32> -> vector<24x16xf32>
    %191 = tpu.concatenate %174, %190 in 1 : vector<24x16xf32>, vector<24x16xf32> -> vector<24x32xf32>
    %c1_88 = arith.constant 1 : index
    %c0_89 = arith.constant 0 : index
    %c0_90 = arith.constant 0 : index
    %192 = vector.load %arg8[%c1_88, %c0_89, %c0_90] : memref<2x32x32xf32, #tpu.memory_space<vmem>>, vector<1x32x32xf32>
    %193 = vector.shape_cast %192 : vector<1x32x32xf32> to vector<32x32xf32>
    %cst_91 = arith.constant dense<0.000000e+00> : vector<24x32xf32>
    %194 = tpu.matmul %191, %193, %cst_91 {dimension_numbers = #tpu.dot_dimension_numbers<[1], [0], [0], [1], [0, 0, 1, 1], [], []>} : vector<24x32xf32>, vector<32x32xf32>, vector<24x32xf32> -> vector<24x32xf32>
    %195 = arith.addf %125, %194 : vector<24x32xf32>
    %c1_92 = arith.constant 1 : index
    %c0_93 = arith.constant 0 : index
    %c0_94 = arith.constant 0 : index
    %196 = vector.load %arg9[%c1_92, %c0_93, %c0_94] : memref<2x1x32xf32, #tpu.memory_space<vmem>>, vector<1x1x32xf32>
    %197 = vector.shape_cast %196 : vector<1x1x32xf32> to vector<1x32xf32>
    %198 = vector.broadcast %197 : vector<1x32xf32> to vector<24x32xf32>
    %199 = arith.addf %195, %198 : vector<24x32xf32>
    %c1_95 = arith.constant 1 : index
    %c0_96 = arith.constant 0 : index
    %c0_97 = arith.constant 0 : index
    %200 = vector.load %arg10[%c1_95, %c0_96, %c0_97] : memref<2x1x32xf32, #tpu.memory_space<vmem>>, vector<1x1x32xf32>
    %201 = vector.shape_cast %200 : vector<1x1x32xf32> to vector<1x32xf32>
    %c1_98 = arith.constant 1 : index
    %c0_99 = arith.constant 0 : index
    %c0_100 = arith.constant 0 : index
    %202 = vector.load %arg11[%c1_98, %c0_99, %c0_100] : memref<2x1x32xf32, #tpu.memory_space<vmem>>, vector<1x1x32xf32>
    %203 = vector.shape_cast %202 : vector<1x1x32xf32> to vector<1x32xf32>
    %cst_101 = arith.constant dense<0.000000e+00> : vector<24xf32>
    %204 = vector.multi_reduction <add>, %199, %cst_101 [1] : vector<24x32xf32> to vector<24xf32>
    %205 = vector.shape_cast %204 : vector<24xf32> to vector<24x1xf32>
    %cst_102 = arith.constant 3.200000e+01 : f32
    %206 = vector.broadcast %cst_102 : f32 to vector<24x1xf32>
    %207 = arith.divf %205, %206 : vector<24x1xf32>
    %208 = vector.broadcast %207 : vector<24x1xf32> to vector<24x32xf32>
    %209 = arith.subf %199, %208 : vector<24x32xf32>
    %210 = arith.mulf %209, %209 : vector<24x32xf32>
    %cst_103 = arith.constant dense<0.000000e+00> : vector<24xf32>
    %211 = vector.multi_reduction <add>, %210, %cst_103 [1] : vector<24x32xf32> to vector<24xf32>
    %212 = vector.shape_cast %211 : vector<24xf32> to vector<24x1xf32>
    %cst_104 = arith.constant 3.200000e+01 : f32
    %213 = vector.broadcast %cst_104 : f32 to vector<24x1xf32>
    %214 = arith.divf %212, %213 : vector<24x1xf32>
    %215 = vector.broadcast %207 : vector<24x1xf32> to vector<24x32xf32>
    %216 = arith.subf %199, %215 : vector<24x32xf32>
    %cst_105 = arith.constant 9.99999974E-6 : f32
    %217 = vector.broadcast %cst_105 : f32 to vector<24x1xf32>
    %218 = arith.addf %214, %217 : vector<24x1xf32>
    %219 = math.rsqrt %218 : vector<24x1xf32>
    %220 = vector.broadcast %219 : vector<24x1xf32> to vector<24x32xf32>
    %221 = arith.mulf %216, %220 : vector<24x32xf32>
    %222 = vector.broadcast %201 : vector<1x32xf32> to vector<24x32xf32>
    %223 = arith.mulf %221, %222 : vector<24x32xf32>
    %224 = vector.broadcast %203 : vector<1x32xf32> to vector<24x32xf32>
    %225 = arith.addf %223, %224 : vector<24x32xf32>
    %c1_106 = arith.constant 1 : index
    %c0_107 = arith.constant 0 : index
    %c0_108 = arith.constant 0 : index
    %226 = vector.load %arg12[%c1_106, %c0_107, %c0_108] : memref<2x32x128xf32, #tpu.memory_space<vmem>>, vector<1x32x128xf32>
    %227 = vector.shape_cast %226 : vector<1x32x128xf32> to vector<32x128xf32>
    %cst_109 = arith.constant dense<0.000000e+00> : vector<24x128xf32>
    %228 = tpu.matmul %225, %227, %cst_109 {dimension_numbers = #tpu.dot_dimension_numbers<[1], [0], [0], [1], [0, 0, 1, 1], [], []>} : vector<24x32xf32>, vector<32x128xf32>, vector<24x128xf32> -> vector<24x128xf32>
    %c1_110 = arith.constant 1 : index
    %c0_111 = arith.constant 0 : index
    %c0_112 = arith.constant 0 : index
    %229 = vector.load %arg13[%c1_110, %c0_111, %c0_112] : memref<2x1x128xf32, #tpu.memory_space<vmem>>, vector<1x1x128xf32>
    %230 = vector.shape_cast %229 : vector<1x1x128xf32> to vector<1x128xf32>
    %231 = vector.broadcast %230 : vector<1x128xf32> to vector<24x128xf32>
    %232 = arith.addf %228, %231 : vector<24x128xf32>
    %cst_113 = arith.constant 1.702000e+00 : f32
    %233 = vector.broadcast %cst_113 : f32 to vector<24x128xf32>
    %234 = arith.mulf %233, %232 : vector<24x128xf32>
    %235 = arith.negf %234 : vector<24x128xf32>
    %236 = math.exp %235 : vector<24x128xf32>
    %cst_114 = arith.constant 1.000000e+00 : f32
    %237 = vector.broadcast %cst_114 : f32 to vector<24x128xf32>
    %238 = arith.addf %237, %236 : vector<24x128xf32>
    %239 = arith.divf %237, %238 : vector<24x128xf32>
    %240 = arith.mulf %232, %239 : vector<24x128xf32>
    %c1_115 = arith.constant 1 : index
    %c0_116 = arith.constant 0 : index
    %c0_117 = arith.constant 0 : index
    %241 = vector.load %arg14[%c1_115, %c0_116, %c0_117] : memref<2x128x32xf32, #tpu.memory_space<vmem>>, vector<1x128x32xf32>
    %242 = vector.shape_cast %241 : vector<1x128x32xf32> to vector<128x32xf32>
    %cst_118 = arith.constant dense<0.000000e+00> : vector<24x32xf32>
    %243 = tpu.matmul %240, %242, %cst_118 {dimension_numbers = #tpu.dot_dimension_numbers<[1], [0], [0], [1], [0, 0, 1, 1], [], []>} : vector<24x128xf32>, vector<128x32xf32>, vector<24x32xf32> -> vector<24x32xf32>
    %244 = arith.addf %199, %243 : vector<24x32xf32>
    %c1_119 = arith.constant 1 : index
    %c0_120 = arith.constant 0 : index
    %c0_121 = arith.constant 0 : index
    %245 = vector.load %arg15[%c1_119, %c0_120, %c0_121] : memref<2x1x32xf32, #tpu.memory_space<vmem>>, vector<1x1x32xf32>
    %246 = vector.shape_cast %245 : vector<1x1x32xf32> to vector<1x32xf32>
    %247 = vector.broadcast %246 : vector<1x32xf32> to vector<24x32xf32>
    %248 = arith.addf %244, %247 : vector<24x32xf32>
    %249 = tpu.iota {dimensions = array<i32: 1>} : vector<1x24xi32>
    %c3_i32 = arith.constant 3 : i32
    %250 = arith.muli %arg0, %c3_i32 : i32
    %c0_i32 = arith.constant 0 : i32
    %251 = arith.addi %250, %c0_i32 : i32
    %252 = arith.index_cast %251 : i32 to index
    %253 = memref.load %arg1[%252] : memref<6xi32, #tpu.memory_space<smem>>
    %c0_i32_122 = arith.constant 0 : i32
    %254 = arith.addi %c0_i32_122, %253 : i32
    %255 = vector.broadcast %254 : i32 to vector<1x24xi32>
    %256 = arith.cmpi eq, %249, %255 : vector<1x24xi32>
    %cst_123 = arith.constant 1.000000e+00 : f32
    %cst_124 = arith.constant 0.000000e+00 : f32
    %257 = vector.broadcast %cst_123 : f32 to vector<1x24xf32>
    %258 = vector.broadcast %cst_124 : f32 to vector<1x24xf32>
    %259 = arith.select %256, %257, %258 : vector<1x24xi1>, vector<1x24xf32>
    %c3_i32_125 = arith.constant 3 : i32
    %260 = arith.muli %arg0, %c3_i32_125 : i32
    %c1_i32 = arith.constant 1 : i32
    %261 = arith.addi %260, %c1_i32 : i32
    %262 = arith.index_cast %261 : i32 to index
    %263 = memref.load %arg1[%262] : memref<6xi32, #tpu.memory_space<smem>>
    %c8_i32 = arith.constant 8 : i32
    %264 = arith.addi %c8_i32, %263 : i32
    %265 = vector.broadcast %264 : i32 to vector<1x24xi32>
    %266 = arith.cmpi eq, %249, %265 : vector<1x24xi32>
    %cst_126 = arith.constant 1.000000e+00 : f32
    %cst_127 = arith.constant 0.000000e+00 : f32
    %267 = vector.broadcast %cst_126 : f32 to vector<1x24xf32>
    %268 = vector.broadcast %cst_127 : f32 to vector<1x24xf32>
    %269 = arith.select %266, %267, %268 : vector<1x24xi1>, vector<1x24xf32>
    %c3_i32_128 = arith.constant 3 : i32
    %270 = arith.muli %arg0, %c3_i32_128 : i32
    %c2_i32 = arith.constant 2 : i32
    %271 = arith.addi %270, %c2_i32 : i32
    %272 = arith.index_cast %271 : i32 to index
    %273 = memref.load %arg1[%272] : memref<6xi32, #tpu.memory_space<smem>>
    %c16_i32 = arith.constant 16 : i32
    %274 = arith.addi %c16_i32, %273 : i32
    %275 = vector.broadcast %274 : i32 to vector<1x24xi32>
    %276 = arith.cmpi eq, %249, %275 : vector<1x24xi32>
    %cst_129 = arith.constant 1.000000e+00 : f32
    %cst_130 = arith.constant 0.000000e+00 : f32
    %277 = vector.broadcast %cst_129 : f32 to vector<1x24xf32>
    %278 = vector.broadcast %cst_130 : f32 to vector<1x24xf32>
    %279 = arith.select %276, %277, %278 : vector<1x24xi1>, vector<1x24xf32>
    %280 = tpu.concatenate %259, %269, %279 in 0 : vector<1x24xf32>, vector<1x24xf32>, vector<1x24xf32> -> vector<3x24xf32>
    %cst_131 = arith.constant dense<0.000000e+00> : vector<3x32xf32>
    %281 = tpu.matmul %280, %248, %cst_131 {dimension_numbers = #tpu.dot_dimension_numbers<[1], [0], [0], [1], [0, 0, 1, 1], [], []>} : vector<3x24xf32>, vector<24x32xf32>, vector<3x32xf32> -> vector<3x32xf32>
    %c0_132 = arith.constant 0 : index
    %c0_133 = arith.constant 0 : index
    %282 = vector.load %arg16[%c0_132, %c0_133] : memref<1x32xf32, #tpu.memory_space<vmem>>, vector<1x32xf32>
    %c0_134 = arith.constant 0 : index
    %c0_135 = arith.constant 0 : index
    %283 = vector.load %arg17[%c0_134, %c0_135] : memref<1x32xf32, #tpu.memory_space<vmem>>, vector<1x32xf32>
    %cst_136 = arith.constant dense<0.000000e+00> : vector<3xf32>
    %284 = vector.multi_reduction <add>, %281, %cst_136 [1] : vector<3x32xf32> to vector<3xf32>
    %285 = vector.shape_cast %284 : vector<3xf32> to vector<3x1xf32>
    %cst_137 = arith.constant 3.200000e+01 : f32
    %286 = vector.broadcast %cst_137 : f32 to vector<3x1xf32>
    %287 = arith.divf %285, %286 : vector<3x1xf32>
    %288 = vector.broadcast %287 : vector<3x1xf32> to vector<3x32xf32>
    %289 = arith.subf %281, %288 : vector<3x32xf32>
    %290 = arith.mulf %289, %289 : vector<3x32xf32>
    %cst_138 = arith.constant dense<0.000000e+00> : vector<3xf32>
    %291 = vector.multi_reduction <add>, %290, %cst_138 [1] : vector<3x32xf32> to vector<3xf32>
    %292 = vector.shape_cast %291 : vector<3xf32> to vector<3x1xf32>
    %cst_139 = arith.constant 3.200000e+01 : f32
    %293 = vector.broadcast %cst_139 : f32 to vector<3x1xf32>
    %294 = arith.divf %292, %293 : vector<3x1xf32>
    %295 = vector.broadcast %287 : vector<3x1xf32> to vector<3x32xf32>
    %296 = arith.subf %281, %295 : vector<3x32xf32>
    %cst_140 = arith.constant 9.99999974E-6 : f32
    %297 = vector.broadcast %cst_140 : f32 to vector<3x1xf32>
    %298 = arith.addf %294, %297 : vector<3x1xf32>
    %299 = math.rsqrt %298 : vector<3x1xf32>
    %300 = vector.broadcast %299 : vector<3x1xf32> to vector<3x32xf32>
    %301 = arith.mulf %296, %300 : vector<3x32xf32>
    %302 = vector.broadcast %282 : vector<1x32xf32> to vector<3x32xf32>
    %303 = arith.mulf %301, %302 : vector<3x32xf32>
    %304 = vector.broadcast %283 : vector<1x32xf32> to vector<3x32xf32>
    %305 = arith.addf %303, %304 : vector<3x32xf32>
    %c0_141 = arith.constant 0 : index
    %c0_142 = arith.constant 0 : index
    %306 = vector.load %arg18[%c0_141, %c0_142] : memref<32x128xf32, #tpu.memory_space<vmem>>, vector<32x128xf32>
    %cst_143 = arith.constant dense<0.000000e+00> : vector<3x128xf32>
    %307 = tpu.matmul %305, %306, %cst_143 {dimension_numbers = #tpu.dot_dimension_numbers<[1], [0], [0], [1], [0, 0, 1, 1], [], []>} : vector<3x32xf32>, vector<32x128xf32>, vector<3x128xf32> -> vector<3x128xf32>
    %308 = arith.mulf %307, %307 : vector<3x128xf32>
    %cst_144 = arith.constant dense<0.000000e+00> : vector<3xf32>
    %309 = vector.multi_reduction <add>, %308, %cst_144 [1] : vector<3x128xf32> to vector<3xf32>
    %310 = vector.shape_cast %309 : vector<3xf32> to vector<3x1xf32>
    %cst_145 = arith.constant 1.000000e-24 : f32
    %311 = vector.broadcast %cst_145 : f32 to vector<3x1xf32>
    %312 = arith.maximumf %310, %311 : vector<3x1xf32>
    %313 = math.rsqrt %312 : vector<3x1xf32>
    %314 = vector.broadcast %313 : vector<3x1xf32> to vector<3x128xf32>
    %315 = arith.mulf %307, %314 : vector<3x128xf32>
    %cst_146 = arith.constant dense<0.000000e+00> : vector<128xf32>
    %316 = vector.multi_reduction <add>, %315, %cst_146 [0] : vector<3x128xf32> to vector<128xf32>
    %317 = vector.shape_cast %316 : vector<128xf32> to vector<1x128xf32>
    %cst_147 = arith.constant 3.000000e+00 : f32
    %318 = vector.broadcast %cst_147 : f32 to vector<1x128xf32>
    %319 = arith.divf %317, %318 : vector<1x128xf32>
    %320 = arith.mulf %319, %319 : vector<1x128xf32>
    %cst_148 = arith.constant dense<0.000000e+00> : vector<1xf32>
    %321 = vector.multi_reduction <add>, %320, %cst_148 [1] : vector<1x128xf32> to vector<1xf32>
    %322 = vector.shape_cast %321 : vector<1xf32> to vector<1x1xf32>
    %cst_149 = arith.constant 1.000000e-24 : f32
    %323 = vector.broadcast %cst_149 : f32 to vector<1x1xf32>
    %324 = arith.maximumf %322, %323 : vector<1x1xf32>
    %325 = math.rsqrt %324 : vector<1x1xf32>
    %326 = vector.broadcast %325 : vector<1x1xf32> to vector<1x128xf32>
    %327 = arith.mulf %319, %326 : vector<1x128xf32>
    %c0_150 = arith.constant 0 : index
    %c0_151 = arith.constant 0 : index
    %c0_152 = arith.constant 0 : index
    %328 = vector.load %arg19[%c0_150, %c0_151, %c0_152] : memref<1x1x128xf32, #tpu.memory_space<vmem>>, vector<1x1x128xf32>
    %329 = vector.shape_cast %328 : vector<1x1x128xf32> to vector<1x128xf32>
    %330 = vector.shape_cast %327 : vector<1x128xf32> to vector<1x1x128xf32>
    tpu.vector_store %arg19[%c0_150, %c0_151, %c0_152], %330 {strides = array<i32>} : memref<1x1x128xf32, #tpu.memory_space<vmem>>, vector<1x1x128xf32>,
    return
  }
  func.func @transform_0(%arg0: i32, %arg1: memref<6xi32, #tpu.memory_space<smem>>) -> (i32, i32, i32) {
    %c0_i32 = arith.constant 0 : i32
    %c0_i32_0 = arith.constant 0 : i32
    %c0_i32_1 = arith.constant 0 : i32
    return %arg0, %c0_i32, %c0_i32_0 : i32, i32, i32
  }
  func.func @transform_1(%arg0: i32, %arg1: memref<6xi32, #tpu.memory_space<smem>>) -> (i32, i32) {
    %c0_i32 = arith.constant 0 : i32
    %c0_i32_0 = arith.constant 0 : i32
    %c0_i32_1 = arith.constant 0 : i32
    return %c0_i32, %c0_i32_0 : i32, i32
  }
  func.func @transform_2(%arg0: i32, %arg1: memref<6xi32, #tpu.memory_space<smem>>) -> (i32, i32, i32) {
    %c0_i32 = arith.constant 0 : i32
    %c0_i32_0 = arith.constant 0 : i32
    %c0_i32_1 = arith.constant 0 : i32
    %c0_i32_2 = arith.constant 0 : i32
    return %c0_i32, %c0_i32_0, %c0_i32_1 : i32, i32, i32
  }
  func.func @transform_3(%arg0: i32, %arg1: memref<6xi32, #tpu.memory_space<smem>>) -> (i32, i32, i32) {
    %c0_i32 = arith.constant 0 : i32
    %c0_i32_0 = arith.constant 0 : i32
    %c0_i32_1 = arith.constant 0 : i32
    %c0_i32_2 = arith.constant 0 : i32
    return %c0_i32, %c0_i32_0, %c0_i32_1 : i32, i32, i32
  }
  func.func @transform_4(%arg0: i32, %arg1: memref<6xi32, #tpu.memory_space<smem>>) -> (i32, i32, i32) {
    %c0_i32 = arith.constant 0 : i32
    %c0_i32_0 = arith.constant 0 : i32
    %c0_i32_1 = arith.constant 0 : i32
    %c0_i32_2 = arith.constant 0 : i32
    return %c0_i32, %c0_i32_0, %c0_i32_1 : i32, i32, i32
  }
  func.func @transform_5(%arg0: i32, %arg1: memref<6xi32, #tpu.memory_space<smem>>) -> (i32, i32, i32) {
    %c0_i32 = arith.constant 0 : i32
    %c0_i32_0 = arith.constant 0 : i32
    %c0_i32_1 = arith.constant 0 : i32
    %c0_i32_2 = arith.constant 0 : i32
    return %c0_i32, %c0_i32_0, %c0_i32_1 : i32, i32, i32
  }
  func.func @transform_6(%arg0: i32, %arg1: memref<6xi32, #tpu.memory_space<smem>>) -> (i32, i32, i32) {
    %c0_i32 = arith.constant 0 : i32
    %c0_i32_0 = arith.constant 0 : i32
    %c0_i32_1 = arith.constant 0 : i32
    %c0_i32_2 = arith.constant 0 : i32
    return %c0_i32, %c0_i32_0, %c0_i32_1 : i32, i32, i32
  }
  func.func @transform_7(%arg0: i32, %arg1: memref<6xi32, #tpu.memory_space<smem>>) -> (i32, i32, i32) {
    %c0_i32 = arith.constant 0 : i32
    %c0_i32_0 = arith.constant 0 : i32
    %c0_i32_1 = arith.constant 0 : i32
    %c0_i32_2 = arith.constant 0 : i32
    return %c0_i32, %c0_i32_0, %c0_i32_1 : i32, i32, i32
  }
  func.func @transform_8(%arg0: i32, %arg1: memref<6xi32, #tpu.memory_space<smem>>) -> (i32, i32, i32) {
    %c0_i32 = arith.constant 0 : i32
    %c0_i32_0 = arith.constant 0 : i32
    %c0_i32_1 = arith.constant 0 : i32
    %c0_i32_2 = arith.constant 0 : i32
    return %c0_i32, %c0_i32_0, %c0_i32_1 : i32, i32, i32
  }
  func.func @transform_9(%arg0: i32, %arg1: memref<6xi32, #tpu.memory_space<smem>>) -> (i32, i32, i32) {
    %c0_i32 = arith.constant 0 : i32
    %c0_i32_0 = arith.constant 0 : i32
    %c0_i32_1 = arith.constant 0 : i32
    %c0_i32_2 = arith.constant 0 : i32
    return %c0_i32, %c0_i32_0, %c0_i32_1 : i32, i32, i32
  }
  func.func @transform_10(%arg0: i32, %arg1: memref<6xi32, #tpu.memory_space<smem>>) -> (i32, i32, i32) {
    %c0_i32 = arith.constant 0 : i32
    %c0_i32_0 = arith.constant 0 : i32
    %c0_i32_1 = arith.constant 0 : i32
    %c0_i32_2 = arith.constant 0 : i32
    return %c0_i32, %c0_i32_0, %c0_i32_1 : i32, i32, i32
  }
  func.func @transform_11(%arg0: i32, %arg1: memref<6xi32, #tpu.memory_space<smem>>) -> (i32, i32, i32) {
    %c0_i32 = arith.constant 0 : i32
    %c0_i32_0 = arith.constant 0 : i32
    %c0_i32_1 = arith.constant 0 : i32
    %c0_i32_2 = arith.constant 0 : i32
    return %c0_i32, %c0_i32_0, %c0_i32_1 : i32, i32, i32
  }
  func.func @transform_12(%arg0: i32, %arg1: memref<6xi32, #tpu.memory_space<smem>>) -> (i32, i32, i32) {
    %c0_i32 = arith.constant 0 : i32
    %c0_i32_0 = arith.constant 0 : i32
    %c0_i32_1 = arith.constant 0 : i32
    %c0_i32_2 = arith.constant 0 : i32
    return %c0_i32, %c0_i32_0, %c0_i32_1 : i32, i32, i32
  }
  func.func @transform_13(%arg0: i32, %arg1: memref<6xi32, #tpu.memory_space<smem>>) -> (i32, i32, i32) {
    %c0_i32 = arith.constant 0 : i32
    %c0_i32_0 = arith.constant 0 : i32
    %c0_i32_1 = arith.constant 0 : i32
    %c0_i32_2 = arith.constant 0 : i32
    return %c0_i32, %c0_i32_0, %c0_i32_1 : i32, i32, i32
  }
  func.func @transform_14(%arg0: i32, %arg1: memref<6xi32, #tpu.memory_space<smem>>) -> (i32, i32) {
    %c0_i32 = arith.constant 0 : i32
    %c0_i32_0 = arith.constant 0 : i32
    %c0_i32_1 = arith.constant 0 : i32
    return %c0_i32, %c0_i32_0 : i32, i32
  }
  func.func @transform_15(%arg0: i32, %arg1: memref<6xi32, #tpu.memory_space<smem>>) -> (i32, i32) {
    %c0_i32 = arith.constant 0 : i32
    %c0_i32_0 = arith.constant 0 : i32
    %c0_i32_1 = arith.constant 0 : i32
    return %c0_i32, %c0_i32_0 : i32, i32
  }
  func.func @transform_16(%arg0: i32, %arg1: memref<6xi32, #tpu.memory_space<smem>>) -> (i32, i32) {
    %c0_i32 = arith.constant 0 : i32
    %c0_i32_0 = arith.constant 0 : i32
    %c0_i32_1 = arith.constant 0 : i32
    return %c0_i32, %c0_i32_0 : i32, i32
  }
  func.func @transform_17(%arg0: i32, %arg1: memref<6xi32, #tpu.memory_space<smem>>) -> (i32, i32, i32) {
    %c0_i32 = arith.constant 0 : i32
    %c0_i32_0 = arith.constant 0 : i32
    %c0_i32_1 = arith.constant 0 : i32
    return %arg0, %c0_i32, %c0_i32_0 : i32, i32, i32
  }
}

</mosaic_0001>

<llo_original>
// kernel: crossmost_forward.1
$region0: #{crossmost_forward.1}
  #allocation0 [shape = 'u32[]', space=smem, size = 0x4, offset = 0x4, fixed_abs, tag = 'smem constant byte address 0x4 - core index']
  #allocation1 [shape = 'u32[144,128]{1,0:T(1,128)}', space=vmem, size = 0x12000, scoped, tag = 'internal scratch']
  #allocation2 [shape = 's32[1]{0}', space=sflag, size = 0x4, scoped, tag = 'scoped memory for crossmost_forward.1']
  #allocation3 [shape = 'u8[512]{0}', space=smem, size = 0x200, scoped, tag = 'prefetched SMEM operand 0']
  %s0 = inlined_call_operand.vmem [shape: s32[6], index: 0, kind: input, shape index: {}]
  %s1 = inlined_call_operand.vmem [shape: f32[2,24,32], index: 1, kind: input, shape index: {}]
  %s2 = inlined_call_operand.vmem [shape: f32[24,24], index: 2, kind: input, shape index: {}]
  %s3 = inlined_call_operand.vmem [shape: f32[2,1,32], index: 3, kind: input, shape index: {}]
  %s4 = inlined_call_operand.vmem [shape: f32[2,1,32], index: 4, kind: input, shape index: {}]
  %s5 = inlined_call_operand.vmem [shape: f32[2,32,96], index: 5, kind: input, shape index: {}]
  %s6 = inlined_call_operand.vmem [shape: f32[2,1,96], index: 6, kind: input, shape index: {}]
  %s7 = inlined_call_operand.vmem [shape: f32[2,32,32], index: 7, kind: input, shape index: {}]
  %s8 = inlined_call_operand.vmem [shape: f32[2,1,32], index: 8, kind: input, shape index: {}]
  %s9 = inlined_call_operand.vmem [shape: f32[2,1,32], index: 9, kind: input, shape index: {}]
  %s10 = inlined_call_operand.vmem [shape: f32[2,1,32], index: 10, kind: input, shape index: {}]
  %s11 = inlined_call_operand.vmem [shape: f32[2,32,128], index: 11, kind: input, shape index: {}]
  %s12 = inlined_call_operand.vmem [shape: f32[2,1,128], index: 12, kind: input, shape index: {}]
  %s13 = inlined_call_operand.vmem [shape: f32[2,128,32], index: 13, kind: input, shape index: {}]
  %s14 = inlined_call_operand.vmem [shape: f32[2,1,32], index: 14, kind: input, shape index: {}]
  %s15 = inlined_call_operand.vmem [shape: f32[1,32], index: 15, kind: input, shape index: {}]
  %s16 = inlined_call_operand.vmem [shape: f32[1,32], index: 16, kind: input, shape index: {}]
  %s17 = inlined_call_operand.vmem [shape: f32[32,128], index: 17, kind: input, shape index: {}]
  %s18 = inlined_call_operand.hbm [shape: f32[2,1,128], index: 18, kind: output, shape index: {}]
  %s19 = sld [smem:[#allocation0]]
  $region101: #{crossmost_forward.1} parent=0
    _
  %s21 = ssub.s32 1, %s19
  %s22 = scalar_select 0, %s21, %s19
  %s23 = sshll.u32 %s0, 4
  %s24 = int_to_ptr.vmem [resolvable:$true] %s23
  %26 = dma.vmem_to_smem %s24, 16, [#allocation3], [#allocation2]
  %27 = dma.done [#allocation2], 16
  %28 = sfence
  $region1: #{crossmost_forward.1} parent=0
    #allocation4 [shape = 'u8[1024]{0}', space=vmem, size = 0x400, scoped, tag = 'output window, operand 0']
    #allocation5 [shape = 's32[2]{0}', space=sflag, size = 0x8, scoped, tag = 'scoped memory for crossmost_forward.1']
    %29 = vsyncpa [#allocation5], 0
    %s30 = scalar_lea.sflag [#allocation5], 1
    %31 = vsyncpa %s30, 0
    loop: start=0, step=1, limit=4
    $region2: #{crossmost_forward.1} parent=1 // loop_pre_header
      _
    $region3: #{crossmost_forward.1} parent=1 // loop_header
      %s33 = sphi 0, %s37
      %p34 = scmp.ge.s32.totalorder %s33, 4
      %s43 = sphi 0, %s45
      %s46 = sphi 0, %s43
      %s47 = sphi 0, %s46
      %s63 = sphi 0, %s47
      %s67 = sphi 0, %s67
      %s69 = sphi 0, %s67
      %s70 = sphi 0, %s69
      %s84 = sphi 0, %s70
      %s88 = sphi 0, %s88
      %s90 = sphi 0, %s88
      %s91 = sphi 0, %s90
      %s105 = sphi 0, %s91
      %s109 = sphi 0, %s109
      %s111 = sphi 0, %s109
      %s112 = sphi 0, %s111
      %s126 = sphi 0, %s112
      %s130 = sphi 0, %s130
      %s132 = sphi 0, %s130
      %s133 = sphi 0, %s132
      %s147 = sphi 0, %s133
      %s151 = sphi 0, %s151
      %s153 = sphi 0, %s151
      %s154 = sphi 0, %s153
      %s168 = sphi 0, %s154
      %s172 = sphi 0, %s172
      %s174 = sphi 0, %s172
      %s175 = sphi 0, %s174
      %s189 = sphi 0, %s175
      %s193 = sphi 0, %s193
      %s195 = sphi 0, %s193
      %s196 = sphi 0, %s195
      %s210 = sphi 0, %s196
      %s214 = sphi 0, %s214
      %s216 = sphi 0, %s214
      %s217 = sphi 0, %s216
      %s231 = sphi 0, %s217
      %s235 = sphi 0, %s235
      %s237 = sphi 0, %s235
      %s238 = sphi 0, %s237
      %s252 = sphi 0, %s238
      %s256 = sphi 0, %s256
      %s258 = sphi 0, %s256
      %s259 = sphi 0, %s258
      %s273 = sphi 0, %s259
      %s277 = sphi 0, %s277
      %s279 = sphi 0, %s277
      %s280 = sphi 0, %s279
      %s294 = sphi 0, %s280
      %s298 = sphi 0, %s298
      %s300 = sphi 0, %s298
      %s301 = sphi 0, %s300
      %s315 = sphi 0, %s301
      %s319 = sphi 0, %s319
      %s321 = sphi 0, %s319
      %s322 = sphi 0, %s321
      %s336 = sphi 0, %s322
      %s340 = sphi 0, %s340
      %s342 = sphi 0, %s340
      %s343 = sphi 0, %s342
      %s357 = sphi 0, %s343
      %s361 = sphi 0, %s361
      %s363 = sphi 0, %s361
      %s364 = sphi 0, %s363
      %s378 = sphi 0, %s364
      %s382 = sphi 0, %s382
      %s384 = sphi 0, %s382
      %s385 = sphi 0, %s384
      %s399 = sphi 0, %s385
      %s405 = sphi 0, %s407
      %s408 = sphi 0, %s405
      %s409 = sphi 0, %s408
      %s425 = sphi 0, %s409
    $region4: #{crossmost_forward.1} parent=1 // loop_header_branch
      %36 = sbr.rel (%p34) target = $region8
    $region5: #{crossmost_forward.1} parent=1 // loop_body
      %s38 = ssub.s32 %s33, 1
      %s39 = ssub.s32 %s33, 2
      %s40 = sadd.s32 %s33, 1
      %s41 = ssub.s32 %s33, %s40
      %p42 = scmp.eq.s32.totalorder %s41, 0
      %s44 = sadd.s32 %s43, 1
      %s45 = scalar_select %p42, %s43, %s44
      %p48 = pneg %p42
      %p49 = scmp.eq.s32.totalorder %s33, 1
      %p50 = por %p48, %p49
      %p51 = scmp.ne.s32.totalorder %s43, %s46
      %p52 = scmp.eq.s32.totalorder %s33, 0
      %p53 = por %p51, %p52
      %p54 = scmp.ne.s32.totalorder %s43, %s46
      %p55 = scmp.eq.s32.totalorder %s38, 1
      %p56 = por %p54, %p55
      %p57 = scmp.ne.s32.totalorder %s46, %s47
      %p58 = scmp.eq.s32.totalorder %s38, 0
      %p59 = por %p57, %p58
      %p60 = scmp.ne.s32.totalorder %s46, %s47
      %p61 = scmp.eq.s32.totalorder %s39, 1
      %p62 = por %p60, %p61
      %p64 = scmp.ne.s32.totalorder %s47, %s63
      %p65 = scmp.eq.s32.totalorder %s39, 0
      %p66 = por %p64, %p65
      %s68 = sadd.s32 %s67, 1
      %p71 = scmp.eq.s32.totalorder %s33, 1
      %p72 = scmp.ne.s32.totalorder %s67, %s69
      %p73 = scmp.eq.s32.totalorder %s33, 0
      %p74 = por %p72, %p73
      %p75 = scmp.ne.s32.totalorder %s67, %s69
      %p76 = scmp.eq.s32.totalorder %s38, 1
      %p77 = por %p75, %p76
      %p78 = scmp.ne.s32.totalorder %s69, %s70
      %p79 = scmp.eq.s32.totalorder %s38, 0
      %p80 = por %p78, %p79
      %p81 = scmp.ne.s32.totalorder %s69, %s70
      %p82 = scmp.eq.s32.totalorder %s39, 1
      %p83 = por %p81, %p82
      %p85 = scmp.ne.s32.totalorder %s70, %s84
      %p86 = scmp.eq.s32.totalorder %s39, 0
      %p87 = por %p85, %p86
      %s89 = sadd.s32 %s88, 1
      %p92 = scmp.eq.s32.totalorder %s33, 1
      %p93 = scmp.ne.s32.totalorder %s88, %s90
      %p94 = scmp.eq.s32.totalorder %s33, 0
      %p95 = por %p93, %p94
      %p96 = scmp.ne.s32.totalorder %s88, %s90
      %p97 = scmp.eq.s32.totalorder %s38, 1
      %p98 = por %p96, %p97
      %p99 = scmp.ne.s32.totalorder %s90, %s91
      %p100 = scmp.eq.s32.totalorder %s38, 0
      %p101 = por %p99, %p100
      %p102 = scmp.ne.s32.totalorder %s90, %s91
      %p103 = scmp.eq.s32.totalorder %s39, 1
      %p104 = por %p102, %p103
      %p106 = scmp.ne.s32.totalorder %s91, %s105
      %p107 = scmp.eq.s32.totalorder %s39, 0
      %p108 = por %p106, %p107
      %s110 = sadd.s32 %s109, 1
      %p113 = scmp.eq.s32.totalorder %s33, 1
      %p114 = scmp.ne.s32.totalorder %s109, %s111
      %p115 = scmp.eq.s32.totalorder %s33, 0
      %p116 = por %p114, %p115
      %p117 = scmp.ne.s32.totalorder %s109, %s111
      %p118 = scmp.eq.s32.totalorder %s38, 1
      %p119 = por %p117, %p118
      %p120 = scmp.ne.s32.totalorder %s111, %s112
      %p121 = scmp.eq.s32.totalorder %s38, 0
      %p122 = por %p120, %p121
      %p123 = scmp.ne.s32.totalorder %s111, %s112
      %p124 = scmp.eq.s32.totalorder %s39, 1
      %p125 = por %p123, %p124
      %p127 = scmp.ne.s32.totalorder %s112, %s126
      %p128 = scmp.eq.s32.totalorder %s39, 0
      %p129 = por %p127, %p128
      %s131 = sadd.s32 %s130, 1
      %p134 = scmp.eq.s32.totalorder %s33, 1
      %p135 = scmp.ne.s32.totalorder %s130, %s132
      %p136 = scmp.eq.s32.totalorder %s33, 0
      %p137 = por %p135, %p136
      %p138 = scmp.ne.s32.totalorder %s130, %s132
      %p139 = scmp.eq.s32.totalorder %s38, 1
      %p140 = por %p138, %p139
      %p141 = scmp.ne.s32.totalorder %s132, %s133
      %p142 = scmp.eq.s32.totalorder %s38, 0
      %p143 = por %p141, %p142
      %p144 = scmp.ne.s32.totalorder %s132, %s133
      %p145 = scmp.eq.s32.totalorder %s39, 1
      %p146 = por %p144, %p145
      %p148 = scmp.ne.s32.totalorder %s133, %s147
      %p149 = scmp.eq.s32.totalorder %s39, 0
      %p150 = por %p148, %p149
      %s152 = sadd.s32 %s151, 1
      %p155 = scmp.eq.s32.totalorder %s33, 1
      %p156 = scmp.ne.s32.totalorder %s151, %s153
      %p157 = scmp.eq.s32.totalorder %s33, 0
      %p158 = por %p156, %p157
      %p159 = scmp.ne.s32.totalorder %s151, %s153
      %p160 = scmp.eq.s32.totalorder %s38, 1
      %p161 = por %p159, %p160
      %p162 = scmp.ne.s32.totalorder %s153, %s154
      %p163 = scmp.eq.s32.totalorder %s38, 0
      %p164 = por %p162, %p163
      %p165 = scmp.ne.s32.totalorder %s153, %s154
      %p166 = scmp.eq.s32.totalorder %s39, 1
      %p167 = por %p165, %p166
      %p169 = scmp.ne.s32.totalorder %s154, %s168
      %p170 = scmp.eq.s32.totalorder %s39, 0
      %p171 = por %p169, %p170
      %s173 = sadd.s32 %s172, 1
      %p176 = scmp.eq.s32.totalorder %s33, 1
      %p177 = scmp.ne.s32.totalorder %s172, %s174
      %p178 = scmp.eq.s32.totalorder %s33, 0
      %p179 = por %p177, %p178
      %p180 = scmp.ne.s32.totalorder %s172, %s174
      %p181 = scmp.eq.s32.totalorder %s38, 1
      %p182 = por %p180, %p181
      %p183 = scmp.ne.s32.totalorder %s174, %s175
      %p184 = scmp.eq.s32.totalorder %s38, 0
      %p185 = por %p183, %p184
      %p186 = scmp.ne.s32.totalorder %s174, %s175
      %p187 = scmp.eq.s32.totalorder %s39, 1
      %p188 = por %p186, %p187
      %p190 = scmp.ne.s32.totalorder %s175, %s189
      %p191 = scmp.eq.s32.totalorder %s39, 0
      %p192 = por %p190, %p191
      %s194 = sadd.s32 %s193, 1
      %p197 = scmp.eq.s32.totalorder %s33, 1
      %p198 = scmp.ne.s32.totalorder %s193, %s195
      %p199 = scmp.eq.s32.totalorder %s33, 0
      %p200 = por %p198, %p199
      %p201 = scmp.ne.s32.totalorder %s193, %s195
      %p202 = scmp.eq.s32.totalorder %s38, 1
      %p203 = por %p201, %p202
      %p204 = scmp.ne.s32.totalorder %s195, %s196
      %p205 = scmp.eq.s32.totalorder %s38, 0
      %p206 = por %p204, %p205
      %p207 = scmp.ne.s32.totalorder %s195, %s196
      %p208 = scmp.eq.s32.totalorder %s39, 1
      %p209 = por %p207, %p208
      %p211 = scmp.ne.s32.totalorder %s196, %s210
      %p212 = scmp.eq.s32.totalorder %s39, 0
      %p213 = por %p211, %p212
      %s215 = sadd.s32 %s214, 1
      %p218 = scmp.eq.s32.totalorder %s33, 1
      %p219 = scmp.ne.s32.totalorder %s214, %s216
      %p220 = scmp.eq.s32.totalorder %s33, 0
      %p221 = por %p219, %p220
      %p222 = scmp.ne.s32.totalorder %s214, %s216
      %p223 = scmp.eq.s32.totalorder %s38, 1
      %p224 = por %p222, %p223
      %p225 = scmp.ne.s32.totalorder %s216, %s217
      %p226 = scmp.eq.s32.totalorder %s38, 0
      %p227 = por %p225, %p226
      %p228 = scmp.ne.s32.totalorder %s216, %s217
      %p229 = scmp.eq.s32.totalorder %s39, 1
      %p230 = por %p228, %p229
      %p232 = scmp.ne.s32.totalorder %s217, %s231
      %p233 = scmp.eq.s32.totalorder %s39, 0
      %p234 = por %p232, %p233
      %s236 = sadd.s32 %s235, 1
      %p239 = scmp.eq.s32.totalorder %s33, 1
      %p240 = scmp.ne.s32.totalorder %s235, %s237
      %p241 = scmp.eq.s32.totalorder %s33, 0
      %p242 = por %p240, %p241
      %p243 = scmp.ne.s32.totalorder %s235, %s237
      %p244 = scmp.eq.s32.totalorder %s38, 1
      %p245 = por %p243, %p244
      %p246 = scmp.ne.s32.totalorder %s237, %s238
      %p247 = scmp.eq.s32.totalorder %s38, 0
      %p248 = por %p246, %p247
      %p249 = scmp.ne.s32.totalorder %s237, %s238
      %p250 = scmp.eq.s32.totalorder %s39, 1
      %p251 = por %p249, %p250
      %p253 = scmp.ne.s32.totalorder %s238, %s252
      %p254 = scmp.eq.s32.totalorder %s39, 0
      %p255 = por %p253, %p254
      %s257 = sadd.s32 %s256, 1
      %p260 = scmp.eq.s32.totalorder %s33, 1
      %p261 = scmp.ne.s32.totalorder %s256, %s258
      %p262 = scmp.eq.s32.totalorder %s33, 0
      %p263 = por %p261, %p262
      %p264 = scmp.ne.s32.totalorder %s256, %s258
      %p265 = scmp.eq.s32.totalorder %s38, 1
      %p266 = por %p264, %p265
      %p267 = scmp.ne.s32.totalorder %s258, %s259
      %p268 = scmp.eq.s32.totalorder %s38, 0
      %p269 = por %p267, %p268
      %p270 = scmp.ne.s32.totalorder %s258, %s259
      %p271 = scmp.eq.s32.totalorder %s39, 1
      %p272 = por %p270, %p271
      %p274 = scmp.ne.s32.totalorder %s259, %s273
      %p275 = scmp.eq.s32.totalorder %s39, 0
      %p276 = por %p274, %p275
      %s278 = sadd.s32 %s277, 1
      %p281 = scmp.eq.s32.totalorder %s33, 1
      %p282 = scmp.ne.s32.totalorder %s277, %s279
      %p283 = scmp.eq.s32.totalorder %s33, 0
      %p284 = por %p282, %p283
      %p285 = scmp.ne.s32.totalorder %s277, %s279
      %p286 = scmp.eq.s32.totalorder %s38, 1
      %p287 = por %p285, %p286
      %p288 = scmp.ne.s32.totalorder %s279, %s280
      %p289 = scmp.eq.s32.totalorder %s38, 0
      %p290 = por %p288, %p289
      %p291 = scmp.ne.s32.totalorder %s279, %s280
      %p292 = scmp.eq.s32.totalorder %s39, 1
      %p293 = por %p291, %p292
      %p295 = scmp.ne.s32.totalorder %s280, %s294
      %p296 = scmp.eq.s32.totalorder %s39, 0
      %p297 = por %p295, %p296
      %s299 = sadd.s32 %s298, 1
      %p302 = scmp.eq.s32.totalorder %s33, 1
      %p303 = scmp.ne.s32.totalorder %s298, %s300
      %p304 = scmp.eq.s32.totalorder %s33, 0
      %p305 = por %p303, %p304
      %p306 = scmp.ne.s32.totalorder %s298, %s300
      %p307 = scmp.eq.s32.totalorder %s38, 1
      %p308 = por %p306, %p307
      %p309 = scmp.ne.s32.totalorder %s300, %s301
      %p310 = scmp.eq.s32.totalorder %s38, 0
      %p311 = por %p309, %p310
      %p312 = scmp.ne.s32.totalorder %s300, %s301
      %p313 = scmp.eq.s32.totalorder %s39, 1
      %p314 = por %p312, %p313
      %p316 = scmp.ne.s32.totalorder %s301, %s315
      %p317 = scmp.eq.s32.totalorder %s39, 0
      %p318 = por %p316, %p317
      %s320 = sadd.s32 %s319, 1
      %p323 = scmp.eq.s32.totalorder %s33, 1
      %p324 = scmp.ne.s32.totalorder %s319, %s321
      %p325 = scmp.eq.s32.totalorder %s33, 0
      %p326 = por %p324, %p325
      %p327 = scmp.ne.s32.totalorder %s319, %s321
      %p328 = scmp.eq.s32.totalorder %s38, 1
      %p329 = por %p327, %p328
      %p330 = scmp.ne.s32.totalorder %s321, %s322
      %p331 = scmp.eq.s32.totalorder %s38, 0
      %p332 = por %p330, %p331
      %p333 = scmp.ne.s32.totalorder %s321, %s322
      %p334 = scmp.eq.s32.totalorder %s39, 1
      %p335 = por %p333, %p334
      %p337 = scmp.ne.s32.totalorder %s322, %s336
      %p338 = scmp.eq.s32.totalorder %s39, 0
      %p339 = por %p337, %p338
      %s341 = sadd.s32 %s340, 1
      %p344 = scmp.eq.s32.totalorder %s33, 1
      %p345 = scmp.ne.s32.totalorder %s340, %s342
      %p346 = scmp.eq.s32.totalorder %s33, 0
      %p347 = por %p345, %p346
      %p348 = scmp.ne.s32.totalorder %s340, %s342
      %p349 = scmp.eq.s32.totalorder %s38, 1
      %p350 = por %p348, %p349
      %p351 = scmp.ne.s32.totalorder %s342, %s343
      %p352 = scmp.eq.s32.totalorder %s38, 0
      %p353 = por %p351, %p352
      %p354 = scmp.ne.s32.totalorder %s342, %s343
      %p355 = scmp.eq.s32.totalorder %s39, 1
      %p356 = por %p354, %p355
      %p358 = scmp.ne.s32.totalorder %s343, %s357
      %p359 = scmp.eq.s32.totalorder %s39, 0
      %p360 = por %p358, %p359
      %s362 = sadd.s32 %s361, 1
      %p365 = scmp.eq.s32.totalorder %s33, 1
      %p366 = scmp.ne.s32.totalorder %s361, %s363
      %p367 = scmp.eq.s32.totalorder %s33, 0
      %p368 = por %p366, %p367
      %p369 = scmp.ne.s32.totalorder %s361, %s363
      %p370 = scmp.eq.s32.totalorder %s38, 1
      %p371 = por %p369, %p370
      %p372 = scmp.ne.s32.totalorder %s363, %s364
      %p373 = scmp.eq.s32.totalorder %s38, 0
      %p374 = por %p372, %p373
      %p375 = scmp.ne.s32.totalorder %s363, %s364
      %p376 = scmp.eq.s32.totalorder %s39, 1
      %p377 = por %p375, %p376
      %p379 = scmp.ne.s32.totalorder %s364, %s378
      %p380 = scmp.eq.s32.totalorder %s39, 0
      %p381 = por %p379, %p380
      %s383 = sadd.s32 %s382, 1
      %p386 = scmp.eq.s32.totalorder %s33, 1
      %p387 = scmp.ne.s32.totalorder %s382, %s384
      %p388 = scmp.eq.s32.totalorder %s33, 0
      %p389 = por %p387, %p388
      %p390 = scmp.ne.s32.totalorder %s382, %s384
      %p391 = scmp.eq.s32.totalorder %s38, 1
      %p392 = por %p390, %p391
      %p393 = scmp.ne.s32.totalorder %s384, %s385
      %p394 = scmp.eq.s32.totalorder %s38, 0
      %p395 = por %p393, %p394
      %p396 = scmp.ne.s32.totalorder %s384, %s385
      %p397 = scmp.eq.s32.totalorder %s39, 1
      %p398 = por %p396, %p397
      %p400 = scmp.ne.s32.totalorder %s385, %s399
      %p401 = scmp.eq.s32.totalorder %s39, 0
      %p402 = por %p400, %p401
      %s403 = ssub.s32 %s33, %s40
      %p404 = scmp.eq.s32.totalorder %s403, 0
      %s406 = sadd.s32 %s405, 1
      %s407 = scalar_select %p404, %s405, %s406
      %p410 = pneg %p404
      %p411 = scmp.eq.s32.totalorder %s33, 1
      %p412 = por %p410, %p411
      %p413 = scmp.ne.s32.totalorder %s405, %s408
      %p414 = scmp.eq.s32.totalorder %s33, 0
      %p415 = por %p413, %p414
      %p416 = scmp.ne.s32.totalorder %s405, %s408
      %p417 = scmp.eq.s32.totalorder %s38, 1
      %p418 = por %p416, %p417
      %p419 = scmp.ne.s32.totalorder %s408, %s409
      %p420 = scmp.eq.s32.totalorder %s38, 0
      %p421 = por %p419, %p420
      %p422 = scmp.ne.s32.totalorder %s408, %s409
      %p423 = scmp.eq.s32.totalorder %s39, 1
      %p424 = por %p422, %p423
      %p426 = scmp.ne.s32.totalorder %s409, %s425
      %p427 = scmp.eq.s32.totalorder %s39, 0
      %p428 = por %p426, %p427
      %p429 = scmp.le.s32.totalorder 1, %s33
      %p430 = scmp.lt.s32.totalorder %s33, 3
      %p431 = pnand %p429, %p430
      %p432 = pneg %p431
      // Predicated region
      $region9: #{crossmost_forward.1} parent=5 // pred_check
        _
      $region10: #{crossmost_forward.1} parent=5 // pred_check_branch
        %434 = sbr.rel (%p431) target = $region12
      $region11: #{crossmost_forward.1} parent=5 // pred_region
        %s435 = ssub.s32 %s33, 1
        // Predicated region
        $region13: #{crossmost_forward.1} parent=11 // pred_check
          %p436 = pneg %p80
        $region14: #{crossmost_forward.1} parent=11 // pred_check_branch
          %438 = sbr.rel (%p436) target = $region16
        $region15: #{crossmost_forward.1} parent=11 // pred_region
          _
        $region16: #{crossmost_forward.1} parent=11 // pred_fallthru
          _
        // Predicated region
        $region17: #{crossmost_forward.1} parent=11 // pred_check
          %p439 = pneg %p101
        $region18: #{crossmost_forward.1} parent=11 // pred_check_branch
          %441 = sbr.rel (%p439) target = $region20
        $region19: #{crossmost_forward.1} parent=11 // pred_region
          _
        $region20: #{crossmost_forward.1} parent=11 // pred_fallthru
          _
        // Predicated region
        $region21: #{crossmost_forward.1} parent=11 // pred_check
          %p442 = pneg %p122
        $region22: #{crossmost_forward.1} parent=11 // pred_check_branch
          %444 = sbr.rel (%p442) target = $region24
        $region23: #{crossmost_forward.1} parent=11 // pred_region
          _
        $region24: #{crossmost_forward.1} parent=11 // pred_fallthru
          _
        // Predicated region
        $region25: #{crossmost_forward.1} parent=11 // pred_check
          %p445 = pneg %p143
        $region26: #{crossmost_forward.1} parent=11 // pred_check_branch
          %447 = sbr.rel (%p445) target = $region28
        $region27: #{crossmost_forward.1} parent=11 // pred_region
          _
        $region28: #{crossmost_forward.1} parent=11 // pred_fallthru
          _
        // Predicated region
        $region29: #{crossmost_forward.1} parent=11 // pred_check
          %p448 = pneg %p164
        $region30: #{crossmost_forward.1} parent=11 // pred_check_branch
          %450 = sbr.rel (%p448) target = $region32
        $region31: #{crossmost_forward.1} parent=11 // pred_region
          _
        $region32: #{crossmost_forward.1} parent=11 // pred_fallthru
          _
        // Predicated region
        $region33: #{crossmost_forward.1} parent=11 // pred_check
          %p451 = pneg %p185
        $region34: #{crossmost_forward.1} parent=11 // pred_check_branch
          %453 = sbr.rel (%p451) target = $region36
        $region35: #{crossmost_forward.1} parent=11 // pred_region
          _
        $region36: #{crossmost_forward.1} parent=11 // pred_fallthru
          _
        // Predicated region
        $region37: #{crossmost_forward.1} parent=11 // pred_check
          %p454 = pneg %p206
        $region38: #{crossmost_forward.1} parent=11 // pred_check_branch
          %456 = sbr.rel (%p454) target = $region40
        $region39: #{crossmost_forward.1} parent=11 // pred_region
          _
        $region40: #{crossmost_forward.1} parent=11 // pred_fallthru
          _
        // Predicated region
        $region41: #{crossmost_forward.1} parent=11 // pred_check
          %p457 = pneg %p227
        $region42: #{crossmost_forward.1} parent=11 // pred_check_branch
          %459 = sbr.rel (%p457) target = $region44
        $region43: #{crossmost_forward.1} parent=11 // pred_region
          _
        $region44: #{crossmost_forward.1} parent=11 // pred_fallthru
          _
        // Predicated region
        $region45: #{crossmost_forward.1} parent=11 // pred_check
          %p460 = pneg %p248
        $region46: #{crossmost_forward.1} parent=11 // pred_check_branch
          %462 = sbr.rel (%p460) target = $region48
        $region47: #{crossmost_forward.1} parent=11 // pred_region
          _
        $region48: #{crossmost_forward.1} parent=11 // pred_fallthru
          _
        // Predicated region
        $region49: #{crossmost_forward.1} parent=11 // pred_check
          %p463 = pneg %p269
        $region50: #{crossmost_forward.1} parent=11 // pred_check_branch
          %465 = sbr.rel (%p463) target = $region52
        $region51: #{crossmost_forward.1} parent=11 // pred_region
          _
        $region52: #{crossmost_forward.1} parent=11 // pred_fallthru
          _
        // Predicated region
        $region53: #{crossmost_forward.1} parent=11 // pred_check
          %p466 = pneg %p290
        $region54: #{crossmost_forward.1} parent=11 // pred_check_branch
          %468 = sbr.rel (%p466) target = $region56
        $region55: #{crossmost_forward.1} parent=11 // pred_region
          _
        $region56: #{crossmost_forward.1} parent=11 // pred_fallthru
          _
        // Predicated region
        $region57: #{crossmost_forward.1} parent=11 // pred_check
          %p469 = pneg %p311
        $region58: #{crossmost_forward.1} parent=11 // pred_check_branch
          %471 = sbr.rel (%p469) target = $region60
        $region59: #{crossmost_forward.1} parent=11 // pred_region
          _
        $region60: #{crossmost_forward.1} parent=11 // pred_fallthru
          _
        // Predicated region
        $region61: #{crossmost_forward.1} parent=11 // pred_check
          %p472 = pneg %p332
        $region62: #{crossmost_forward.1} parent=11 // pred_check_branch
          %474 = sbr.rel (%p472) target = $region64
        $region63: #{crossmost_forward.1} parent=11 // pred_region
          _
        $region64: #{crossmost_forward.1} parent=11 // pred_fallthru
          _
        // Predicated region
        $region65: #{crossmost_forward.1} parent=11 // pred_check
          %p475 = pneg %p353
        $region66: #{crossmost_forward.1} parent=11 // pred_check_branch
          %477 = sbr.rel (%p475) target = $region68
        $region67: #{crossmost_forward.1} parent=11 // pred_region
          _
        $region68: #{crossmost_forward.1} parent=11 // pred_fallthru
          _
        // Predicated region
        $region69: #{crossmost_forward.1} parent=11 // pred_check
          %p478 = pneg %p374
        $region70: #{crossmost_forward.1} parent=11 // pred_check_branch
          %480 = sbr.rel (%p478) target = $region72
        $region71: #{crossmost_forward.1} parent=11 // pred_region
          _
        $region72: #{crossmost_forward.1} parent=11 // pred_fallthru
          _
        // Predicated region
        $region73: #{crossmost_forward.1} parent=11 // pred_check
          %p481 = pneg %p395
        $region74: #{crossmost_forward.1} parent=11 // pred_check_branch
          %483 = sbr.rel (%p481) target = $region76
        $region75: #{crossmost_forward.1} parent=11 // pred_region
          _
        $region76: #{crossmost_forward.1} parent=11 // pred_fallthru
          _
      $region12: #{crossmost_forward.1} parent=5 // pred_fallthru
        _
      %p484 = scmp.lt.s32.totalorder %s33, 2
      // Predicated region
      $region77: #{crossmost_forward.1} parent=5 // pred_check
        %p485 = pneg %p484
      $region78: #{crossmost_forward.1} parent=5 // pred_check_branch
        %487 = sbr.rel (%p485) target = $region80
      $region79: #{crossmost_forward.1} parent=5 // pred_region
        // Predicated region
        $region81: #{crossmost_forward.1} parent=79 // pred_check
          %p488 = pneg %p53
        $region82: #{crossmost_forward.1} parent=79 // pred_check_branch
          %490 = sbr.rel (%p488) target = $region84
        $region83: #{crossmost_forward.1} parent=79 // pred_region
          %p491 = scmp.lt.s32.totalorder %s33, 1
          %s492 = scalar_select %p491, %s33, 1
          %s493 = smul.addr %s492, 3
          %s494 = smul.addr %s493, 8
          %s495 = scalar_lea.vmem %s1, %s494
        $region84: #{crossmost_forward.1} parent=79 // pred_fallthru
          _
      $region80: #{crossmost_forward.1} parent=5 // pred_fallthru
        _
      %p496 = scmp.le.s32.totalorder 1, %s33
      %p497 = scmp.lt.s32.totalorder %s33, 3
      %p498 = pnand %p496, %p497
      %p499 = pneg %p498
      // Predicated region
      $region85: #{crossmost_forward.1} parent=5 // pred_check
        _
      $region86: #{crossmost_forward.1} parent=5 // pred_check_branch
        %501 = sbr.rel (%p498) target = $region88
      $region87: #{crossmost_forward.1} parent=5 // pred_region
        %s502 = ssub.s32 %s33, 1
        %p503 = scmp.lt.s32.totalorder %s38, 1
        %s504 = scalar_select %p503, %s38, 1
        %s505 = smul.addr %s504, 3
        %s506 = smul.addr %s505, 8
        %s507 = scalar_lea.vmem %s1, %s506
        %p508 = pneg %p59
        %p509 = pneg %p56
        %p510 = pneg %p80
        %p511 = pneg %p77
        %p512 = pneg %p101
        %p513 = pneg %p98
        %p514 = pneg %p122
        %p515 = pneg %p119
        %p516 = pneg %p143
        %p517 = pneg %p140
        %p518 = pneg %p164
        %p519 = pneg %p161
        %p520 = pneg %p185
        %p521 = pneg %p182
        %p522 = pneg %p206
        %p523 = pneg %p203
        %p524 = pneg %p227
        %p525 = pneg %p224
        %p526 = pneg %p248
        %p527 = pneg %p245
        %p528 = pneg %p269
        %p529 = pneg %p266
        %p530 = pneg %p290
        %p531 = pneg %p287
        %p532 = pneg %p311
        %p533 = pneg %p308
        %p534 = pneg %p332
        %p535 = pneg %p329
        %p536 = pneg %p353
        %p537 = pneg %p350
        %p538 = pneg %p374
        %p539 = pneg %p371
        %p540 = pneg %p395
        %p541 = pneg %p392
        %p542 = pneg %p421
        %p543 = pneg %p418
        %s544 = sand.u32 %s408, 1
        %s545 = scalar_lea.sflag [#allocation5], %s544
        %s546 = sand.u32 %s408, 1
        %s547 = scalar_lea.vmem [#allocation4], %s546
        %p548 = scmp.lt.s32.totalorder %s38, 1
        %s549 = scalar_select %p548, %s38, 1
        %s550 = smul.addr %s549, 3
        %s551 = smul.addr %s550, 8
        %s552 = scalar_lea.vmem %s1, %s551
        %v553 = vld [vmem:[%s552] sm:$0xff]
        %v554 = vld [vmem:[%s552 + $0x8] sm:$0xff]
        %v555 = vld [vmem:[%s552 + $0x10] sm:$0xff]
        %v556 = vld [vmem:[%s2] sm:$0xff]
        %v557 = vld [vmem:[%s2 + $0x8] sm:$0xff]
        %v558 = vld [vmem:[%s2 + $0x10] sm:$0xff]
        %v559 = vld [vmem:[%s3] sm:$0x1]
        %v560 = vld [vmem:[%s4] sm:$0x1]
        %vm561 = vcmask 261120
        %v562 = vsel %vm561, %v553, 0.0
        %563 = vadd.xlane.f32.xlu0 %v562
        %v564 = vpop.xlane.xlu0 %563
        %v565 = vsel %vm561, %v554, 0.0
        %566 = vadd.xlane.f32.xlu0 %v565
        %v567 = vpop.xlane.xlu0 %566
        %v568 = vsel %vm561, %v555, 0.0
        %569 = vadd.xlane.f32.xlu0 %v568
        %v570 = vpop.xlane.xlu0 %569
        %v571 = vrcp.pop 32.0
        %v572 = vmul.f32 %v564, %v571
        %v573 = vmul.f32 %v567, %v571
        %v574 = vmul.f32 %v570, %v571
        %v575 = vsub.f32 %v553, %v572
        %v576 = vsub.f32 %v554, %v573
        %v577 = vsub.f32 %v555, %v574
        %v578 = vmul.f32 %v575, %v575
        %v579 = vmul.f32 %v576, %v576
        %v580 = vmul.f32 %v577, %v577
        %v581 = vsel %vm561, %v578, 0.0
        %582 = vadd.xlane.f32.xlu0 %v581
        %v583 = vpop.xlane.xlu0 %582
        %v584 = vsel %vm561, %v579, 0.0
        %585 = vadd.xlane.f32.xlu0 %v584
        %v586 = vpop.xlane.xlu0 %585
        %v587 = vsel %vm561, %v580, 0.0
        %588 = vadd.xlane.f32.xlu0 %v587
        %v589 = vpop.xlane.xlu0 %588
        %v590 = vmul.f32 %v583, %v571
        %v591 = vmul.f32 %v586, %v571
        %v592 = vmul.f32 %v589, %v571
        %v593 = vadd.f32 %v590, 1e-05
        %v594 = vadd.f32 %v591, 1e-05
        %v595 = vadd.f32 %v592, 1e-05
        %v596 = vrsqrt.pop %v593
        %v597 = vrsqrt.pop %v594
        %v598 = vrsqrt.pop %v595
        %v599 = vmul.f32 %v575, %v596
        %v600 = vmul.f32 %v576, %v597
        %v601 = vmul.f32 %v577, %v598
        %v603 = vlaneseq
        %v604 = vshrl.u32 %v603, 7
        %v605 = vsub.s32 0, %v604
        %v606 = vrot.slane %v559, %v605
        %v608 = vmul.f32 %v599, %v606
        %v609 = vmul.f32 %v600, %v606
        %v610 = vmul.f32 %v601, %v606
        %v612 = vlaneseq
        %v613 = vshrl.u32 %v612, 7
        %v614 = vsub.s32 0, %v613
        %v615 = vrot.slane %v560, %v614
        %v617 = vadd.f32 %v608, %v615
        %v618 = vadd.f32 %v609, %v615
        %v619 = vadd.f32 %v610, %v615
        %v620 = vld [vmem:[%s5] sm:$0xff]
        %v621 = vld [vmem:[%s5 + $0x8] sm:$0xff]
        %v622 = vld [vmem:[%s5 + $0x10] sm:$0xff]
        %v623 = vld [vmem:[%s5 + $0x18] sm:$0xff]
        %v624 = vld [vmem:[%s6] sm:$0x1]
        %v626 = vlaneseq
        %v627 = vshrl.u32 %v626, 7
        %v628 = vsub.s32 0, %v627
        %v629 = vrot.slane %v624, %v628
        %v632 = vsel %vm561, %v617, 0
        %v635 = vsel %vm561, %v618, 0
        %v638 = vsel %vm561, %v619, 0
        %640 = vmatprep.subr.mxu0 0.0
        %641 = vmatpush1.msra.mxu0 %v620
        %642 = vmatprep.subr.mxu0 0.0
        %643 = vmatpush1.msra.mxu0 %v621
        %644 = vmatprep.subr.mxu0 0.0
        %645 = vmatpush1.msra.mxu0 %v622
        %646 = vmatprep.subr.mxu0 0.0
        %647 = vmatpush1.msra.mxu0 %v623
        %648 = vmatprep.subr.mxu0 0.0
        %649 = vmatpush1.msra.mxu0 0.0
        %650 = vmatprep.subr.mxu0 0.0
        %651 = vmatpush1.msra.mxu0 0.0
        %652 = vmatprep.subr.mxu0 0.0
        %653 = vmatpush1.msra.mxu0 0.0
        %654 = vmatprep.subr.mxu0 0.0
        %655 = vmatpush1.msra.mxu0 0.0
        %656 = vmatprep.subr.mxu0 0.0
        %657 = vmatpush1.msra.mxu0 0.0
        %658 = vmatprep.subr.mxu0 0.0
        %659 = vmatpush1.msra.mxu0 0.0
        %660 = vmatprep.subr.mxu0 0.0
        %661 = vmatpush1.msra.mxu0 0.0
        %662 = vmatprep.subr.mxu0 0.0
        %663 = vmatpush1.msra.mxu0 0.0
        %664 = vmatprep.subr.mxu0 0.0
        %665 = vmatpush1.msra.mxu0 0.0
        %666 = vmatprep.subr.mxu0 0.0
        %667 = vmatpush1.msra.mxu0 0.0
        %668 = vmatprep.subr.mxu0 0.0
        %669 = vmatpush1.msra.mxu0 0.0
        %670 = vmatprep.subr.mxu0 0.0
        %671 = vmatpush1.msra.mxu0 0.0
        %672 = vmatprep.subr.mxu0 0.0
        %673 = vmatpush1.msra.mxu0 0.0
        %674 = vmatprep.subr.mxu0 0.0
        %675 = vmatpush1.msra.mxu0 0.0
        %676 = vmatprep.subr.mxu0 0.0
        %677 = vmatpush1.msra.mxu0 0.0
        %678 = vmatprep.subr.mxu0 0.0
        %679 = vmatpush1.msra.mxu0 0.0
        %680 = vmatprep.subr.mxu0 0.0
        %681 = vmatpush1.msra.mxu0 0.0
        %682 = vmatprep.subr.mxu0 0.0
        %683 = vmatpush1.msra.mxu0 0.0
        %684 = vmatprep.subr.mxu0 0.0
        %685 = vmatpush1.msra.mxu0 0.0
        %686 = vmatprep.subr.mxu0 0.0
        %687 = vmatpush1.msra.mxu0 0.0
        %688 = vmatprep.subr.mxu0 0.0
        %689 = vmatpush1.msra.mxu0 0.0
        %690 = vmatprep.subr.mxu0 0.0
        %691 = vmatpush1.msra.mxu0 0.0
        %692 = vmatprep.subr.mxu0 0.0
        %693 = vmatpush1.msra.mxu0 0.0
        %694 = vmatprep.subr.mxu0 0.0
        %695 = vmatpush1.msra.mxu0 0.0
        %696 = vmatprep.subr.mxu0 0.0
        %697 = vmatpush1.msra.mxu0 0.0
        %698 = vmatprep.subr.mxu0 0.0
        %699 = vmatpush1.msra.mxu0 0.0
        %700 = vmatprep.subr.mxu0 0.0
        %701 = vmatpush1.msra.mxu0 0.0
        %702 = vmatprep.subr.mxu0 0.0
        %703 = vmatpush1.msra.mxu0 0.0
        %704 = vmatprep.mubr.f32.mxu0 0.0
        %705 = vmatmul.mubr.f32.gmra.mrb[0].mxu0 %v632
        %v706 = vpop.f32.mrb[0].mxu0
        %v707 = vadd.f32 %v629, %v706
        %v708 = vpop.f32.mrb[0].mxu0
        %709 = vmatprep.mubr.f32.mxu0 0.0
        %710 = vmatmul.mubr.f32.gmra.mrb[0].mxu0 %v635
        %v711 = vpop.f32.mrb[0].mxu0
        %v712 = vadd.f32 %v629, %v711
        %v713 = vpop.f32.mrb[0].mxu0
        %714 = vmatprep.mubr.f32.mxu0 0.0
        %715 = vmatmul.mubr.f32.gmra.mrb[0].mxu0 %v638
        %v716 = vpop.f32.mrb[0].mxu0
        %v717 = vadd.f32 %v629, %v716
        %v718 = vpop.f32.mrb[0].mxu0
        %719 = vdwg.mxu0
        %723 = vrot.lane.b32.xlu0 %v707, 96
        %v724 = vpop.permute.xlu0 %723
        %725 = vrot.lane.b32.xlu0 %v712, 96
        %v726 = vpop.permute.xlu0 %725
        %727 = vrot.lane.b32.xlu0 %v717, 96
        %v728 = vpop.permute.xlu0 %727
        %vm729 = vcmask 130048
        %v730 = vsel %vm729, %v707, 0
        %v732 = vsel %vm729, %v712, 0
        %v734 = vsel %vm729, %v717, 0
        %v736 = vsel %vm729, %v724, 0
        %v738 = vsel %vm729, %v726, 0
        %v740 = vsel %vm729, %v728, 0
        %742 = vmatprep.subr.mxu0 0.0
        %743 = vmatpush1.xpose.msra.mxu0 %v736
        %744 = vmatprep.subr.mxu0 0.0
        %745 = vmatpush1.xpose.msra.mxu0 %v738
        %746 = vmatprep.subr.mxu0 0.0
        %747 = vmatpush1.xpose.msra.mxu0 %v740
        %748 = vmatprep.subr.mxu0 0.0
        %749 = vmatpush1.xpose.msra.mxu0 0.0
        %750 = vmatprep.subr.mxu0 0.0
        %751 = vmatpush1.xpose.msra.mxu0 0.0
        %752 = vmatprep.subr.mxu0 0.0
        %753 = vmatpush1.xpose.msra.mxu0 0.0
        %754 = vmatprep.subr.mxu0 0.0
        %755 = vmatpush1.xpose.msra.mxu0 0.0
        %756 = vmatprep.subr.mxu0 0.0
        %757 = vmatpush1.xpose.msra.mxu0 0.0
        %758 = vmatprep.subr.mxu0 0.0
        %759 = vmatpush1.xpose.msra.mxu0 0.0
        %760 = vmatprep.subr.mxu0 0.0
        %761 = vmatpush1.xpose.msra.mxu0 0.0
        %762 = vmatprep.subr.mxu0 0.0
        %763 = vmatpush1.xpose.msra.mxu0 0.0
        %764 = vmatprep.subr.mxu0 0.0
        %765 = vmatpush1.xpose.msra.mxu0 0.0
        %766 = vmatprep.subr.mxu0 0.0
        %767 = vmatpush1.xpose.msra.mxu0 0.0
        %768 = vmatprep.subr.mxu0 0.0
        %769 = vmatpush1.xpose.msra.mxu0 0.0
        %770 = vmatprep.subr.mxu0 0.0
        %771 = vmatpush1.xpose.msra.mxu0 0.0
        %772 = vmatprep.subr.mxu0 0.0
        %773 = vmatpush1.xpose.msra.mxu0 0.0
        %774 = vmatprep.subr.mxu0 0.0
        %775 = vmatpush1.xpose.msra.mxu0 0.0
        %776 = vmatprep.subr.mxu0 0.0
        %777 = vmatpush1.xpose.msra.mxu0 0.0
        %778 = vmatprep.subr.mxu0 0.0
        %779 = vmatpush1.xpose.msra.mxu0 0.0
        %780 = vmatprep.subr.mxu0 0.0
        %781 = vmatpush1.xpose.msra.mxu0 0.0
        %782 = vmatprep.subr.mxu0 0.0
        %783 = vmatpush1.xpose.msra.mxu0 0.0
        %784 = vmatprep.subr.mxu0 0.0
        %785 = vmatpush1.xpose.msra.mxu0 0.0
        %786 = vmatprep.subr.mxu0 0.0
        %787 = vmatpush1.xpose.msra.mxu0 0.0
        %788 = vmatprep.subr.mxu0 0.0
        %789 = vmatpush1.xpose.msra.mxu0 0.0
        %790 = vmatprep.subr.mxu0 0.0
        %791 = vmatpush1.xpose.msra.mxu0 0.0
        %792 = vmatprep.subr.mxu0 0.0
        %793 = vmatpush1.xpose.msra.mxu0 0.0
        %794 = vmatprep.subr.mxu0 0.0
        %795 = vmatpush1.xpose.msra.mxu0 0.0
        %796 = vmatprep.subr.mxu0 0.0
        %797 = vmatpush1.xpose.msra.mxu0 0.0
        %798 = vmatprep.subr.mxu0 0.0
        %799 = vmatpush1.xpose.msra.mxu0 0.0
        %800 = vmatprep.subr.mxu0 0.0
        %801 = vmatpush1.xpose.msra.mxu0 0.0
        %802 = vmatprep.subr.mxu0 0.0
        %803 = vmatpush1.xpose.msra.mxu0 0.0
        %804 = vmatprep.subr.mxu0 0.0
        %805 = vmatpush1.xpose.msra.mxu0 0.0
        %806 = vmatprep.mubr.f32.mxu0 0.0
        %807 = vmatmul.mubr.f32.gmra.mrb[0].mxu0 %v730
        %v808 = vpop.f32.mrb[0].mxu0
        %v809 = vadd.f32 %v556, %v808
        %v810 = vpop.f32.mrb[0].mxu0
        %811 = vmatprep.mubr.f32.mxu0 0.0
        %812 = vmatmul.mubr.f32.gmra.mrb[0].mxu0 %v732
        %v813 = vpop.f32.mrb[0].mxu0
        %v814 = vadd.f32 %v557, %v813
        %v815 = vpop.f32.mrb[0].mxu0
        %816 = vmatprep.mubr.f32.mxu0 0.0
        %817 = vmatmul.mubr.f32.gmra.mrb[0].mxu0 %v734
        %v818 = vpop.f32.mrb[0].mxu0
        %v819 = vadd.f32 %v558, %v818
        %v820 = vpop.f32.mrb[0].mxu0
        %821 = vdwg.mxu0
        %vm822 = vcmask 195584
        %v823 = vsel %vm822, %v809, -inf
        %824 = vmax.xlane.f32.xlu0 %v823
        %v825 = vpop.xlane.xlu0 %824
        %v826 = vsel %vm822, %v814, -inf
        %827 = vmax.xlane.f32.xlu0 %v826
        %v828 = vpop.xlane.xlu0 %827
        %v829 = vsel %vm822, %v819, -inf
        %830 = vmax.xlane.f32.xlu0 %v829
        %v831 = vpop.xlane.xlu0 %830
        %v832 = vsub.f32 %v809, %v825
        %v833 = vsub.f32 %v814, %v828
        %v834 = vsub.f32 %v819, %v831
        %v835 = vmul.f32 %v832, 1.442695
        %v836 = vpow.pop %v835
        %v837 = vmul.f32 %v833, 1.442695
        %v838 = vpow.pop %v837
        %v839 = vmul.f32 %v834, 1.442695
        %v840 = vpow.pop %v839
        %v841 = vsel %vm822, %v836, 0.0
        %842 = vadd.xlane.f32.xlu0 %v841
        %v843 = vpop.xlane.xlu0 %842
        %v844 = vsel %vm822, %v838, 0.0
        %845 = vadd.xlane.f32.xlu0 %v844
        %v846 = vpop.xlane.xlu0 %845
        %v847 = vsel %vm822, %v840, 0.0
        %848 = vadd.xlane.f32.xlu0 %v847
        %v849 = vpop.xlane.xlu0 %848
        %v850 = vrcp.pop %v843
        %v851 = vrcp.pop %v846
        %v852 = vrcp.pop %v849
        %v853 = vmul.f32 %v836, %v850
        %v854 = vmul.f32 %v838, %v851
        %v855 = vmul.f32 %v840, %v852
        %856 = vrot.lane.b32.xlu0 %v707, 64
        %v857 = vpop.permute.xlu0 %856
        %858 = vrot.lane.b32.xlu0 %v712, 64
        %v859 = vpop.permute.xlu0 %858
        %860 = vrot.lane.b32.xlu0 %v717, 64
        %v861 = vpop.permute.xlu0 %860
        %v866 = vsel %vm822, %v853, 0
        %v869 = vsel %vm822, %v854, 0
        %v872 = vsel %vm822, %v855, 0
        %874 = vmatprep.subr.mxu0 0.0
        %875 = vmatpush1.msra.mxu0 %v857
        %876 = vmatprep.subr.mxu0 0.0
        %877 = vmatpush1.msra.mxu0 %v859
        %878 = vmatprep.subr.mxu0 0.0
        %879 = vmatpush1.msra.mxu0 %v861
        %880 = vmatprep.subr.mxu0 0.0
        %881 = vmatpush1.msra.mxu0 0.0
        %882 = vmatprep.subr.mxu0 0.0
        %883 = vmatpush1.msra.mxu0 0.0
        %884 = vmatprep.subr.mxu0 0.0
        %885 = vmatpush1.msra.mxu0 0.0
        %886 = vmatprep.subr.mxu0 0.0
        %887 = vmatpush1.msra.mxu0 0.0
        %888 = vmatprep.subr.mxu0 0.0
        %889 = vmatpush1.msra.mxu0 0.0
        %890 = vmatprep.subr.mxu0 0.0
        %891 = vmatpush1.msra.mxu0 0.0
        %892 = vmatprep.subr.mxu0 0.0
        %893 = vmatpush1.msra.mxu0 0.0
        %894 = vmatprep.subr.mxu0 0.0
        %895 = vmatpush1.msra.mxu0 0.0
        %896 = vmatprep.subr.mxu0 0.0
        %897 = vmatpush1.msra.mxu0 0.0
        %898 = vmatprep.subr.mxu0 0.0
        %899 = vmatpush1.msra.mxu0 0.0
        %900 = vmatprep.subr.mxu0 0.0
        %901 = vmatpush1.msra.mxu0 0.0
        %902 = vmatprep.subr.mxu0 0.0
        %903 = vmatpush1.msra.mxu0 0.0
        %904 = vmatprep.subr.mxu0 0.0
        %905 = vmatpush1.msra.mxu0 0.0
        %906 = vmatprep.subr.mxu0 0.0
        %907 = vmatpush1.msra.mxu0 0.0
        %908 = vmatprep.subr.mxu0 0.0
        %909 = vmatpush1.msra.mxu0 0.0
        %910 = vmatprep.subr.mxu0 0.0
        %911 = vmatpush1.msra.mxu0 0.0
        %912 = vmatprep.subr.mxu0 0.0
        %913 = vmatpush1.msra.mxu0 0.0
        %914 = vmatprep.subr.mxu0 0.0
        %915 = vmatpush1.msra.mxu0 0.0
        %916 = vmatprep.subr.mxu0 0.0
        %917 = vmatpush1.msra.mxu0 0.0
        %918 = vmatprep.subr.mxu0 0.0
        %919 = vmatpush1.msra.mxu0 0.0
        %920 = vmatprep.subr.mxu0 0.0
        %921 = vmatpush1.msra.mxu0 0.0
        %922 = vmatprep.subr.mxu0 0.0
        %923 = vmatpush1.msra.mxu0 0.0
        %924 = vmatprep.subr.mxu0 0.0
        %925 = vmatpush1.msra.mxu0 0.0
        %926 = vmatprep.subr.mxu0 0.0
        %927 = vmatpush1.msra.mxu0 0.0
        %928 = vmatprep.subr.mxu0 0.0
        %929 = vmatpush1.msra.mxu0 0.0
        %930 = vmatprep.subr.mxu0 0.0
        %931 = vmatpush1.msra.mxu0 0.0
        %932 = vmatprep.subr.mxu0 0.0
        %933 = vmatpush1.msra.mxu0 0.0
        %934 = vmatprep.subr.mxu0 0.0
        %935 = vmatpush1.msra.mxu0 0.0
        %936 = vmatprep.subr.mxu0 0.0
        %937 = vmatpush1.msra.mxu0 0.0
        %938 = vmatprep.mubr.f32.mxu0 0.0
        %939 = vmatmul.mubr.f32.gmra.mrb[0].mxu0 %v866
        %v940 = vpop.f32.mrb[0].mxu0
        %v941 = vadd.f32 0.0, %v940
        %v942 = vpop.f32.mrb[0].mxu0
        %943 = vmatprep.mubr.f32.mxu0 0.0
        %944 = vmatmul.mubr.f32.gmra.mrb[0].mxu0 %v869
        %v945 = vpop.f32.mrb[0].mxu0
        %v946 = vadd.f32 0.0, %v945
        %v947 = vpop.f32.mrb[0].mxu0
        %948 = vmatprep.mubr.f32.mxu0 0.0
        %949 = vmatmul.mubr.f32.gmra.mrb[0].mxu0 %v872
        %v950 = vpop.f32.mrb[0].mxu0
        %v951 = vadd.f32 0.0, %v950
        %v952 = vpop.f32.mrb[0].mxu0
        %953 = vdwg.mxu0
        %954 = vrot.lane.b32.xlu0 %v707, 112
        %v955 = vpop.permute.xlu0 %954
        %956 = vrot.lane.b32.xlu0 %v712, 112
        %v957 = vpop.permute.xlu0 %956
        %958 = vrot.lane.b32.xlu0 %v717, 112
        %v959 = vpop.permute.xlu0 %958
        %960 = vrot.lane.b32.xlu0 %v707, 80
        %v961 = vpop.permute.xlu0 %960
        %962 = vrot.lane.b32.xlu0 %v712, 80
        %v963 = vpop.permute.xlu0 %962
        %964 = vrot.lane.b32.xlu0 %v717, 80
        %v965 = vpop.permute.xlu0 %964
        %v966 = vsel %vm729, %v955, 0
        %v968 = vsel %vm729, %v957, 0
        %v970 = vsel %vm729, %v959, 0
        %v972 = vsel %vm729, %v961, 0
        %v974 = vsel %vm729, %v963, 0
        %v976 = vsel %vm729, %v965, 0
        %978 = vmatprep.subr.mxu0 0.0
        %979 = vmatpush1.xpose.msra.mxu0 %v972
        %980 = vmatprep.subr.mxu0 0.0
        %981 = vmatpush1.xpose.msra.mxu0 %v974
        %982 = vmatprep.subr.mxu0 0.0
        %983 = vmatpush1.xpose.msra.mxu0 %v976
        %984 = vmatprep.subr.mxu0 0.0
        %985 = vmatpush1.xpose.msra.mxu0 0.0
        %986 = vmatprep.subr.mxu0 0.0
        %987 = vmatpush1.xpose.msra.mxu0 0.0
        %988 = vmatprep.subr.mxu0 0.0
        %989 = vmatpush1.xpose.msra.mxu0 0.0
        %990 = vmatprep.subr.mxu0 0.0
        %991 = vmatpush1.xpose.msra.mxu0 0.0
        %992 = vmatprep.subr.mxu0 0.0
        %993 = vmatpush1.xpose.msra.mxu0 0.0
        %994 = vmatprep.subr.mxu0 0.0
        %995 = vmatpush1.xpose.msra.mxu0 0.0
        %996 = vmatprep.subr.mxu0 0.0
        %997 = vmatpush1.xpose.msra.mxu0 0.0
        %998 = vmatprep.subr.mxu0 0.0
        %999 = vmatpush1.xpose.msra.mxu0 0.0
        %1000 = vmatprep.subr.mxu0 0.0
        %1001 = vmatpush1.xpose.msra.mxu0 0.0
        %1002 = vmatprep.subr.mxu0 0.0
        %1003 = vmatpush1.xpose.msra.mxu0 0.0
        %1004 = vmatprep.subr.mxu0 0.0
        %1005 = vmatpush1.xpose.msra.mxu0 0.0
        %1006 = vmatprep.subr.mxu0 0.0
        %1007 = vmatpush1.xpose.msra.mxu0 0.0
        %1008 = vmatprep.subr.mxu0 0.0
        %1009 = vmatpush1.xpose.msra.mxu0 0.0
        %1010 = vmatprep.subr.mxu0 0.0
        %1011 = vmatpush1.xpose.msra.mxu0 0.0
        %1012 = vmatprep.subr.mxu0 0.0
        %1013 = vmatpush1.xpose.msra.mxu0 0.0
        %1014 = vmatprep.subr.mxu0 0.0
        %1015 = vmatpush1.xpose.msra.mxu0 0.0
        %1016 = vmatprep.subr.mxu0 0.0
        %1017 = vmatpush1.xpose.msra.mxu0 0.0
        %1018 = vmatprep.subr.mxu0 0.0
        %1019 = vmatpush1.xpose.msra.mxu0 0.0
        %1020 = vmatprep.subr.mxu0 0.0
        %1021 = vmatpush1.xpose.msra.mxu0 0.0
        %1022 = vmatprep.subr.mxu0 0.0
        %1023 = vmatpush1.xpose.msra.mxu0 0.0
        %1024 = vmatprep.subr.mxu0 0.0
        %1025 = vmatpush1.xpose.msra.mxu0 0.0
        %1026 = vmatprep.subr.mxu0 0.0
        %1027 = vmatpush1.xpose.msra.mxu0 0.0
        %1028 = vmatprep.subr.mxu0 0.0
        %1029 = vmatpush1.xpose.msra.mxu0 0.0
        %1030 = vmatprep.subr.mxu0 0.0
        %1031 = vmatpush1.xpose.msra.mxu0 0.0
        %1032 = vmatprep.subr.mxu0 0.0
        %1033 = vmatpush1.xpose.msra.mxu0 0.0
        %1034 = vmatprep.subr.mxu0 0.0
        %1035 = vmatpush1.xpose.msra.mxu0 0.0
        %1036 = vmatprep.subr.mxu0 0.0
        %1037 = vmatpush1.xpose.msra.mxu0 0.0
        %1038 = vmatprep.subr.mxu0 0.0
        %1039 = vmatpush1.xpose.msra.mxu0 0.0
        %1040 = vmatprep.subr.mxu0 0.0
        %1041 = vmatpush1.xpose.msra.mxu0 0.0
        %1042 = vmatprep.mubr.f32.mxu0 0.0
        %1043 = vmatmul.mubr.f32.gmra.mrb[0].mxu0 %v966
        %v1044 = vpop.f32.mrb[0].mxu0
        %v1045 = vadd.f32 %v556, %v1044
        %v1046 = vpop.f32.mrb[0].mxu0
        %1047 = vmatprep.mubr.f32.mxu0 0.0
        %1048 = vmatmul.mubr.f32.gmra.mrb[0].mxu0 %v968
        %v1049 = vpop.f32.mrb[0].mxu0
        %v1050 = vadd.f32 %v557, %v1049
        %v1051 = vpop.f32.mrb[0].mxu0
        %1052 = vmatprep.mubr.f32.mxu0 0.0
        %1053 = vmatmul.mubr.f32.gmra.mrb[0].mxu0 %v970
        %v1054 = vpop.f32.mrb[0].mxu0
        %v1055 = vadd.f32 %v558, %v1054
        %v1056 = vpop.f32.mrb[0].mxu0
        %1057 = vdwg.mxu0
        %v1058 = vsel %vm822, %v1045, -inf
        %1059 = vmax.xlane.f32.xlu0 %v1058
        %v1060 = vpop.xlane.xlu0 %1059
        %v1061 = vsel %vm822, %v1050, -inf
        %1062 = vmax.xlane.f32.xlu0 %v1061
        %v1063 = vpop.xlane.xlu0 %1062
        %v1064 = vsel %vm822, %v1055, -inf
        %1065 = vmax.xlane.f32.xlu0 %v1064
        %v1066 = vpop.xlane.xlu0 %1065
        %v1067 = vsub.f32 %v1045, %v1060
        %v1068 = vsub.f32 %v1050, %v1063
        %v1069 = vsub.f32 %v1055, %v1066
        %v1070 = vmul.f32 %v1067, 1.442695
        %v1071 = vpow.pop %v1070
        %v1072 = vmul.f32 %v1068, 1.442695
        %v1073 = vpow.pop %v1072
        %v1074 = vmul.f32 %v1069, 1.442695
        %v1075 = vpow.pop %v1074
        %v1076 = vsel %vm822, %v1071, 0.0
        %1077 = vadd.xlane.f32.xlu0 %v1076
        %v1078 = vpop.xlane.xlu0 %1077
        %v1079 = vsel %vm822, %v1073, 0.0
        %1080 = vadd.xlane.f32.xlu0 %v1079
        %v1081 = vpop.xlane.xlu0 %1080
        %v1082 = vsel %vm822, %v1075, 0.0
        %1083 = vadd.xlane.f32.xlu0 %v1082
        %v1084 = vpop.xlane.xlu0 %1083
        %v1085 = vrcp.pop %v1078
        %v1086 = vrcp.pop %v1081
        %v1087 = vrcp.pop %v1084
        %v1088 = vmul.f32 %v1071, %v1085
        %v1089 = vmul.f32 %v1073, %v1086
        %v1090 = vmul.f32 %v1075, %v1087
        %1091 = vrot.lane.b32.xlu0 %v707, 48
        %v1092 = vpop.permute.xlu0 %1091
        %1093 = vrot.lane.b32.xlu0 %v712, 48
        %v1094 = vpop.permute.xlu0 %1093
        %1095 = vrot.lane.b32.xlu0 %v717, 48
        %v1096 = vpop.permute.xlu0 %1095
        %v1101 = vsel %vm822, %v1088, 0
        %v1104 = vsel %vm822, %v1089, 0
        %v1107 = vsel %vm822, %v1090, 0
        %1109 = vmatprep.subr.mxu0 0.0
        %1110 = vmatpush1.msra.mxu0 %v1092
        %1111 = vmatprep.subr.mxu0 0.0
        %1112 = vmatpush1.msra.mxu0 %v1094
        %1113 = vmatprep.subr.mxu0 0.0
        %1114 = vmatpush1.msra.mxu0 %v1096
        %1115 = vmatprep.subr.mxu0 0.0
        %1116 = vmatpush1.msra.mxu0 0.0
        %1117 = vmatprep.subr.mxu0 0.0
        %1118 = vmatpush1.msra.mxu0 0.0
        %1119 = vmatprep.subr.mxu0 0.0
        %1120 = vmatpush1.msra.mxu0 0.0
        %1121 = vmatprep.subr.mxu0 0.0
        %1122 = vmatpush1.msra.mxu0 0.0
        %1123 = vmatprep.subr.mxu0 0.0
        %1124 = vmatpush1.msra.mxu0 0.0
        %1125 = vmatprep.subr.mxu0 0.0
        %1126 = vmatpush1.msra.mxu0 0.0
        %1127 = vmatprep.subr.mxu0 0.0
        %1128 = vmatpush1.msra.mxu0 0.0
        %1129 = vmatprep.subr.mxu0 0.0
        %1130 = vmatpush1.msra.mxu0 0.0
        %1131 = vmatprep.subr.mxu0 0.0
        %1132 = vmatpush1.msra.mxu0 0.0
        %1133 = vmatprep.subr.mxu0 0.0
        %1134 = vmatpush1.msra.mxu0 0.0
        %1135 = vmatprep.subr.mxu0 0.0
        %1136 = vmatpush1.msra.mxu0 0.0
        %1137 = vmatprep.subr.mxu0 0.0
        %1138 = vmatpush1.msra.mxu0 0.0
        %1139 = vmatprep.subr.mxu0 0.0
        %1140 = vmatpush1.msra.mxu0 0.0
        %1141 = vmatprep.subr.mxu0 0.0
        %1142 = vmatpush1.msra.mxu0 0.0
        %1143 = vmatprep.subr.mxu0 0.0
        %1144 = vmatpush1.msra.mxu0 0.0
        %1145 = vmatprep.subr.mxu0 0.0
        %1146 = vmatpush1.msra.mxu0 0.0
        %1147 = vmatprep.subr.mxu0 0.0
        %1148 = vmatpush1.msra.mxu0 0.0
        %1149 = vmatprep.subr.mxu0 0.0
        %1150 = vmatpush1.msra.mxu0 0.0
        %1151 = vmatprep.subr.mxu0 0.0
        %1152 = vmatpush1.msra.mxu0 0.0
        %1153 = vmatprep.subr.mxu0 0.0
        %1154 = vmatpush1.msra.mxu0 0.0
        %1155 = vmatprep.subr.mxu0 0.0
        %1156 = vmatpush1.msra.mxu0 0.0
        %1157 = vmatprep.subr.mxu0 0.0
        %1158 = vmatpush1.msra.mxu0 0.0
        %1159 = vmatprep.subr.mxu0 0.0
        %1160 = vmatpush1.msra.mxu0 0.0
        %1161 = vmatprep.subr.mxu0 0.0
        %1162 = vmatpush1.msra.mxu0 0.0
        %1163 = vmatprep.subr.mxu0 0.0
        %1164 = vmatpush1.msra.mxu0 0.0
        %1165 = vmatprep.subr.mxu0 0.0
        %1166 = vmatpush1.msra.mxu0 0.0
        %1167 = vmatprep.subr.mxu0 0.0
        %1168 = vmatpush1.msra.mxu0 0.0
        %1169 = vmatprep.subr.mxu0 0.0
        %1170 = vmatpush1.msra.mxu0 0.0
        %1171 = vmatprep.subr.mxu0 0.0
        %1172 = vmatpush1.msra.mxu0 0.0
        %1173 = vmatprep.mubr.f32.mxu0 0.0
        %1174 = vmatmul.mubr.f32.gmra.mrb[0].mxu0 %v1101
        %v1175 = vpop.f32.mrb[0].mxu0
        %v1176 = vadd.f32 0.0, %v1175
        %v1177 = vpop.f32.mrb[0].mxu0
        %1178 = vmatprep.mubr.f32.mxu0 0.0
        %1179 = vmatmul.mubr.f32.gmra.mrb[0].mxu0 %v1104
        %v1180 = vpop.f32.mrb[0].mxu0
        %v1181 = vadd.f32 0.0, %v1180
        %v1182 = vpop.f32.mrb[0].mxu0
        %1183 = vmatprep.mubr.f32.mxu0 0.0
        %1184 = vmatmul.mubr.f32.gmra.mrb[0].mxu0 %v1107
        %v1185 = vpop.f32.mrb[0].mxu0
        %v1186 = vadd.f32 0.0, %v1185
        %v1187 = vpop.f32.mrb[0].mxu0
        %1188 = vdwg.mxu0
        %1192 = vrot.lane.b32.xlu0 %v1176, 16
        %v1193 = vpop.permute.xlu0 %1192
        %1194 = vrot.lane.b32.xlu0 %v1181, 16
        %v1195 = vpop.permute.xlu0 %1194
        %1196 = vrot.lane.b32.xlu0 %v1186, 16
        %v1197 = vpop.permute.xlu0 %1196
        %v1201 = vsel %vm729, %v941, %v1193
        %v1202 = vsel %vm729, %v946, %v1195
        %v1203 = vsel %vm729, %v951, %v1197
        %v1204 = vld [vmem:[%s7] sm:$0xff]
        %v1205 = vld [vmem:[%s7 + $0x8] sm:$0xff]
        %v1206 = vld [vmem:[%s7 + $0x10] sm:$0xff]
        %v1207 = vld [vmem:[%s7 + $0x18] sm:$0xff]
        %v1209 = vsel %vm561, %v1201, 0
        %v1212 = vsel %vm561, %v1202, 0
        %v1215 = vsel %vm561, %v1203, 0
        %1217 = vmatprep.subr.mxu0 0.0
        %1218 = vmatpush1.msra.mxu0 %v1204
        %1219 = vmatprep.subr.mxu0 0.0
        %1220 = vmatpush1.msra.mxu0 %v1205
        %1221 = vmatprep.subr.mxu0 0.0
        %1222 = vmatpush1.msra.mxu0 %v1206
        %1223 = vmatprep.subr.mxu0 0.0
        %1224 = vmatpush1.msra.mxu0 %v1207
        %1225 = vmatprep.subr.mxu0 0.0
        %1226 = vmatpush1.msra.mxu0 0.0
        %1227 = vmatprep.subr.mxu0 0.0
        %1228 = vmatpush1.msra.mxu0 0.0
        %1229 = vmatprep.subr.mxu0 0.0
        %1230 = vmatpush1.msra.mxu0 0.0
        %1231 = vmatprep.subr.mxu0 0.0
        %1232 = vmatpush1.msra.mxu0 0.0
        %1233 = vmatprep.subr.mxu0 0.0
        %1234 = vmatpush1.msra.mxu0 0.0
        %1235 = vmatprep.subr.mxu0 0.0
        %1236 = vmatpush1.msra.mxu0 0.0
        %1237 = vmatprep.subr.mxu0 0.0
        %1238 = vmatpush1.msra.mxu0 0.0
        %1239 = vmatprep.subr.mxu0 0.0
        %1240 = vmatpush1.msra.mxu0 0.0
        %1241 = vmatprep.subr.mxu0 0.0
        %1242 = vmatpush1.msra.mxu0 0.0
        %1243 = vmatprep.subr.mxu0 0.0
        %1244 = vmatpush1.msra.mxu0 0.0
        %1245 = vmatprep.subr.mxu0 0.0
        %1246 = vmatpush1.msra.mxu0 0.0
        %1247 = vmatprep.subr.mxu0 0.0
        %1248 = vmatpush1.msra.mxu0 0.0
        %1249 = vmatprep.subr.mxu0 0.0
        %1250 = vmatpush1.msra.mxu0 0.0
        %1251 = vmatprep.subr.mxu0 0.0
        %1252 = vmatpush1.msra.mxu0 0.0
        %1253 = vmatprep.subr.mxu0 0.0
        %1254 = vmatpush1.msra.mxu0 0.0
        %1255 = vmatprep.subr.mxu0 0.0
        %1256 = vmatpush1.msra.mxu0 0.0
        %1257 = vmatprep.subr.mxu0 0.0
        %1258 = vmatpush1.msra.mxu0 0.0
        %1259 = vmatprep.subr.mxu0 0.0
        %1260 = vmatpush1.msra.mxu0 0.0
        %1261 = vmatprep.subr.mxu0 0.0
        %1262 = vmatpush1.msra.mxu0 0.0
        %1263 = vmatprep.subr.mxu0 0.0
        %1264 = vmatpush1.msra.mxu0 0.0
        %1265 = vmatprep.subr.mxu0 0.0
        %1266 = vmatpush1.msra.mxu0 0.0
        %1267 = vmatprep.subr.mxu0 0.0
        %1268 = vmatpush1.msra.mxu0 0.0
        %1269 = vmatprep.subr.mxu0 0.0
        %1270 = vmatpush1.msra.mxu0 0.0
        %1271 = vmatprep.subr.mxu0 0.0
        %1272 = vmatpush1.msra.mxu0 0.0
        %1273 = vmatprep.subr.mxu0 0.0
        %1274 = vmatpush1.msra.mxu0 0.0
        %1275 = vmatprep.subr.mxu0 0.0
        %1276 = vmatpush1.msra.mxu0 0.0
        %1277 = vmatprep.subr.mxu0 0.0
        %1278 = vmatpush1.msra.mxu0 0.0
        %1279 = vmatprep.subr.mxu0 0.0
        %1280 = vmatpush1.msra.mxu0 0.0
        %1281 = vmatprep.mubr.f32.mxu0 0.0
        %1282 = vmatmul.mubr.f32.gmra.mrb[0].mxu0 %v1209
        %v1283 = vpop.f32.mrb[0].mxu0
        %v1284 = vadd.f32 0.0, %v1283
        %v1285 = vpop.f32.mrb[0].mxu0
        %1286 = vmatprep.mubr.f32.mxu0 0.0
        %1287 = vmatmul.mubr.f32.gmra.mrb[0].mxu0 %v1212
        %v1288 = vpop.f32.mrb[0].mxu0
        %v1289 = vadd.f32 0.0, %v1288
        %v1290 = vpop.f32.mrb[0].mxu0
        %1291 = vmatprep.mubr.f32.mxu0 0.0
        %1292 = vmatmul.mubr.f32.gmra.mrb[0].mxu0 %v1215
        %v1293 = vpop.f32.mrb[0].mxu0
        %v1294 = vadd.f32 0.0, %v1293
        %v1295 = vpop.f32.mrb[0].mxu0
        %1296 = vdwg.mxu0
        %v1297 = vadd.f32 %v553, %v1284
        %v1298 = vadd.f32 %v554, %v1289
        %v1299 = vadd.f32 %v555, %v1294
        %v1300 = vld [vmem:[%s8] sm:$0x1]
        %v1302 = vlaneseq
        %v1303 = vshrl.u32 %v1302, 7
        %v1304 = vsub.s32 0, %v1303
        %v1305 = vrot.slane %v1300, %v1304
        %v1307 = vadd.f32 %v1297, %v1305
        %v1308 = vadd.f32 %v1298, %v1305
        %v1309 = vadd.f32 %v1299, %v1305
        %v1310 = vld [vmem:[%s9] sm:$0x1]
        %v1311 = vld [vmem:[%s10] sm:$0x1]
        %v1312 = vsel %vm561, %v1307, 0.0
        %1313 = vadd.xlane.f32.xlu0 %v1312
        %v1314 = vpop.xlane.xlu0 %1313
        %v1315 = vsel %vm561, %v1308, 0.0
        %1316 = vadd.xlane.f32.xlu0 %v1315
        %v1317 = vpop.xlane.xlu0 %1316
        %v1318 = vsel %vm561, %v1309, 0.0
        %1319 = vadd.xlane.f32.xlu0 %v1318
        %v1320 = vpop.xlane.xlu0 %1319
        %v1321 = vmul.f32 %v1314, %v571
        %v1322 = vmul.f32 %v1317, %v571
        %v1323 = vmul.f32 %v1320, %v571
        %v1324 = vsub.f32 %v1307, %v1321
        %v1325 = vsub.f32 %v1308, %v1322
        %v1326 = vsub.f32 %v1309, %v1323
        %v1327 = vmul.f32 %v1324, %v1324
        %v1328 = vmul.f32 %v1325, %v1325
        %v1329 = vmul.f32 %v1326, %v1326
        %v1330 = vsel %vm561, %v1327, 0.0
        %1331 = vadd.xlane.f32.xlu0 %v1330
        %v1332 = vpop.xlane.xlu0 %1331
        %v1333 = vsel %vm561, %v1328, 0.0
        %1334 = vadd.xlane.f32.xlu0 %v1333
        %v1335 = vpop.xlane.xlu0 %1334
        %v1336 = vsel %vm561, %v1329, 0.0
        %1337 = vadd.xlane.f32.xlu0 %v1336
        %v1338 = vpop.xlane.xlu0 %1337
        %v1339 = vmul.f32 %v1332, %v571
        %v1340 = vmul.f32 %v1335, %v571
        %v1341 = vmul.f32 %v1338, %v571
        %v1342 = vadd.f32 %v1339, 1e-05
        %v1343 = vadd.f32 %v1340, 1e-05
        %v1344 = vadd.f32 %v1341, 1e-05
        %v1345 = vrsqrt.pop %v1342
        %v1346 = vrsqrt.pop %v1343
        %v1347 = vrsqrt.pop %v1344
        %v1348 = vmul.f32 %v1324, %v1345
        %v1349 = vmul.f32 %v1325, %v1346
        %v1350 = vmul.f32 %v1326, %v1347
        %v1352 = vlaneseq
        %v1353 = vshrl.u32 %v1352, 7
        %v1354 = vsub.s32 0, %v1353
        %v1355 = vrot.slane %v1310, %v1354
        %v1357 = vmul.f32 %v1348, %v1355
        %v1358 = vmul.f32 %v1349, %v1355
        %v1359 = vmul.f32 %v1350, %v1355
        %v1361 = vlaneseq
        %v1362 = vshrl.u32 %v1361, 7
        %v1363 = vsub.s32 0, %v1362
        %v1364 = vrot.slane %v1311, %v1363
        %v1366 = vadd.f32 %v1357, %v1364
        %v1367 = vadd.f32 %v1358, %v1364
        %v1368 = vadd.f32 %v1359, %v1364
        %v1369 = vld [vmem:[%s11] sm:$0xff]
        %v1370 = vld [vmem:[%s11 + $0x8] sm:$0xff]
        %v1371 = vld [vmem:[%s11 + $0x10] sm:$0xff]
        %v1372 = vld [vmem:[%s11 + $0x18] sm:$0xff]
        %v1373 = vld [vmem:[%s12] sm:$0x1]
        %v1375 = vlaneseq
        %v1376 = vshrl.u32 %v1375, 7
        %v1377 = vsub.s32 0, %v1376
        %v1378 = vrot.slane %v1373, %v1377
        %v1381 = vsel %vm561, %v1366, 0
        %v1384 = vsel %vm561, %v1367, 0
        %v1387 = vsel %vm561, %v1368, 0
        %1389 = vmatprep.subr.mxu0 0.0
        %1390 = vmatpush1.msra.mxu0 %v1369
        %1391 = vmatprep.subr.mxu0 0.0
        %1392 = vmatpush1.msra.mxu0 %v1370
        %1393 = vmatprep.subr.mxu0 0.0
        %1394 = vmatpush1.msra.mxu0 %v1371
        %1395 = vmatprep.subr.mxu0 0.0
        %1396 = vmatpush1.msra.mxu0 %v1372
        %1397 = vmatprep.subr.mxu0 0.0
        %1398 = vmatpush1.msra.mxu0 0.0
        %1399 = vmatprep.subr.mxu0 0.0
        %1400 = vmatpush1.msra.mxu0 0.0
        %1401 = vmatprep.subr.mxu0 0.0
        %1402 = vmatpush1.msra.mxu0 0.0
        %1403 = vmatprep.subr.mxu0 0.0
        %1404 = vmatpush1.msra.mxu0 0.0
        %1405 = vmatprep.subr.mxu0 0.0
        %1406 = vmatpush1.msra.mxu0 0.0
        %1407 = vmatprep.subr.mxu0 0.0
        %1408 = vmatpush1.msra.mxu0 0.0
        %1409 = vmatprep.subr.mxu0 0.0
        %1410 = vmatpush1.msra.mxu0 0.0
        %1411 = vmatprep.subr.mxu0 0.0
        %1412 = vmatpush1.msra.mxu0 0.0
        %1413 = vmatprep.subr.mxu0 0.0
        %1414 = vmatpush1.msra.mxu0 0.0
        %1415 = vmatprep.subr.mxu0 0.0
        %1416 = vmatpush1.msra.mxu0 0.0
        %1417 = vmatprep.subr.mxu0 0.0
        %1418 = vmatpush1.msra.mxu0 0.0
        %1419 = vmatprep.subr.mxu0 0.0
        %1420 = vmatpush1.msra.mxu0 0.0
        %1421 = vmatprep.subr.mxu0 0.0
        %1422 = vmatpush1.msra.mxu0 0.0
        %1423 = vmatprep.subr.mxu0 0.0
        %1424 = vmatpush1.msra.mxu0 0.0
        %1425 = vmatprep.subr.mxu0 0.0
        %1426 = vmatpush1.msra.mxu0 0.0
        %1427 = vmatprep.subr.mxu0 0.0
        %1428 = vmatpush1.msra.mxu0 0.0
        %1429 = vmatprep.subr.mxu0 0.0
        %1430 = vmatpush1.msra.mxu0 0.0
        %1431 = vmatprep.subr.mxu0 0.0
        %1432 = vmatpush1.msra.mxu0 0.0
        %1433 = vmatprep.subr.mxu0 0.0
        %1434 = vmatpush1.msra.mxu0 0.0
        %1435 = vmatprep.subr.mxu0 0.0
        %1436 = vmatpush1.msra.mxu0 0.0
        %1437 = vmatprep.subr.mxu0 0.0
        %1438 = vmatpush1.msra.mxu0 0.0
        %1439 = vmatprep.subr.mxu0 0.0
        %1440 = vmatpush1.msra.mxu0 0.0
        %1441 = vmatprep.subr.mxu0 0.0
        %1442 = vmatpush1.msra.mxu0 0.0
        %1443 = vmatprep.subr.mxu0 0.0
        %1444 = vmatpush1.msra.mxu0 0.0
        %1445 = vmatprep.subr.mxu0 0.0
        %1446 = vmatpush1.msra.mxu0 0.0
        %1447 = vmatprep.subr.mxu0 0.0
        %1448 = vmatpush1.msra.mxu0 0.0
        %1449 = vmatprep.subr.mxu0 0.0
        %1450 = vmatpush1.msra.mxu0 0.0
        %1451 = vmatprep.subr.mxu0 0.0
        %1452 = vmatpush1.msra.mxu0 0.0
        %1453 = vmatprep.mubr.f32.mxu0 0.0
        %1454 = vmatmul.mubr.f32.gmra.mrb[0].mxu0 %v1381
        %v1455 = vpop.f32.mrb[0].mxu0
        %v1456 = vadd.f32 %v1378, %v1455
        %v1457 = vpop.f32.mrb[0].mxu0
        %1458 = vmatprep.mubr.f32.mxu0 0.0
        %1459 = vmatmul.mubr.f32.gmra.mrb[0].mxu0 %v1384
        %v1460 = vpop.f32.mrb[0].mxu0
        %v1461 = vadd.f32 %v1378, %v1460
        %v1462 = vpop.f32.mrb[0].mxu0
        %1463 = vmatprep.mubr.f32.mxu0 0.0
        %1464 = vmatmul.mubr.f32.gmra.mrb[0].mxu0 %v1387
        %v1465 = vpop.f32.mrb[0].mxu0
        %v1466 = vadd.f32 %v1378, %v1465
        %v1467 = vpop.f32.mrb[0].mxu0
        %1468 = vdwg.mxu0
        %v1469 = vmul.f32 %v1456, 1.702
        %v1470 = vmul.f32 %v1461, 1.702
        %v1471 = vmul.f32 %v1466, 1.702
        %v1472 = vxor.u32 %v1469, 2147483648
        %v1473 = vxor.u32 %v1470, 2147483648
        %v1474 = vxor.u32 %v1471, 2147483648
        %v1475 = vmul.f32 %v1472, 1.442695
        %v1476 = vpow.pop %v1475
        %v1477 = vmul.f32 %v1473, 1.442695
        %v1478 = vpow.pop %v1477
        %v1479 = vmul.f32 %v1474, 1.442695
        %v1480 = vpow.pop %v1479
        %v1481 = vadd.f32 %v1476, 1.0
        %v1482 = vadd.f32 %v1478, 1.0
        %v1483 = vadd.f32 %v1480, 1.0
        %v1484 = vrcp.pop %v1481
        %v1485 = vmul.f32 1.0, %v1484
        %v1486 = vrcp.pop %v1482
        %v1487 = vmul.f32 1.0, %v1486
        %v1488 = vrcp.pop %v1483
        %v1489 = vmul.f32 1.0, %v1488
        %v1490 = vmul.f32 %v1456, %v1485
        %v1491 = vmul.f32 %v1461, %v1487
        %v1492 = vmul.f32 %v1466, %v1489
        %v1493 = vld [vmem:[%s13] sm:$0xff]
        %v1494 = vld [vmem:[%s13 + $0x8] sm:$0xff]
        %v1495 = vld [vmem:[%s13 + $0x10] sm:$0xff]
        %v1496 = vld [vmem:[%s13 + $0x18] sm:$0xff]
        %v1497 = vld [vmem:[%s13 + $0x20] sm:$0xff]
        %v1498 = vld [vmem:[%s13 + $0x28] sm:$0xff]
        %v1499 = vld [vmem:[%s13 + $0x30] sm:$0xff]
        %v1500 = vld [vmem:[%s13 + $0x38] sm:$0xff]
        %v1501 = vld [vmem:[%s13 + $0x40] sm:$0xff]
        %v1502 = vld [vmem:[%s13 + $0x48] sm:$0xff]
        %v1503 = vld [vmem:[%s13 + $0x50] sm:$0xff]
        %v1504 = vld [vmem:[%s13 + $0x58] sm:$0xff]
        %v1505 = vld [vmem:[%s13 + $0x60] sm:$0xff]
        %v1506 = vld [vmem:[%s13 + $0x68] sm:$0xff]
        %v1507 = vld [vmem:[%s13 + $0x70] sm:$0xff]
        %v1508 = vld [vmem:[%s13 + $0x78] sm:$0xff]
        %1509 = vmatprep.subr.mxu0 0.0
        %1510 = vmatpush1.msra.mxu0 %v1493
        %1511 = vmatprep.subr.mxu0 0.0
        %1512 = vmatpush1.msra.mxu0 %v1494
        %1513 = vmatprep.subr.mxu0 0.0
        %1514 = vmatpush1.msra.mxu0 %v1495
        %1515 = vmatprep.subr.mxu0 0.0
        %1516 = vmatpush1.msra.mxu0 %v1496
        %1517 = vmatprep.subr.mxu0 0.0
        %1518 = vmatpush1.msra.mxu0 %v1497
        %1519 = vmatprep.subr.mxu0 0.0
        %1520 = vmatpush1.msra.mxu0 %v1498
        %1521 = vmatprep.subr.mxu0 0.0
        %1522 = vmatpush1.msra.mxu0 %v1499
        %1523 = vmatprep.subr.mxu0 0.0
        %1524 = vmatpush1.msra.mxu0 %v1500
        %1525 = vmatprep.subr.mxu0 0.0
        %1526 = vmatpush1.msra.mxu0 %v1501
        %1527 = vmatprep.subr.mxu0 0.0
        %1528 = vmatpush1.msra.mxu0 %v1502
        %1529 = vmatprep.subr.mxu0 0.0
        %1530 = vmatpush1.msra.mxu0 %v1503
        %1531 = vmatprep.subr.mxu0 0.0
        %1532 = vmatpush1.msra.mxu0 %v1504
        %1533 = vmatprep.subr.mxu0 0.0
        %1534 = vmatpush1.msra.mxu0 %v1505
        %1535 = vmatprep.subr.mxu0 0.0
        %1536 = vmatpush1.msra.mxu0 %v1506
        %1537 = vmatprep.subr.mxu0 0.0
        %1538 = vmatpush1.msra.mxu0 %v1507
        %1539 = vmatprep.subr.mxu0 0.0
        %1540 = vmatpush1.msra.mxu0 %v1508
        %1541 = vmatprep.subr.mxu0 0.0
        %1542 = vmatpush1.msra.mxu0 0.0
        %1543 = vmatprep.subr.mxu0 0.0
        %1544 = vmatpush1.msra.mxu0 0.0
        %1545 = vmatprep.subr.mxu0 0.0
        %1546 = vmatpush1.msra.mxu0 0.0
        %1547 = vmatprep.subr.mxu0 0.0
        %1548 = vmatpush1.msra.mxu0 0.0
        %1549 = vmatprep.subr.mxu0 0.0
        %1550 = vmatpush1.msra.mxu0 0.0
        %1551 = vmatprep.subr.mxu0 0.0
        %1552 = vmatpush1.msra.mxu0 0.0
        %1553 = vmatprep.subr.mxu0 0.0
        %1554 = vmatpush1.msra.mxu0 0.0
        %1555 = vmatprep.subr.mxu0 0.0
        %1556 = vmatpush1.msra.mxu0 0.0
        %1557 = vmatprep.subr.mxu0 0.0
        %1558 = vmatpush1.msra.mxu0 0.0
        %1559 = vmatprep.subr.mxu0 0.0
        %1560 = vmatpush1.msra.mxu0 0.0
        %1561 = vmatprep.subr.mxu0 0.0
        %1562 = vmatpush1.msra.mxu0 0.0
        %1563 = vmatprep.subr.mxu0 0.0
        %1564 = vmatpush1.msra.mxu0 0.0
        %1565 = vmatprep.subr.mxu0 0.0
        %1566 = vmatpush1.msra.mxu0 0.0
        %1567 = vmatprep.subr.mxu0 0.0
        %1568 = vmatpush1.msra.mxu0 0.0
        %1569 = vmatprep.subr.mxu0 0.0
        %1570 = vmatpush1.msra.mxu0 0.0
        %1571 = vmatprep.subr.mxu0 0.0
        %1572 = vmatpush1.msra.mxu0 0.0
        %1573 = vmatprep.mubr.f32.mxu0 0.0
        %1574 = vmatmul.mubr.f32.gmra.mrb[0].mxu0 %v1490
        %v1575 = vpop.f32.mrb[0].mxu0
        %v1576 = vadd.f32 0.0, %v1575
        %v1577 = vpop.f32.mrb[0].mxu0
        %1578 = vmatprep.mubr.f32.mxu0 0.0
        %1579 = vmatmul.mubr.f32.gmra.mrb[0].mxu0 %v1491
        %v1580 = vpop.f32.mrb[0].mxu0
        %v1581 = vadd.f32 0.0, %v1580
        %v1582 = vpop.f32.mrb[0].mxu0
        %1583 = vmatprep.mubr.f32.mxu0 0.0
        %1584 = vmatmul.mubr.f32.gmra.mrb[0].mxu0 %v1492
        %v1585 = vpop.f32.mrb[0].mxu0
        %v1586 = vadd.f32 0.0, %v1585
        %v1587 = vpop.f32.mrb[0].mxu0
        %1588 = vdwg.mxu0
        %v1589 = vadd.f32 %v1307, %v1576
        %v1590 = vadd.f32 %v1308, %v1581
        %v1591 = vadd.f32 %v1309, %v1586
        %v1592 = vld [vmem:[%s14] sm:$0x1]
        %v1594 = vlaneseq
        %v1595 = vshrl.u32 %v1594, 7
        %v1596 = vsub.s32 0, %v1595
        %v1597 = vrot.slane %v1592, %v1596
        %v1599 = vadd.f32 %v1589, %v1597
        %v1600 = vadd.f32 %v1590, %v1597
        %v1601 = vadd.f32 %v1591, %v1597
        %s1602 = scalar_lea.vmem %s3, 1
        %v1603 = vld [vmem:[%s1602] sm:$0x1]
        %s1604 = scalar_lea.vmem %s4, 1
        %v1605 = vld [vmem:[%s1604] sm:$0x1]
        %v1606 = vsel %vm561, %v1599, 0.0
        %1607 = vadd.xlane.f32.xlu0 %v1606
        %v1608 = vpop.xlane.xlu0 %1607
        %v1609 = vsel %vm561, %v1600, 0.0
        %1610 = vadd.xlane.f32.xlu0 %v1609
        %v1611 = vpop.xlane.xlu0 %1610
        %v1612 = vsel %vm561, %v1601, 0.0
        %1613 = vadd.xlane.f32.xlu0 %v1612
        %v1614 = vpop.xlane.xlu0 %1613
        %v1615 = vmul.f32 %v1608, %v571
        %v1616 = vmul.f32 %v1611, %v571
        %v1617 = vmul.f32 %v1614, %v571
        %v1618 = vsub.f32 %v1599, %v1615
        %v1619 = vsub.f32 %v1600, %v1616
        %v1620 = vsub.f32 %v1601, %v1617
        %v1621 = vmul.f32 %v1618, %v1618
        %v1622 = vmul.f32 %v1619, %v1619
        %v1623 = vmul.f32 %v1620, %v1620
        %v1624 = vsel %vm561, %v1621, 0.0
        %1625 = vadd.xlane.f32.xlu0 %v1624
        %v1626 = vpop.xlane.xlu0 %1625
        %v1627 = vsel %vm561, %v1622, 0.0
        %1628 = vadd.xlane.f32.xlu0 %v1627
        %v1629 = vpop.xlane.xlu0 %1628
        %v1630 = vsel %vm561, %v1623, 0.0
        %1631 = vadd.xlane.f32.xlu0 %v1630
        %v1632 = vpop.xlane.xlu0 %1631
        %v1633 = vmul.f32 %v1626, %v571
        %v1634 = vmul.f32 %v1629, %v571
        %v1635 = vmul.f32 %v1632, %v571
        %v1636 = vadd.f32 %v1633, 1e-05
        %v1637 = vadd.f32 %v1634, 1e-05
        %v1638 = vadd.f32 %v1635, 1e-05
        %v1639 = vrsqrt.pop %v1636
        %v1640 = vrsqrt.pop %v1637
        %v1641 = vrsqrt.pop %v1638
        %v1642 = vmul.f32 %v1618, %v1639
        %v1643 = vmul.f32 %v1619, %v1640
        %v1644 = vmul.f32 %v1620, %v1641
        %v1646 = vlaneseq
        %v1647 = vshrl.u32 %v1646, 7
        %v1648 = vsub.s32 0, %v1647
        %v1649 = vrot.slane %v1603, %v1648
        %v1651 = vmul.f32 %v1642, %v1649
        %v1652 = vmul.f32 %v1643, %v1649
        %v1653 = vmul.f32 %v1644, %v1649
        %v1655 = vlaneseq
        %v1656 = vshrl.u32 %v1655, 7
        %v1657 = vsub.s32 0, %v1656
        %v1658 = vrot.slane %v1605, %v1657
        %v1660 = vadd.f32 %v1651, %v1658
        %v1661 = vadd.f32 %v1652, %v1658
        %v1662 = vadd.f32 %v1653, %v1658
        %s1663 = scalar_lea.vmem %s5, 32
        %v1664 = vld [vmem:[%s1663] sm:$0xff]
        %v1665 = vld [vmem:[%s1663 + $0x8] sm:$0xff]
        %v1666 = vld [vmem:[%s1663 + $0x10] sm:$0xff]
        %v1667 = vld [vmem:[%s1663 + $0x18] sm:$0xff]
        %s1668 = scalar_lea.vmem %s6, 1
        %v1669 = vld [vmem:[%s1668] sm:$0x1]
        %v1671 = vlaneseq
        %v1672 = vshrl.u32 %v1671, 7
        %v1673 = vsub.s32 0, %v1672
        %v1674 = vrot.slane %v1669, %v1673
        %v1677 = vsel %vm561, %v1660, 0
        %v1680 = vsel %vm561, %v1661, 0
        %v1683 = vsel %vm561, %v1662, 0
        %1685 = vmatprep.subr.mxu0 0.0
        %1686 = vmatpush1.msra.mxu0 %v1664
        %1687 = vmatprep.subr.mxu0 0.0
        %1688 = vmatpush1.msra.mxu0 %v1665
        %1689 = vmatprep.subr.mxu0 0.0
        %1690 = vmatpush1.msra.mxu0 %v1666
        %1691 = vmatprep.subr.mxu0 0.0
        %1692 = vmatpush1.msra.mxu0 %v1667
        %1693 = vmatprep.subr.mxu0 0.0
        %1694 = vmatpush1.msra.mxu0 0.0
        %1695 = vmatprep.subr.mxu0 0.0
        %1696 = vmatpush1.msra.mxu0 0.0
        %1697 = vmatprep.subr.mxu0 0.0
        %1698 = vmatpush1.msra.mxu0 0.0
        %1699 = vmatprep.subr.mxu0 0.0
        %1700 = vmatpush1.msra.mxu0 0.0
        %1701 = vmatprep.subr.mxu0 0.0
        %1702 = vmatpush1.msra.mxu0 0.0
        %1703 = vmatprep.subr.mxu0 0.0
        %1704 = vmatpush1.msra.mxu0 0.0
        %1705 = vmatprep.subr.mxu0 0.0
        %1706 = vmatpush1.msra.mxu0 0.0
        %1707 = vmatprep.subr.mxu0 0.0
        %1708 = vmatpush1.msra.mxu0 0.0
        %1709 = vmatprep.subr.mxu0 0.0
        %1710 = vmatpush1.msra.mxu0 0.0
        %1711 = vmatprep.subr.mxu0 0.0
        %1712 = vmatpush1.msra.mxu0 0.0
        %1713 = vmatprep.subr.mxu0 0.0
        %1714 = vmatpush1.msra.mxu0 0.0
        %1715 = vmatprep.subr.mxu0 0.0
        %1716 = vmatpush1.msra.mxu0 0.0
        %1717 = vmatprep.subr.mxu0 0.0
        %1718 = vmatpush1.msra.mxu0 0.0
        %1719 = vmatprep.subr.mxu0 0.0
        %1720 = vmatpush1.msra.mxu0 0.0
        %1721 = vmatprep.subr.mxu0 0.0
        %1722 = vmatpush1.msra.mxu0 0.0
        %1723 = vmatprep.subr.mxu0 0.0
        %1724 = vmatpush1.msra.mxu0 0.0
        %1725 = vmatprep.subr.mxu0 0.0
        %1726 = vmatpush1.msra.mxu0 0.0
        %1727 = vmatprep.subr.mxu0 0.0
        %1728 = vmatpush1.msra.mxu0 0.0
        %1729 = vmatprep.subr.mxu0 0.0
        %1730 = vmatpush1.msra.mxu0 0.0
        %1731 = vmatprep.subr.mxu0 0.0
        %1732 = vmatpush1.msra.mxu0 0.0
        %1733 = vmatprep.subr.mxu0 0.0
        %1734 = vmatpush1.msra.mxu0 0.0
        %1735 = vmatprep.subr.mxu0 0.0
        %1736 = vmatpush1.msra.mxu0 0.0
        %1737 = vmatprep.subr.mxu0 0.0
        %1738 = vmatpush1.msra.mxu0 0.0
        %1739 = vmatprep.subr.mxu0 0.0
        %1740 = vmatpush1.msra.mxu0 0.0
        %1741 = vmatprep.subr.mxu0 0.0
        %1742 = vmatpush1.msra.mxu0 0.0
        %1743 = vmatprep.subr.mxu0 0.0
        %1744 = vmatpush1.msra.mxu0 0.0
        %1745 = vmatprep.subr.mxu0 0.0
        %1746 = vmatpush1.msra.mxu0 0.0
        %1747 = vmatprep.subr.mxu0 0.0
        %1748 = vmatpush1.msra.mxu0 0.0
        %1749 = vmatprep.mubr.f32.mxu0 0.0
        %1750 = vmatmul.mubr.f32.gmra.mrb[0].mxu0 %v1677
        %v1751 = vpop.f32.mrb[0].mxu0
        %v1752 = vadd.f32 %v1674, %v1751
        %v1753 = vpop.f32.mrb[0].mxu0
        %1754 = vmatprep.mubr.f32.mxu0 0.0
        %1755 = vmatmul.mubr.f32.gmra.mrb[0].mxu0 %v1680
        %v1756 = vpop.f32.mrb[0].mxu0
        %v1757 = vadd.f32 %v1674, %v1756
        %v1758 = vpop.f32.mrb[0].mxu0
        %1759 = vmatprep.mubr.f32.mxu0 0.0
        %1760 = vmatmul.mubr.f32.gmra.mrb[0].mxu0 %v1683
        %v1761 = vpop.f32.mrb[0].mxu0
        %v1762 = vadd.f32 %v1674, %v1761
        %v1763 = vpop.f32.mrb[0].mxu0
        %1764 = vdwg.mxu0
        %1768 = vrot.lane.b32.xlu0 %v1752, 96
        %v1769 = vpop.permute.xlu0 %1768
        %1770 = vrot.lane.b32.xlu0 %v1757, 96
        %v1771 = vpop.permute.xlu0 %1770
        %1772 = vrot.lane.b32.xlu0 %v1762, 96
        %v1773 = vpop.permute.xlu0 %1772
        %v1774 = vsel %vm729, %v1752, 0
        %v1776 = vsel %vm729, %v1757, 0
        %v1778 = vsel %vm729, %v1762, 0
        %v1780 = vsel %vm729, %v1769, 0
        %v1782 = vsel %vm729, %v1771, 0
        %v1784 = vsel %vm729, %v1773, 0
        %1786 = vmatprep.subr.mxu0 0.0
        %1787 = vmatpush1.xpose.msra.mxu0 %v1780
        %1788 = vmatprep.subr.mxu0 0.0
        %1789 = vmatpush1.xpose.msra.mxu0 %v1782
        %1790 = vmatprep.subr.mxu0 0.0
        %1791 = vmatpush1.xpose.msra.mxu0 %v1784
        %1792 = vmatprep.subr.mxu0 0.0
        %1793 = vmatpush1.xpose.msra.mxu0 0.0
        %1794 = vmatprep.subr.mxu0 0.0
        %1795 = vmatpush1.xpose.msra.mxu0 0.0
        %1796 = vmatprep.subr.mxu0 0.0
        %1797 = vmatpush1.xpose.msra.mxu0 0.0
        %1798 = vmatprep.subr.mxu0 0.0
        %1799 = vmatpush1.xpose.msra.mxu0 0.0
        %1800 = vmatprep.subr.mxu0 0.0
        %1801 = vmatpush1.xpose.msra.mxu0 0.0
        %1802 = vmatprep.subr.mxu0 0.0
        %1803 = vmatpush1.xpose.msra.mxu0 0.0
        %1804 = vmatprep.subr.mxu0 0.0
        %1805 = vmatpush1.xpose.msra.mxu0 0.0
        %1806 = vmatprep.subr.mxu0 0.0
        %1807 = vmatpush1.xpose.msra.mxu0 0.0
        %1808 = vmatprep.subr.mxu0 0.0
        %1809 = vmatpush1.xpose.msra.mxu0 0.0
        %1810 = vmatprep.subr.mxu0 0.0
        %1811 = vmatpush1.xpose.msra.mxu0 0.0
        %1812 = vmatprep.subr.mxu0 0.0
        %1813 = vmatpush1.xpose.msra.mxu0 0.0
        %1814 = vmatprep.subr.mxu0 0.0
        %1815 = vmatpush1.xpose.msra.mxu0 0.0
        %1816 = vmatprep.subr.mxu0 0.0
        %1817 = vmatpush1.xpose.msra.mxu0 0.0
        %1818 = vmatprep.subr.mxu0 0.0
        %1819 = vmatpush1.xpose.msra.mxu0 0.0
        %1820 = vmatprep.subr.mxu0 0.0
        %1821 = vmatpush1.xpose.msra.mxu0 0.0
        %1822 = vmatprep.subr.mxu0 0.0
        %1823 = vmatpush1.xpose.msra.mxu0 0.0
        %1824 = vmatprep.subr.mxu0 0.0
        %1825 = vmatpush1.xpose.msra.mxu0 0.0
        %1826 = vmatprep.subr.mxu0 0.0
        %1827 = vmatpush1.xpose.msra.mxu0 0.0
        %1828 = vmatprep.subr.mxu0 0.0
        %1829 = vmatpush1.xpose.msra.mxu0 0.0
        %1830 = vmatprep.subr.mxu0 0.0
        %1831 = vmatpush1.xpose.msra.mxu0 0.0
        %1832 = vmatprep.subr.mxu0 0.0
        %1833 = vmatpush1.xpose.msra.mxu0 0.0
        %1834 = vmatprep.subr.mxu0 0.0
        %1835 = vmatpush1.xpose.msra.mxu0 0.0
        %1836 = vmatprep.subr.mxu0 0.0
        %1837 = vmatpush1.xpose.msra.mxu0 0.0
        %1838 = vmatprep.subr.mxu0 0.0
        %1839 = vmatpush1.xpose.msra.mxu0 0.0
        %1840 = vmatprep.subr.mxu0 0.0
        %1841 = vmatpush1.xpose.msra.mxu0 0.0
        %1842 = vmatprep.subr.mxu0 0.0
        %1843 = vmatpush1.xpose.msra.mxu0 0.0
        %1844 = vmatprep.subr.mxu0 0.0
        %1845 = vmatpush1.xpose.msra.mxu0 0.0
        %1846 = vmatprep.subr.mxu0 0.0
        %1847 = vmatpush1.xpose.msra.mxu0 0.0
        %1848 = vmatprep.subr.mxu0 0.0
        %1849 = vmatpush1.xpose.msra.mxu0 0.0
        %1850 = vmatprep.mubr.f32.mxu0 0.0
        %1851 = vmatmul.mubr.f32.gmra.mrb[0].mxu0 %v1774
        %v1852 = vpop.f32.mrb[0].mxu0
        %v1853 = vadd.f32 %v556, %v1852
        %v1854 = vpop.f32.mrb[0].mxu0
        %1855 = vmatprep.mubr.f32.mxu0 0.0
        %1856 = vmatmul.mubr.f32.gmra.mrb[0].mxu0 %v1776
        %v1857 = vpop.f32.mrb[0].mxu0
        %v1858 = vadd.f32 %v557, %v1857
        %v1859 = vpop.f32.mrb[0].mxu0
        %1860 = vmatprep.mubr.f32.mxu0 0.0
        %1861 = vmatmul.mubr.f32.gmra.mrb[0].mxu0 %v1778
        %v1862 = vpop.f32.mrb[0].mxu0
        %v1863 = vadd.f32 %v558, %v1862
        %v1864 = vpop.f32.mrb[0].mxu0
        %1865 = vdwg.mxu0
        %v1866 = vsel %vm822, %v1853, -inf
        %1867 = vmax.xlane.f32.xlu0 %v1866
        %v1868 = vpop.xlane.xlu0 %1867
        %v1869 = vsel %vm822, %v1858, -inf
        %1870 = vmax.xlane.f32.xlu0 %v1869
        %v1871 = vpop.xlane.xlu0 %1870
        %v1872 = vsel %vm822, %v1863, -inf
        %1873 = vmax.xlane.f32.xlu0 %v1872
        %v1874 = vpop.xlane.xlu0 %1873
        %v1875 = vsub.f32 %v1853, %v1868
        %v1876 = vsub.f32 %v1858, %v1871
        %v1877 = vsub.f32 %v1863, %v1874
        %v1878 = vmul.f32 %v1875, 1.442695
        %v1879 = vpow.pop %v1878
        %v1880 = vmul.f32 %v1876, 1.442695
        %v1881 = vpow.pop %v1880
        %v1882 = vmul.f32 %v1877, 1.442695
        %v1883 = vpow.pop %v1882
        %v1884 = vsel %vm822, %v1879, 0.0
        %1885 = vadd.xlane.f32.xlu0 %v1884
        %v1886 = vpop.xlane.xlu0 %1885
        %v1887 = vsel %vm822, %v1881, 0.0
        %1888 = vadd.xlane.f32.xlu0 %v1887
        %v1889 = vpop.xlane.xlu0 %1888
        %v1890 = vsel %vm822, %v1883, 0.0
        %1891 = vadd.xlane.f32.xlu0 %v1890
        %v1892 = vpop.xlane.xlu0 %1891
        %v1893 = vrcp.pop %v1886
        %v1894 = vrcp.pop %v1889
        %v1895 = vrcp.pop %v1892
        %v1896 = vmul.f32 %v1879, %v1893
        %v1897 = vmul.f32 %v1881, %v1894
        %v1898 = vmul.f32 %v1883, %v1895
        %1899 = vrot.lane.b32.xlu0 %v1752, 64
        %v1900 = vpop.permute.xlu0 %1899
        %1901 = vrot.lane.b32.xlu0 %v1757, 64
        %v1902 = vpop.permute.xlu0 %1901
        %1903 = vrot.lane.b32.xlu0 %v1762, 64
        %v1904 = vpop.permute.xlu0 %1903
        %v1909 = vsel %vm822, %v1896, 0
        %v1912 = vsel %vm822, %v1897, 0
        %v1915 = vsel %vm822, %v1898, 0
        %1917 = vmatprep.subr.mxu0 0.0
        %1918 = vmatpush1.msra.mxu0 %v1900
        %1919 = vmatprep.subr.mxu0 0.0
        %1920 = vmatpush1.msra.mxu0 %v1902
        %1921 = vmatprep.subr.mxu0 0.0
        %1922 = vmatpush1.msra.mxu0 %v1904
        %1923 = vmatprep.subr.mxu0 0.0
        %1924 = vmatpush1.msra.mxu0 0.0
        %1925 = vmatprep.subr.mxu0 0.0
        %1926 = vmatpush1.msra.mxu0 0.0
        %1927 = vmatprep.subr.mxu0 0.0
        %1928 = vmatpush1.msra.mxu0 0.0
        %1929 = vmatprep.subr.mxu0 0.0
        %1930 = vmatpush1.msra.mxu0 0.0
        %1931 = vmatprep.subr.mxu0 0.0
        %1932 = vmatpush1.msra.mxu0 0.0
        %1933 = vmatprep.subr.mxu0 0.0
        %1934 = vmatpush1.msra.mxu0 0.0
        %1935 = vmatprep.subr.mxu0 0.0
        %1936 = vmatpush1.msra.mxu0 0.0
        %1937 = vmatprep.subr.mxu0 0.0
        %1938 = vmatpush1.msra.mxu0 0.0
        %1939 = vmatprep.subr.mxu0 0.0
        %1940 = vmatpush1.msra.mxu0 0.0
        %1941 = vmatprep.subr.mxu0 0.0
        %1942 = vmatpush1.msra.mxu0 0.0
        %1943 = vmatprep.subr.mxu0 0.0
        %1944 = vmatpush1.msra.mxu0 0.0
        %1945 = vmatprep.subr.mxu0 0.0
        %1946 = vmatpush1.msra.mxu0 0.0
        %1947 = vmatprep.subr.mxu0 0.0
        %1948 = vmatpush1.msra.mxu0 0.0
        %1949 = vmatprep.subr.mxu0 0.0
        %1950 = vmatpush1.msra.mxu0 0.0
        %1951 = vmatprep.subr.mxu0 0.0
        %1952 = vmatpush1.msra.mxu0 0.0
        %1953 = vmatprep.subr.mxu0 0.0
        %1954 = vmatpush1.msra.mxu0 0.0
        %1955 = vmatprep.subr.mxu0 0.0
        %1956 = vmatpush1.msra.mxu0 0.0
        %1957 = vmatprep.subr.mxu0 0.0
        %1958 = vmatpush1.msra.mxu0 0.0
        %1959 = vmatprep.subr.mxu0 0.0
        %1960 = vmatpush1.msra.mxu0 0.0
        %1961 = vmatprep.subr.mxu0 0.0
        %1962 = vmatpush1.msra.mxu0 0.0
        %1963 = vmatprep.subr.mxu0 0.0
        %1964 = vmatpush1.msra.mxu0 0.0
        %1965 = vmatprep.subr.mxu0 0.0
        %1966 = vmatpush1.msra.mxu0 0.0
        %1967 = vmatprep.subr.mxu0 0.0
        %1968 = vmatpush1.msra.mxu0 0.0
        %1969 = vmatprep.subr.mxu0 0.0
        %1970 = vmatpush1.msra.mxu0 0.0
        %1971 = vmatprep.subr.mxu0 0.0
        %1972 = vmatpush1.msra.mxu0 0.0
        %1973 = vmatprep.subr.mxu0 0.0
        %1974 = vmatpush1.msra.mxu0 0.0
        %1975 = vmatprep.subr.mxu0 0.0
        %1976 = vmatpush1.msra.mxu0 0.0
        %1977 = vmatprep.subr.mxu0 0.0
        %1978 = vmatpush1.msra.mxu0 0.0
        %1979 = vmatprep.subr.mxu0 0.0
        %1980 = vmatpush1.msra.mxu0 0.0
        %1981 = vmatprep.mubr.f32.mxu0 0.0
        %1982 = vmatmul.mubr.f32.gmra.mrb[0].mxu0 %v1909
        %v1983 = vpop.f32.mrb[0].mxu0
        %v1984 = vadd.f32 0.0, %v1983
        %v1985 = vpop.f32.mrb[0].mxu0
        %1986 = vmatprep.mubr.f32.mxu0 0.0
        %1987 = vmatmul.mubr.f32.gmra.mrb[0].mxu0 %v1912
        %v1988 = vpop.f32.mrb[0].mxu0
        %v1989 = vadd.f32 0.0, %v1988
        %v1990 = vpop.f32.mrb[0].mxu0
        %1991 = vmatprep.mubr.f32.mxu0 0.0
        %1992 = vmatmul.mubr.f32.gmra.mrb[0].mxu0 %v1915
        %v1993 = vpop.f32.mrb[0].mxu0
        %v1994 = vadd.f32 0.0, %v1993
        %v1995 = vpop.f32.mrb[0].mxu0
        %1996 = vdwg.mxu0
        %1997 = vrot.lane.b32.xlu0 %v1752, 112
        %v1998 = vpop.permute.xlu0 %1997
        %1999 = vrot.lane.b32.xlu0 %v1757, 112
        %v2000 = vpop.permute.xlu0 %1999
        %2001 = vrot.lane.b32.xlu0 %v1762, 112
        %v2002 = vpop.permute.xlu0 %2001
        %2003 = vrot.lane.b32.xlu0 %v1752, 80
        %v2004 = vpop.permute.xlu0 %2003
        %2005 = vrot.lane.b32.xlu0 %v1757, 80
        %v2006 = vpop.permute.xlu0 %2005
        %2007 = vrot.lane.b32.xlu0 %v1762, 80
        %v2008 = vpop.permute.xlu0 %2007
        %v2009 = vsel %vm729, %v1998, 0
        %v2011 = vsel %vm729, %v2000, 0
        %v2013 = vsel %vm729, %v2002, 0
        %v2015 = vsel %vm729, %v2004, 0
        %v2017 = vsel %vm729, %v2006, 0
        %v2019 = vsel %vm729, %v2008, 0
        %2021 = vmatprep.subr.mxu0 0.0
        %2022 = vmatpush1.xpose.msra.mxu0 %v2015
        %2023 = vmatprep.subr.mxu0 0.0
        %2024 = vmatpush1.xpose.msra.mxu0 %v2017
        %2025 = vmatprep.subr.mxu0 0.0
        %2026 = vmatpush1.xpose.msra.mxu0 %v2019
        %2027 = vmatprep.subr.mxu0 0.0
        %2028 = vmatpush1.xpose.msra.mxu0 0.0
        %2029 = vmatprep.subr.mxu0 0.0
        %2030 = vmatpush1.xpose.msra.mxu0 0.0
        %2031 = vmatprep.subr.mxu0 0.0
        %2032 = vmatpush1.xpose.msra.mxu0 0.0
        %2033 = vmatprep.subr.mxu0 0.0
        %2034 = vmatpush1.xpose.msra.mxu0 0.0
        %2035 = vmatprep.subr.mxu0 0.0
        %2036 = vmatpush1.xpose.msra.mxu0 0.0
        %2037 = vmatprep.subr.mxu0 0.0
        %2038 = vmatpush1.xpose.msra.mxu0 0.0
        %2039 = vmatprep.subr.mxu0 0.0
        %2040 = vmatpush1.xpose.msra.mxu0 0.0
        %2041 = vmatprep.subr.mxu0 0.0
        %2042 = vmatpush1.xpose.msra.mxu0 0.0
        %2043 = vmatprep.subr.mxu0 0.0
        %2044 = vmatpush1.xpose.msra.mxu0 0.0
        %2045 = vmatprep.subr.mxu0 0.0
        %2046 = vmatpush1.xpose.msra.mxu0 0.0
        %2047 = vmatprep.subr.mxu0 0.0
        %2048 = vmatpush1.xpose.msra.mxu0 0.0
        %2049 = vmatprep.subr.mxu0 0.0
        %2050 = vmatpush1.xpose.msra.mxu0 0.0
        %2051 = vmatprep.subr.mxu0 0.0
        %2052 = vmatpush1.xpose.msra.mxu0 0.0
        %2053 = vmatprep.subr.mxu0 0.0
        %2054 = vmatpush1.xpose.msra.mxu0 0.0
        %2055 = vmatprep.subr.mxu0 0.0
        %2056 = vmatpush1.xpose.msra.mxu0 0.0
        %2057 = vmatprep.subr.mxu0 0.0
        %2058 = vmatpush1.xpose.msra.mxu0 0.0
        %2059 = vmatprep.subr.mxu0 0.0
        %2060 = vmatpush1.xpose.msra.mxu0 0.0
        %2061 = vmatprep.subr.mxu0 0.0
        %2062 = vmatpush1.xpose.msra.mxu0 0.0
        %2063 = vmatprep.subr.mxu0 0.0
        %2064 = vmatpush1.xpose.msra.mxu0 0.0
        %2065 = vmatprep.subr.mxu0 0.0
        %2066 = vmatpush1.xpose.msra.mxu0 0.0
        %2067 = vmatprep.subr.mxu0 0.0
        %2068 = vmatpush1.xpose.msra.mxu0 0.0
        %2069 = vmatprep.subr.mxu0 0.0
        %2070 = vmatpush1.xpose.msra.mxu0 0.0
        %2071 = vmatprep.subr.mxu0 0.0
        %2072 = vmatpush1.xpose.msra.mxu0 0.0
        %2073 = vmatprep.subr.mxu0 0.0
        %2074 = vmatpush1.xpose.msra.mxu0 0.0
        %2075 = vmatprep.subr.mxu0 0.0
        %2076 = vmatpush1.xpose.msra.mxu0 0.0
        %2077 = vmatprep.subr.mxu0 0.0
        %2078 = vmatpush1.xpose.msra.mxu0 0.0
        %2079 = vmatprep.subr.mxu0 0.0
        %2080 = vmatpush1.xpose.msra.mxu0 0.0
        %2081 = vmatprep.subr.mxu0 0.0
        %2082 = vmatpush1.xpose.msra.mxu0 0.0
        %2083 = vmatprep.subr.mxu0 0.0
        %2084 = vmatpush1.xpose.msra.mxu0 0.0
        %2085 = vmatprep.mubr.f32.mxu0 0.0
        %2086 = vmatmul.mubr.f32.gmra.mrb[0].mxu0 %v2009
        %v2087 = vpop.f32.mrb[0].mxu0
        %v2088 = vadd.f32 %v556, %v2087
        %v2089 = vpop.f32.mrb[0].mxu0
        %2090 = vmatprep.mubr.f32.mxu0 0.0
        %2091 = vmatmul.mubr.f32.gmra.mrb[0].mxu0 %v2011
        %v2092 = vpop.f32.mrb[0].mxu0
        %v2093 = vadd.f32 %v557, %v2092
        %v2094 = vpop.f32.mrb[0].mxu0
        %2095 = vmatprep.mubr.f32.mxu0 0.0
        %2096 = vmatmul.mubr.f32.gmra.mrb[0].mxu0 %v2013
        %v2097 = vpop.f32.mrb[0].mxu0
        %v2098 = vadd.f32 %v558, %v2097
        %v2099 = vpop.f32.mrb[0].mxu0
        %2100 = vdwg.mxu0
        %v2101 = vsel %vm822, %v2088, -inf
        %2102 = vmax.xlane.f32.xlu0 %v2101
        %v2103 = vpop.xlane.xlu0 %2102
        %v2104 = vsel %vm822, %v2093, -inf
        %2105 = vmax.xlane.f32.xlu0 %v2104
        %v2106 = vpop.xlane.xlu0 %2105
        %v2107 = vsel %vm822, %v2098, -inf
        %2108 = vmax.xlane.f32.xlu0 %v2107
        %v2109 = vpop.xlane.xlu0 %2108
        %v2110 = vsub.f32 %v2088, %v2103
        %v2111 = vsub.f32 %v2093, %v2106
        %v2112 = vsub.f32 %v2098, %v2109
        %v2113 = vmul.f32 %v2110, 1.442695
        %v2114 = vpow.pop %v2113
        %v2115 = vmul.f32 %v2111, 1.442695
        %v2116 = vpow.pop %v2115
        %v2117 = vmul.f32 %v2112, 1.442695
        %v2118 = vpow.pop %v2117
        %v2119 = vsel %vm822, %v2114, 0.0
        %2120 = vadd.xlane.f32.xlu0 %v2119
        %v2121 = vpop.xlane.xlu0 %2120
        %v2122 = vsel %vm822, %v2116, 0.0
        %2123 = vadd.xlane.f32.xlu0 %v2122
        %v2124 = vpop.xlane.xlu0 %2123
        %v2125 = vsel %vm822, %v2118, 0.0
        %2126 = vadd.xlane.f32.xlu0 %v2125
        %v2127 = vpop.xlane.xlu0 %2126
        %v2128 = vrcp.pop %v2121
        %v2129 = vrcp.pop %v2124
        %v2130 = vrcp.pop %v2127
        %v2131 = vmul.f32 %v2114, %v2128
        %v2132 = vmul.f32 %v2116, %v2129
        %v2133 = vmul.f32 %v2118, %v2130
        %2134 = vrot.lane.b32.xlu0 %v1752, 48
        %v2135 = vpop.permute.xlu0 %2134
        %2136 = vrot.lane.b32.xlu0 %v1757, 48
        %v2137 = vpop.permute.xlu0 %2136
        %2138 = vrot.lane.b32.xlu0 %v1762, 48
        %v2139 = vpop.permute.xlu0 %2138
        %v2144 = vsel %vm822, %v2131, 0
        %v2147 = vsel %vm822, %v2132, 0
        %v2150 = vsel %vm822, %v2133, 0
        %2152 = vmatprep.subr.mxu0 0.0
        %2153 = vmatpush1.msra.mxu0 %v2135
        %2154 = vmatprep.subr.mxu0 0.0
        %2155 = vmatpush1.msra.mxu0 %v2137
        %2156 = vmatprep.subr.mxu0 0.0
        %2157 = vmatpush1.msra.mxu0 %v2139
        %2158 = vmatprep.subr.mxu0 0.0
        %2159 = vmatpush1.msra.mxu0 0.0
        %2160 = vmatprep.subr.mxu0 0.0
        %2161 = vmatpush1.msra.mxu0 0.0
        %2162 = vmatprep.subr.mxu0 0.0
        %2163 = vmatpush1.msra.mxu0 0.0
        %2164 = vmatprep.subr.mxu0 0.0
        %2165 = vmatpush1.msra.mxu0 0.0
        %2166 = vmatprep.subr.mxu0 0.0
        %2167 = vmatpush1.msra.mxu0 0.0
        %2168 = vmatprep.subr.mxu0 0.0
        %2169 = vmatpush1.msra.mxu0 0.0
        %2170 = vmatprep.subr.mxu0 0.0
        %2171 = vmatpush1.msra.mxu0 0.0
        %2172 = vmatprep.subr.mxu0 0.0
        %2173 = vmatpush1.msra.mxu0 0.0
        %2174 = vmatprep.subr.mxu0 0.0
        %2175 = vmatpush1.msra.mxu0 0.0
        %2176 = vmatprep.subr.mxu0 0.0
        %2177 = vmatpush1.msra.mxu0 0.0
        %2178 = vmatprep.subr.mxu0 0.0
        %2179 = vmatpush1.msra.mxu0 0.0
        %2180 = vmatprep.subr.mxu0 0.0
        %2181 = vmatpush1.msra.mxu0 0.0
        %2182 = vmatprep.subr.mxu0 0.0
        %2183 = vmatpush1.msra.mxu0 0.0
        %2184 = vmatprep.subr.mxu0 0.0
        %2185 = vmatpush1.msra.mxu0 0.0
        %2186 = vmatprep.subr.mxu0 0.0
        %2187 = vmatpush1.msra.mxu0 0.0
        %2188 = vmatprep.subr.mxu0 0.0
        %2189 = vmatpush1.msra.mxu0 0.0
        %2190 = vmatprep.subr.mxu0 0.0
        %2191 = vmatpush1.msra.mxu0 0.0
        %2192 = vmatprep.subr.mxu0 0.0
        %2193 = vmatpush1.msra.mxu0 0.0
        %2194 = vmatprep.subr.mxu0 0.0
        %2195 = vmatpush1.msra.mxu0 0.0
        %2196 = vmatprep.subr.mxu0 0.0
        %2197 = vmatpush1.msra.mxu0 0.0
        %2198 = vmatprep.subr.mxu0 0.0
        %2199 = vmatpush1.msra.mxu0 0.0
        %2200 = vmatprep.subr.mxu0 0.0
        %2201 = vmatpush1.msra.mxu0 0.0
        %2202 = vmatprep.subr.mxu0 0.0
        %2203 = vmatpush1.msra.mxu0 0.0
        %2204 = vmatprep.subr.mxu0 0.0
        %2205 = vmatpush1.msra.mxu0 0.0
        %2206 = vmatprep.subr.mxu0 0.0
        %2207 = vmatpush1.msra.mxu0 0.0
        %2208 = vmatprep.subr.mxu0 0.0
        %2209 = vmatpush1.msra.mxu0 0.0
        %2210 = vmatprep.subr.mxu0 0.0
        %2211 = vmatpush1.msra.mxu0 0.0
        %2212 = vmatprep.subr.mxu0 0.0
        %2213 = vmatpush1.msra.mxu0 0.0
        %2214 = vmatprep.subr.mxu0 0.0
        %2215 = vmatpush1.msra.mxu0 0.0
        %2216 = vmatprep.mubr.f32.mxu0 0.0
        %2217 = vmatmul.mubr.f32.gmra.mrb[0].mxu0 %v2144
        %v2218 = vpop.f32.mrb[0].mxu0
        %v2219 = vadd.f32 0.0, %v2218
        %v2220 = vpop.f32.mrb[0].mxu0
        %2221 = vmatprep.mubr.f32.mxu0 0.0
        %2222 = vmatmul.mubr.f32.gmra.mrb[0].mxu0 %v2147
        %v2223 = vpop.f32.mrb[0].mxu0
        %v2224 = vadd.f32 0.0, %v2223
        %v2225 = vpop.f32.mrb[0].mxu0
        %2226 = vmatprep.mubr.f32.mxu0 0.0
        %2227 = vmatmul.mubr.f32.gmra.mrb[0].mxu0 %v2150
        %v2228 = vpop.f32.mrb[0].mxu0
        %v2229 = vadd.f32 0.0, %v2228
        %v2230 = vpop.f32.mrb[0].mxu0
        %2231 = vdwg.mxu0
        %2235 = vrot.lane.b32.xlu0 %v2219, 16
        %v2236 = vpop.permute.xlu0 %2235
        %2237 = vrot.lane.b32.xlu0 %v2224, 16
        %v2238 = vpop.permute.xlu0 %2237
        %2239 = vrot.lane.b32.xlu0 %v2229, 16
        %v2240 = vpop.permute.xlu0 %2239
        %v2244 = vsel %vm729, %v1984, %v2236
        %v2245 = vsel %vm729, %v1989, %v2238
        %v2246 = vsel %vm729, %v1994, %v2240
        %s2247 = scalar_lea.vmem %s7, 32
        %v2248 = vld [vmem:[%s2247] sm:$0xff]
        %v2249 = vld [vmem:[%s2247 + $0x8] sm:$0xff]
        %v2250 = vld [vmem:[%s2247 + $0x10] sm:$0xff]
        %v2251 = vld [vmem:[%s2247 + $0x18] sm:$0xff]
        %v2253 = vsel %vm561, %v2244, 0
        %v2256 = vsel %vm561, %v2245, 0
        %v2259 = vsel %vm561, %v2246, 0
        %2261 = vmatprep.subr.mxu0 0.0
        %2262 = vmatpush1.msra.mxu0 %v2248
        %2263 = vmatprep.subr.mxu0 0.0
        %2264 = vmatpush1.msra.mxu0 %v2249
        %2265 = vmatprep.subr.mxu0 0.0
        %2266 = vmatpush1.msra.mxu0 %v2250
        %2267 = vmatprep.subr.mxu0 0.0
        %2268 = vmatpush1.msra.mxu0 %v2251
        %2269 = vmatprep.subr.mxu0 0.0
        %2270 = vmatpush1.msra.mxu0 0.0
        %2271 = vmatprep.subr.mxu0 0.0
        %2272 = vmatpush1.msra.mxu0 0.0
        %2273 = vmatprep.subr.mxu0 0.0
        %2274 = vmatpush1.msra.mxu0 0.0
        %2275 = vmatprep.subr.mxu0 0.0
        %2276 = vmatpush1.msra.mxu0 0.0
        %2277 = vmatprep.subr.mxu0 0.0
        %2278 = vmatpush1.msra.mxu0 0.0
        %2279 = vmatprep.subr.mxu0 0.0
        %2280 = vmatpush1.msra.mxu0 0.0
        %2281 = vmatprep.subr.mxu0 0.0
        %2282 = vmatpush1.msra.mxu0 0.0
        %2283 = vmatprep.subr.mxu0 0.0
        %2284 = vmatpush1.msra.mxu0 0.0
        %2285 = vmatprep.subr.mxu0 0.0
        %2286 = vmatpush1.msra.mxu0 0.0
        %2287 = vmatprep.subr.mxu0 0.0
        %2288 = vmatpush1.msra.mxu0 0.0
        %2289 = vmatprep.subr.mxu0 0.0
        %2290 = vmatpush1.msra.mxu0 0.0
        %2291 = vmatprep.subr.mxu0 0.0
        %2292 = vmatpush1.msra.mxu0 0.0
        %2293 = vmatprep.subr.mxu0 0.0
        %2294 = vmatpush1.msra.mxu0 0.0
        %2295 = vmatprep.subr.mxu0 0.0
        %2296 = vmatpush1.msra.mxu0 0.0
        %2297 = vmatprep.subr.mxu0 0.0
        %2298 = vmatpush1.msra.mxu0 0.0
        %2299 = vmatprep.subr.mxu0 0.0
        %2300 = vmatpush1.msra.mxu0 0.0
        %2301 = vmatprep.subr.mxu0 0.0
        %2302 = vmatpush1.msra.mxu0 0.0
        %2303 = vmatprep.subr.mxu0 0.0
        %2304 = vmatpush1.msra.mxu0 0.0
        %2305 = vmatprep.subr.mxu0 0.0
        %2306 = vmatpush1.msra.mxu0 0.0
        %2307 = vmatprep.subr.mxu0 0.0
        %2308 = vmatpush1.msra.mxu0 0.0
        %2309 = vmatprep.subr.mxu0 0.0
        %2310 = vmatpush1.msra.mxu0 0.0
        %2311 = vmatprep.subr.mxu0 0.0
        %2312 = vmatpush1.msra.mxu0 0.0
        %2313 = vmatprep.subr.mxu0 0.0
        %2314 = vmatpush1.msra.mxu0 0.0
        %2315 = vmatprep.subr.mxu0 0.0
        %2316 = vmatpush1.msra.mxu0 0.0
        %2317 = vmatprep.subr.mxu0 0.0
        %2318 = vmatpush1.msra.mxu0 0.0
        %2319 = vmatprep.subr.mxu0 0.0
        %2320 = vmatpush1.msra.mxu0 0.0
        %2321 = vmatprep.subr.mxu0 0.0
        %2322 = vmatpush1.msra.mxu0 0.0
        %2323 = vmatprep.subr.mxu0 0.0
        %2324 = vmatpush1.msra.mxu0 0.0
        %2325 = vmatprep.mubr.f32.mxu0 0.0
        %2326 = vmatmul.mubr.f32.gmra.mrb[0].mxu0 %v2253
        %v2327 = vpop.f32.mrb[0].mxu0
        %v2328 = vadd.f32 0.0, %v2327
        %v2329 = vpop.f32.mrb[0].mxu0
        %2330 = vmatprep.mubr.f32.mxu0 0.0
        %2331 = vmatmul.mubr.f32.gmra.mrb[0].mxu0 %v2256
        %v2332 = vpop.f32.mrb[0].mxu0
        %v2333 = vadd.f32 0.0, %v2332
        %v2334 = vpop.f32.mrb[0].mxu0
        %2335 = vmatprep.mubr.f32.mxu0 0.0
        %2336 = vmatmul.mubr.f32.gmra.mrb[0].mxu0 %v2259
        %v2337 = vpop.f32.mrb[0].mxu0
        %v2338 = vadd.f32 0.0, %v2337
        %v2339 = vpop.f32.mrb[0].mxu0
        %2340 = vdwg.mxu0
        %v2341 = vadd.f32 %v1599, %v2328
        %v2342 = vadd.f32 %v1600, %v2333
        %v2343 = vadd.f32 %v1601, %v2338
        %s2344 = scalar_lea.vmem %s8, 1
        %v2345 = vld [vmem:[%s2344] sm:$0x1]
        %v2347 = vlaneseq
        %v2348 = vshrl.u32 %v2347, 7
        %v2349 = vsub.s32 0, %v2348
        %v2350 = vrot.slane %v2345, %v2349
        %v2352 = vadd.f32 %v2341, %v2350
        %v2353 = vadd.f32 %v2342, %v2350
        %v2354 = vadd.f32 %v2343, %v2350
        %s2355 = scalar_lea.vmem %s9, 1
        %v2356 = vld [vmem:[%s2355] sm:$0x1]
        %s2357 = scalar_lea.vmem %s10, 1
        %v2358 = vld [vmem:[%s2357] sm:$0x1]
        %v2359 = vsel %vm561, %v2352, 0.0
        %2360 = vadd.xlane.f32.xlu0 %v2359
        %v2361 = vpop.xlane.xlu0 %2360
        %v2362 = vsel %vm561, %v2353, 0.0
        %2363 = vadd.xlane.f32.xlu0 %v2362
        %v2364 = vpop.xlane.xlu0 %2363
        %v2365 = vsel %vm561, %v2354, 0.0
        %2366 = vadd.xlane.f32.xlu0 %v2365
        %v2367 = vpop.xlane.xlu0 %2366
        %v2368 = vmul.f32 %v2361, %v571
        %v2369 = vmul.f32 %v2364, %v571
        %v2370 = vmul.f32 %v2367, %v571
        %v2371 = vsub.f32 %v2352, %v2368
        %v2372 = vsub.f32 %v2353, %v2369
        %v2373 = vsub.f32 %v2354, %v2370
        %v2374 = vmul.f32 %v2371, %v2371
        %v2375 = vmul.f32 %v2372, %v2372
        %v2376 = vmul.f32 %v2373, %v2373
        %v2377 = vsel %vm561, %v2374, 0.0
        %2378 = vadd.xlane.f32.xlu0 %v2377
        %v2379 = vpop.xlane.xlu0 %2378
        %v2380 = vsel %vm561, %v2375, 0.0
        %2381 = vadd.xlane.f32.xlu0 %v2380
        %v2382 = vpop.xlane.xlu0 %2381
        %v2383 = vsel %vm561, %v2376, 0.0
        %2384 = vadd.xlane.f32.xlu0 %v2383
        %v2385 = vpop.xlane.xlu0 %2384
        %v2386 = vmul.f32 %v2379, %v571
        %v2387 = vmul.f32 %v2382, %v571
        %v2388 = vmul.f32 %v2385, %v571
        %v2389 = vadd.f32 %v2386, 1e-05
        %v2390 = vadd.f32 %v2387, 1e-05
        %v2391 = vadd.f32 %v2388, 1e-05
        %v2392 = vrsqrt.pop %v2389
        %v2393 = vrsqrt.pop %v2390
        %v2394 = vrsqrt.pop %v2391
        %v2395 = vmul.f32 %v2371, %v2392
        %v2396 = vmul.f32 %v2372, %v2393
        %v2397 = vmul.f32 %v2373, %v2394
        %v2399 = vlaneseq
        %v2400 = vshrl.u32 %v2399, 7
        %v2401 = vsub.s32 0, %v2400
        %v2402 = vrot.slane %v2356, %v2401
        %v2404 = vmul.f32 %v2395, %v2402
        %v2405 = vmul.f32 %v2396, %v2402
        %v2406 = vmul.f32 %v2397, %v2402
        %v2408 = vlaneseq
        %v2409 = vshrl.u32 %v2408, 7
        %v2410 = vsub.s32 0, %v2409
        %v2411 = vrot.slane %v2358, %v2410
        %v2413 = vadd.f32 %v2404, %v2411
        %v2414 = vadd.f32 %v2405, %v2411
        %v2415 = vadd.f32 %v2406, %v2411
        %s2416 = scalar_lea.vmem %s11, 32
        %v2417 = vld [vmem:[%s2416] sm:$0xff]
        %v2418 = vld [vmem:[%s2416 + $0x8] sm:$0xff]
        %v2419 = vld [vmem:[%s2416 + $0x10] sm:$0xff]
        %v2420 = vld [vmem:[%s2416 + $0x18] sm:$0xff]
        %s2421 = scalar_lea.vmem %s12, 1
        %v2422 = vld [vmem:[%s2421] sm:$0x1]
        %v2424 = vlaneseq
        %v2425 = vshrl.u32 %v2424, 7
        %v2426 = vsub.s32 0, %v2425
        %v2427 = vrot.slane %v2422, %v2426
        %v2430 = vsel %vm561, %v2413, 0
        %v2433 = vsel %vm561, %v2414, 0
        %v2436 = vsel %vm561, %v2415, 0
        %2438 = vmatprep.subr.mxu0 0.0
        %2439 = vmatpush1.msra.mxu0 %v2417
        %2440 = vmatprep.subr.mxu0 0.0
        %2441 = vmatpush1.msra.mxu0 %v2418
        %2442 = vmatprep.subr.mxu0 0.0
        %2443 = vmatpush1.msra.mxu0 %v2419
        %2444 = vmatprep.subr.mxu0 0.0
        %2445 = vmatpush1.msra.mxu0 %v2420
        %2446 = vmatprep.subr.mxu0 0.0
        %2447 = vmatpush1.msra.mxu0 0.0
        %2448 = vmatprep.subr.mxu0 0.0
        %2449 = vmatpush1.msra.mxu0 0.0
        %2450 = vmatprep.subr.mxu0 0.0
        %2451 = vmatpush1.msra.mxu0 0.0
        %2452 = vmatprep.subr.mxu0 0.0
        %2453 = vmatpush1.msra.mxu0 0.0
        %2454 = vmatprep.subr.mxu0 0.0
        %2455 = vmatpush1.msra.mxu0 0.0
        %2456 = vmatprep.subr.mxu0 0.0
        %2457 = vmatpush1.msra.mxu0 0.0
        %2458 = vmatprep.subr.mxu0 0.0
        %2459 = vmatpush1.msra.mxu0 0.0
        %2460 = vmatprep.subr.mxu0 0.0
        %2461 = vmatpush1.msra.mxu0 0.0
        %2462 = vmatprep.subr.mxu0 0.0
        %2463 = vmatpush1.msra.mxu0 0.0
        %2464 = vmatprep.subr.mxu0 0.0
        %2465 = vmatpush1.msra.mxu0 0.0
        %2466 = vmatprep.subr.mxu0 0.0
        %2467 = vmatpush1.msra.mxu0 0.0
        %2468 = vmatprep.subr.mxu0 0.0
        %2469 = vmatpush1.msra.mxu0 0.0
        %2470 = vmatprep.subr.mxu0 0.0
        %2471 = vmatpush1.msra.mxu0 0.0
        %2472 = vmatprep.subr.mxu0 0.0
        %2473 = vmatpush1.msra.mxu0 0.0
        %2474 = vmatprep.subr.mxu0 0.0
        %2475 = vmatpush1.msra.mxu0 0.0
        %2476 = vmatprep.subr.mxu0 0.0
        %2477 = vmatpush1.msra.mxu0 0.0
        %2478 = vmatprep.subr.mxu0 0.0
        %2479 = vmatpush1.msra.mxu0 0.0
        %2480 = vmatprep.subr.mxu0 0.0
        %2481 = vmatpush1.msra.mxu0 0.0
        %2482 = vmatprep.subr.mxu0 0.0
        %2483 = vmatpush1.msra.mxu0 0.0
        %2484 = vmatprep.subr.mxu0 0.0
        %2485 = vmatpush1.msra.mxu0 0.0
        %2486 = vmatprep.subr.mxu0 0.0
        %2487 = vmatpush1.msra.mxu0 0.0
        %2488 = vmatprep.subr.mxu0 0.0
        %2489 = vmatpush1.msra.mxu0 0.0
        %2490 = vmatprep.subr.mxu0 0.0
        %2491 = vmatpush1.msra.mxu0 0.0
        %2492 = vmatprep.subr.mxu0 0.0
        %2493 = vmatpush1.msra.mxu0 0.0
        %2494 = vmatprep.subr.mxu0 0.0
        %2495 = vmatpush1.msra.mxu0 0.0
        %2496 = vmatprep.subr.mxu0 0.0
        %2497 = vmatpush1.msra.mxu0 0.0
        %2498 = vmatprep.subr.mxu0 0.0
        %2499 = vmatpush1.msra.mxu0 0.0
        %2500 = vmatprep.subr.mxu0 0.0
        %2501 = vmatpush1.msra.mxu0 0.0
        %2502 = vmatprep.mubr.f32.mxu0 0.0
        %2503 = vmatmul.mubr.f32.gmra.mrb[0].mxu0 %v2430
        %v2504 = vpop.f32.mrb[0].mxu0
        %v2505 = vadd.f32 %v2427, %v2504
        %v2506 = vpop.f32.mrb[0].mxu0
        %2507 = vmatprep.mubr.f32.mxu0 0.0
        %2508 = vmatmul.mubr.f32.gmra.mrb[0].mxu0 %v2433
        %v2509 = vpop.f32.mrb[0].mxu0
        %v2510 = vadd.f32 %v2427, %v2509
        %v2511 = vpop.f32.mrb[0].mxu0
        %2512 = vmatprep.mubr.f32.mxu0 0.0
        %2513 = vmatmul.mubr.f32.gmra.mrb[0].mxu0 %v2436
        %v2514 = vpop.f32.mrb[0].mxu0
        %v2515 = vadd.f32 %v2427, %v2514
        %v2516 = vpop.f32.mrb[0].mxu0
        %2517 = vdwg.mxu0
        %v2518 = vmul.f32 %v2505, 1.702
        %v2519 = vmul.f32 %v2510, 1.702
        %v2520 = vmul.f32 %v2515, 1.702
        %v2521 = vxor.u32 %v2518, 2147483648
        %v2522 = vxor.u32 %v2519, 2147483648
        %v2523 = vxor.u32 %v2520, 2147483648
        %v2524 = vmul.f32 %v2521, 1.442695
        %v2525 = vpow.pop %v2524
        %v2526 = vmul.f32 %v2522, 1.442695
        %v2527 = vpow.pop %v2526
        %v2528 = vmul.f32 %v2523, 1.442695
        %v2529 = vpow.pop %v2528
        %v2530 = vadd.f32 %v2525, 1.0
        %v2531 = vadd.f32 %v2527, 1.0
        %v2532 = vadd.f32 %v2529, 1.0
        %v2533 = vrcp.pop %v2530
        %v2534 = vmul.f32 1.0, %v2533
        %v2535 = vrcp.pop %v2531
        %v2536 = vmul.f32 1.0, %v2535
        %v2537 = vrcp.pop %v2532
        %v2538 = vmul.f32 1.0, %v2537
        %v2539 = vmul.f32 %v2505, %v2534
        %v2540 = vmul.f32 %v2510, %v2536
        %v2541 = vmul.f32 %v2515, %v2538
        %s2542 = scalar_lea.vmem %s13, 128
        %v2543 = vld [vmem:[%s2542] sm:$0xff]
        %v2544 = vld [vmem:[%s2542 + $0x8] sm:$0xff]
        %v2545 = vld [vmem:[%s2542 + $0x10] sm:$0xff]
        %v2546 = vld [vmem:[%s2542 + $0x18] sm:$0xff]
        %v2547 = vld [vmem:[%s2542 + $0x20] sm:$0xff]
        %v2548 = vld [vmem:[%s2542 + $0x28] sm:$0xff]
        %v2549 = vld [vmem:[%s2542 + $0x30] sm:$0xff]
        %v2550 = vld [vmem:[%s2542 + $0x38] sm:$0xff]
        %v2551 = vld [vmem:[%s2542 + $0x40] sm:$0xff]
        %v2552 = vld [vmem:[%s2542 + $0x48] sm:$0xff]
        %v2553 = vld [vmem:[%s2542 + $0x50] sm:$0xff]
        %v2554 = vld [vmem:[%s2542 + $0x58] sm:$0xff]
        %v2555 = vld [vmem:[%s2542 + $0x60] sm:$0xff]
        %v2556 = vld [vmem:[%s2542 + $0x68] sm:$0xff]
        %v2557 = vld [vmem:[%s2542 + $0x70] sm:$0xff]
        %v2558 = vld [vmem:[%s2542 + $0x78] sm:$0xff]
        %2559 = vmatprep.subr.mxu0 0.0
        %2560 = vmatpush1.msra.mxu0 %v2543
        %2561 = vmatprep.subr.mxu0 0.0
        %2562 = vmatpush1.msra.mxu0 %v2544
        %2563 = vmatprep.subr.mxu0 0.0
        %2564 = vmatpush1.msra.mxu0 %v2545
        %2565 = vmatprep.subr.mxu0 0.0
        %2566 = vmatpush1.msra.mxu0 %v2546
        %2567 = vmatprep.subr.mxu0 0.0
        %2568 = vmatpush1.msra.mxu0 %v2547
        %2569 = vmatprep.subr.mxu0 0.0
        %2570 = vmatpush1.msra.mxu0 %v2548
        %2571 = vmatprep.subr.mxu0 0.0
        %2572 = vmatpush1.msra.mxu0 %v2549
        %2573 = vmatprep.subr.mxu0 0.0
        %2574 = vmatpush1.msra.mxu0 %v2550
        %2575 = vmatprep.subr.mxu0 0.0
        %2576 = vmatpush1.msra.mxu0 %v2551
        %2577 = vmatprep.subr.mxu0 0.0
        %2578 = vmatpush1.msra.mxu0 %v2552
        %2579 = vmatprep.subr.mxu0 0.0
        %2580 = vmatpush1.msra.mxu0 %v2553
        %2581 = vmatprep.subr.mxu0 0.0
        %2582 = vmatpush1.msra.mxu0 %v2554
        %2583 = vmatprep.subr.mxu0 0.0
        %2584 = vmatpush1.msra.mxu0 %v2555
        %2585 = vmatprep.subr.mxu0 0.0
        %2586 = vmatpush1.msra.mxu0 %v2556
        %2587 = vmatprep.subr.mxu0 0.0
        %2588 = vmatpush1.msra.mxu0 %v2557
        %2589 = vmatprep.subr.mxu0 0.0
        %2590 = vmatpush1.msra.mxu0 %v2558
        %2591 = vmatprep.subr.mxu0 0.0
        %2592 = vmatpush1.msra.mxu0 0.0
        %2593 = vmatprep.subr.mxu0 0.0
        %2594 = vmatpush1.msra.mxu0 0.0
        %2595 = vmatprep.subr.mxu0 0.0
        %2596 = vmatpush1.msra.mxu0 0.0
        %2597 = vmatprep.subr.mxu0 0.0
        %2598 = vmatpush1.msra.mxu0 0.0
        %2599 = vmatprep.subr.mxu0 0.0
        %2600 = vmatpush1.msra.mxu0 0.0
        %2601 = vmatprep.subr.mxu0 0.0
        %2602 = vmatpush1.msra.mxu0 0.0
        %2603 = vmatprep.subr.mxu0 0.0
        %2604 = vmatpush1.msra.mxu0 0.0
        %2605 = vmatprep.subr.mxu0 0.0
        %2606 = vmatpush1.msra.mxu0 0.0
        %2607 = vmatprep.subr.mxu0 0.0
        %2608 = vmatpush1.msra.mxu0 0.0
        %2609 = vmatprep.subr.mxu0 0.0
        %2610 = vmatpush1.msra.mxu0 0.0
        %2611 = vmatprep.subr.mxu0 0.0
        %2612 = vmatpush1.msra.mxu0 0.0
        %2613 = vmatprep.subr.mxu0 0.0
        %2614 = vmatpush1.msra.mxu0 0.0
        %2615 = vmatprep.subr.mxu0 0.0
        %2616 = vmatpush1.msra.mxu0 0.0
        %2617 = vmatprep.subr.mxu0 0.0
        %2618 = vmatpush1.msra.mxu0 0.0
        %2619 = vmatprep.subr.mxu0 0.0
        %2620 = vmatpush1.msra.mxu0 0.0
        %2621 = vmatprep.subr.mxu0 0.0
        %2622 = vmatpush1.msra.mxu0 0.0
        %2623 = vmatprep.mubr.f32.mxu0 0.0
        %2624 = vmatmul.mubr.f32.gmra.mrb[0].mxu0 %v2539
        %v2625 = vpop.f32.mrb[0].mxu0
        %v2626 = vadd.f32 0.0, %v2625
        %v2627 = vpop.f32.mrb[0].mxu0
        %2628 = vmatprep.mubr.f32.mxu0 0.0
        %2629 = vmatmul.mubr.f32.gmra.mrb[0].mxu0 %v2540
        %v2630 = vpop.f32.mrb[0].mxu0
        %v2631 = vadd.f32 0.0, %v2630
        %v2632 = vpop.f32.mrb[0].mxu0
        %2633 = vmatprep.mubr.f32.mxu0 0.0
        %2634 = vmatmul.mubr.f32.gmra.mrb[0].mxu0 %v2541
        %v2635 = vpop.f32.mrb[0].mxu0
        %v2636 = vadd.f32 0.0, %v2635
        %v2637 = vpop.f32.mrb[0].mxu0
        %2638 = vdwg.mxu0
        %v2639 = vadd.f32 %v2352, %v2626
        %v2640 = vadd.f32 %v2353, %v2631
        %v2641 = vadd.f32 %v2354, %v2636
        %s2642 = scalar_lea.vmem %s14, 1
        %v2643 = vld [vmem:[%s2642] sm:$0x1]
        %v2645 = vlaneseq
        %v2646 = vshrl.u32 %v2645, 7
        %v2647 = vsub.s32 0, %v2646
        %v2648 = vrot.slane %v2643, %v2647
        %v2650 = vadd.f32 %v2639, %v2648
        %v2651 = vadd.f32 %v2640, %v2648
        %v2652 = vadd.f32 %v2641, %v2648
        %v2653 = vlaneseq
        %v2654 = vand.u32 %v2653, 127
        %s2655 = smul.u32 %s38, 3
        %s2656 = sld [smem:[#allocation3 + %s2655]]
        %v2657 = vstv %s2656
        %vm2658 = vcmp.eq.s32.totalorder %v2654, %v2657
        %v2659 = vsel %vm2658, 1.0, 0.0
        %s2660 = sadd.s32 %s2655, 1
        %s2661 = sld [smem:[#allocation3 + %s2660]]
        %s2662 = sadd.s32 %s2661, 8
        %v2663 = vstv %s2662
        %vm2664 = vcmp.eq.s32.totalorder %v2654, %v2663
        %v2665 = vsel %vm2664, 1.0, 0.0
        %s2666 = sadd.s32 %s2655, 2
        %s2667 = sld [smem:[#allocation3 + %s2666]]
        %s2668 = sadd.s32 %s2667, 16
        %v2669 = vstv %s2668
        %vm2670 = vcmp.eq.s32.totalorder %v2654, %v2669
        %v2671 = vsel %vm2670, 1.0, 0.0
        %vm2672 = vcmask 1040384
        %v2673 = vsel %vm2672, %v2659, %v2665
        %vm2674 = vcmask 1041408
        %v2675 = vsel %vm2674, %v2673, %v2671
        %v2677 = vsel %vm822, %v2675, 0
        %2679 = vmatprep.subr.mxu0 0.0
        %2680 = vmatpush1.msra.mxu0 %v2650
        %2681 = vmatprep.subr.mxu0 0.0
        %2682 = vmatpush1.msra.mxu0 %v2651
        %2683 = vmatprep.subr.mxu0 0.0
        %2684 = vmatpush1.msra.mxu0 %v2652
        %2685 = vmatprep.subr.mxu0 0.0
        %2686 = vmatpush1.msra.mxu0 0.0
        %2687 = vmatprep.subr.mxu0 0.0
        %2688 = vmatpush1.msra.mxu0 0.0
        %2689 = vmatprep.subr.mxu0 0.0
        %2690 = vmatpush1.msra.mxu0 0.0
        %2691 = vmatprep.subr.mxu0 0.0
        %2692 = vmatpush1.msra.mxu0 0.0
        %2693 = vmatprep.subr.mxu0 0.0
        %2694 = vmatpush1.msra.mxu0 0.0
        %2695 = vmatprep.subr.mxu0 0.0
        %2696 = vmatpush1.msra.mxu0 0.0
        %2697 = vmatprep.subr.mxu0 0.0
        %2698 = vmatpush1.msra.mxu0 0.0
        %2699 = vmatprep.subr.mxu0 0.0
        %2700 = vmatpush1.msra.mxu0 0.0
        %2701 = vmatprep.subr.mxu0 0.0
        %2702 = vmatpush1.msra.mxu0 0.0
        %2703 = vmatprep.subr.mxu0 0.0
        %2704 = vmatpush1.msra.mxu0 0.0
        %2705 = vmatprep.subr.mxu0 0.0
        %2706 = vmatpush1.msra.mxu0 0.0
        %2707 = vmatprep.subr.mxu0 0.0
        %2708 = vmatpush1.msra.mxu0 0.0
        %2709 = vmatprep.subr.mxu0 0.0
        %2710 = vmatpush1.msra.mxu0 0.0
        %2711 = vmatprep.subr.mxu0 0.0
        %2712 = vmatpush1.msra.mxu0 0.0
        %2713 = vmatprep.subr.mxu0 0.0
        %2714 = vmatpush1.msra.mxu0 0.0
        %2715 = vmatprep.subr.mxu0 0.0
        %2716 = vmatpush1.msra.mxu0 0.0
        %2717 = vmatprep.subr.mxu0 0.0
        %2718 = vmatpush1.msra.mxu0 0.0
        %2719 = vmatprep.subr.mxu0 0.0
        %2720 = vmatpush1.msra.mxu0 0.0
        %2721 = vmatprep.subr.mxu0 0.0
        %2722 = vmatpush1.msra.mxu0 0.0
        %2723 = vmatprep.subr.mxu0 0.0
        %2724 = vmatpush1.msra.mxu0 0.0
        %2725 = vmatprep.subr.mxu0 0.0
        %2726 = vmatpush1.msra.mxu0 0.0
        %2727 = vmatprep.subr.mxu0 0.0
        %2728 = vmatpush1.msra.mxu0 0.0
        %2729 = vmatprep.subr.mxu0 0.0
        %2730 = vmatpush1.msra.mxu0 0.0
        %2731 = vmatprep.subr.mxu0 0.0
        %2732 = vmatpush1.msra.mxu0 0.0
        %2733 = vmatprep.subr.mxu0 0.0
        %2734 = vmatpush1.msra.mxu0 0.0
        %2735 = vmatprep.subr.mxu0 0.0
        %2736 = vmatpush1.msra.mxu0 0.0
        %2737 = vmatprep.subr.mxu0 0.0
        %2738 = vmatpush1.msra.mxu0 0.0
        %2739 = vmatprep.subr.mxu0 0.0
        %2740 = vmatpush1.msra.mxu0 0.0
        %2741 = vmatprep.subr.mxu0 0.0
        %2742 = vmatpush1.msra.mxu0 0.0
        %2743 = vmatprep.mubr.f32.mxu0 0.0
        %2744 = vmatmul.mubr.f32.gmra.mrb[0].mxu0 %v2677
        %v2745 = vpop.f32.mrb[0].mxu0
        %v2746 = vadd.f32 0.0, %v2745
        %v2747 = vpop.f32.mrb[0].mxu0
        %2748 = vdwg.mxu0
        %v2749 = vld [vmem:[%s15] sm:$0x1]
        %v2750 = vld [vmem:[%s16] sm:$0x1]
        %vm2751 = vcmask 256000
        %v2752 = vsel %vm2751, %v2746, 0.0
        %2753 = vadd.xlane.f32.xlu0 %v2752
        %v2754 = vpop.xlane.xlu0 %2753
        %v2755 = vmul.f32 %v2754, %v571
        %v2756 = vsub.f32 %v2746, %v2755
        %v2757 = vmul.f32 %v2756, %v2756
        %v2758 = vsel %vm2751, %v2757, 0.0
        %2759 = vadd.xlane.f32.xlu0 %v2758
        %v2760 = vpop.xlane.xlu0 %2759
        %v2761 = vmul.f32 %v2760, %v571
        %v2762 = vadd.f32 %v2761, 1e-05
        %v2763 = vrsqrt.pop %v2762
        %v2764 = vmul.f32 %v2756, %v2763
        %v2766 = vlaneseq
        %v2767 = vshrl.u32 %v2766, 7
        %v2768 = vsub.s32 0, %v2767
        %v2769 = vrot.slane %v2749, %v2768
        %v2771 = vmul.f32 %v2764, %v2769
        %v2773 = vlaneseq
        %v2774 = vshrl.u32 %v2773, 7
        %v2775 = vsub.s32 0, %v2774
        %v2776 = vrot.slane %v2750, %v2775
        %v2778 = vadd.f32 %v2771, %v2776
        %v2779 = vld [vmem:[%s17] sm:$0xff]
        %v2780 = vld [vmem:[%s17 + $0x8] sm:$0xff]
        %v2781 = vld [vmem:[%s17 + $0x10] sm:$0xff]
        %v2782 = vld [vmem:[%s17 + $0x18] sm:$0xff]
        %v2784 = vsel %vm561, %v2778, 0
        %2786 = vmatprep.subr.mxu0 0.0
        %2787 = vmatpush1.msra.mxu0 %v2779
        %2788 = vmatprep.subr.mxu0 0.0
        %2789 = vmatpush1.msra.mxu0 %v2780
        %2790 = vmatprep.subr.mxu0 0.0
        %2791 = vmatpush1.msra.mxu0 %v2781
        %2792 = vmatprep.subr.mxu0 0.0
        %2793 = vmatpush1.msra.mxu0 %v2782
        %2794 = vmatprep.subr.mxu0 0.0
        %2795 = vmatpush1.msra.mxu0 0.0
        %2796 = vmatprep.subr.mxu0 0.0
        %2797 = vmatpush1.msra.mxu0 0.0
        %2798 = vmatprep.subr.mxu0 0.0
        %2799 = vmatpush1.msra.mxu0 0.0
        %2800 = vmatprep.subr.mxu0 0.0
        %2801 = vmatpush1.msra.mxu0 0.0
        %2802 = vmatprep.subr.mxu0 0.0
        %2803 = vmatpush1.msra.mxu0 0.0
        %2804 = vmatprep.subr.mxu0 0.0
        %2805 = vmatpush1.msra.mxu0 0.0
        %2806 = vmatprep.subr.mxu0 0.0
        %2807 = vmatpush1.msra.mxu0 0.0
        %2808 = vmatprep.subr.mxu0 0.0
        %2809 = vmatpush1.msra.mxu0 0.0
        %2810 = vmatprep.subr.mxu0 0.0
        %2811 = vmatpush1.msra.mxu0 0.0
        %2812 = vmatprep.subr.mxu0 0.0
        %2813 = vmatpush1.msra.mxu0 0.0
        %2814 = vmatprep.subr.mxu0 0.0
        %2815 = vmatpush1.msra.mxu0 0.0
        %2816 = vmatprep.subr.mxu0 0.0
        %2817 = vmatpush1.msra.mxu0 0.0
        %2818 = vmatprep.subr.mxu0 0.0
        %2819 = vmatpush1.msra.mxu0 0.0
        %2820 = vmatprep.subr.mxu0 0.0
        %2821 = vmatpush1.msra.mxu0 0.0
        %2822 = vmatprep.subr.mxu0 0.0
        %2823 = vmatpush1.msra.mxu0 0.0
        %2824 = vmatprep.subr.mxu0 0.0
        %2825 = vmatpush1.msra.mxu0 0.0
        %2826 = vmatprep.subr.mxu0 0.0
        %2827 = vmatpush1.msra.mxu0 0.0
        %2828 = vmatprep.subr.mxu0 0.0
        %2829 = vmatpush1.msra.mxu0 0.0
        %2830 = vmatprep.subr.mxu0 0.0
        %2831 = vmatpush1.msra.mxu0 0.0
        %2832 = vmatprep.subr.mxu0 0.0
        %2833 = vmatpush1.msra.mxu0 0.0
        %2834 = vmatprep.subr.mxu0 0.0
        %2835 = vmatpush1.msra.mxu0 0.0
        %2836 = vmatprep.subr.mxu0 0.0
        %2837 = vmatpush1.msra.mxu0 0.0
        %2838 = vmatprep.subr.mxu0 0.0
        %2839 = vmatpush1.msra.mxu0 0.0
        %2840 = vmatprep.subr.mxu0 0.0
        %2841 = vmatpush1.msra.mxu0 0.0
        %2842 = vmatprep.subr.mxu0 0.0
        %2843 = vmatpush1.msra.mxu0 0.0
        %2844 = vmatprep.subr.mxu0 0.0
        %2845 = vmatpush1.msra.mxu0 0.0
        %2846 = vmatprep.subr.mxu0 0.0
        %2847 = vmatpush1.msra.mxu0 0.0
        %2848 = vmatprep.subr.mxu0 0.0
        %2849 = vmatpush1.msra.mxu0 0.0
        %2850 = vmatprep.mubr.f32.mxu0 0.0
        %2851 = vmatmul.mubr.f32.gmra.mrb[0].mxu0 %v2784
        %v2852 = vpop.f32.mrb[0].mxu0
        %v2853 = vadd.f32 0.0, %v2852
        %v2854 = vpop.f32.mrb[0].mxu0
        %2855 = vdwg.mxu0
        %v2856 = vmul.f32 %v2853, %v2853
        %vm2857 = vcmask 1042432
        %v2858 = vsel %vm2857, %v2856, 0.0
        %2859 = vadd.xlane.f32.xlu0 %v2858
        %v2860 = vpop.xlane.xlu0 %2859
        %v2861 = vmax.f32 %v2860, 1e-24
        %v2862 = vrsqrt.pop %v2861
        %v2863 = vmul.f32 %v2853, %v2862
        %v2864 = vsel %vm2857, %v2863, 0.0
        %v2865 = vrot.slane %v2864, 4
        %v2866 = vadd.f32 %v2864, %v2865
        %v2867 = vrot.slane %v2866, 2
        %v2868 = vadd.f32 %v2866, %v2867
        %v2869 = vrot.slane %v2868, 1
        %v2870 = vadd.f32 %v2868, %v2869
        %v2871 = vrcp.pop 3.0
        %v2872 = vmul.f32 %v2870, %v2871
        %v2873 = vmul.f32 %v2872, %v2872
        %2874 = vadd.xlane.f32.xlu0 %v2873
        %v2875 = vpop.xlane.xlu0 %2874
        %v2876 = vmax.f32 %v2875, 1e-24
        %v2877 = vrsqrt.pop %v2876
        %v2878 = vmul.f32 %v2872, %v2877
        %2879 = vst [vmem:[%s547] sm:$0x1] %v2878
        %s2880 = sand.u32 %s408, 1
        %s2881 = scalar_lea.sflag [#allocation5], %s2880
        %s2882 = sand.u32 %s408, 1
        %s2883 = scalar_lea.vmem [#allocation4], %s2882
        // Predicated region
        $region89: #{crossmost_forward.1} parent=87 // pred_check
          %p2884 = pneg %p418
        $region90: #{crossmost_forward.1} parent=87 // pred_check_branch
          %2886 = sbr.rel (%p2884) target = $region92
        $region91: #{crossmost_forward.1} parent=87 // pred_region
          %s2888 = ssub.s32 16, 16
          %2889 = vsyncadd %s2881, %s2888
          %s2890 = smul.addr %s38, 16
          %s2891 = scalar_lea.hbm %s18, %s2890
          %s2893 = sshll.u32 %s2883, 4
          %s2894 = int_to_ptr.vmem [resolvable:$true] %s2893
          %2896 = dma.vmem_to_hbm [thread:$0]  %s2894, 16, %s2891, %s2881
        $region92: #{crossmost_forward.1} parent=87 // pred_fallthru
          _
      $region88: #{crossmost_forward.1} parent=5 // pred_fallthru
        _
      %p2897 = scmp.le.s32.totalorder 2, %s33
      // Predicated region
      $region93: #{crossmost_forward.1} parent=5 // pred_check
        %p2898 = pneg %p2897
      $region94: #{crossmost_forward.1} parent=5 // pred_check_branch
        %2900 = sbr.rel (%p2898) target = $region96
      $region95: #{crossmost_forward.1} parent=5 // pred_region
        %s2901 = ssub.s32 %s33, 2
        // Predicated region
        $region97: #{crossmost_forward.1} parent=95 // pred_check
          %p2902 = pneg %p424
        $region98: #{crossmost_forward.1} parent=95 // pred_check_branch
          %2904 = sbr.rel (%p2902) target = $region100
        $region99: #{crossmost_forward.1} parent=95 // pred_region
          %s2905 = sand.u32 %s409, 1
          %s2906 = scalar_lea.sflag [#allocation5], %s2905
          %s2907 = sand.u32 %s409, 1
          %s2908 = scalar_lea.vmem [#allocation4], %s2907
          %2909 = dma.done %s2906, 16
        $region100: #{crossmost_forward.1} parent=95 // pred_fallthru
          _
      $region96: #{crossmost_forward.1} parent=5 // pred_fallthru
        _
    $region6: #{crossmost_forward.1} parent=1 // loop_footer
      %s37 = sadd.s32 1, %s33
    $region7: #{crossmost_forward.1} parent=1 // loop_footer_branch
      %32 = sbr.rel target = $region3
    $region8: #{crossmost_forward.1} parent=1 // loop_exit
      _
    %2910 = vsyncpa [#allocation5], 1
    %s2911 = scalar_lea.sflag [#allocation5], 1
    %2912 = vsyncpa %s2911, 1

</llo_original>
